<compile_context>
chip_gen: v7x
topology: tpu7x:2x2x1
jax: 0.10.0
libtpu: 0.0.40
codegen_flags: <defaults>
</compile_context>

<pallas_src>
import jax
import jax.numpy as jnp
from jax import lax
from jax.experimental import pallas as pl
from jax.experimental.pallas import tpu as pltpu

_EPS = 1e-5
_CPAD = 16                       # pad 10-channel conv outputs to 16 lanes
_MAX_TILE_ROWS = 512             # M-tile cap (safe on v7x; v5e/v6e may raise)
_VMEM_LIMIT = 32 * 1024 * 1024   # explicit scoped-VMEM budget
_DT = jnp.bfloat16               # MXU / inter-kernel activation dtype


def _round_up(x, m):
    return (x + m - 1) // m * m


def _compiler_params(ngrid):
    return pltpu.CompilerParams(
        dimension_semantics=("parallel",) * ngrid,
        vmem_limit_bytes=_VMEM_LIMIT,
    )


def _pick_tile(rows, *, min_blocks=1, max_rows=_MAX_TILE_ROWS):
    """Rows per grid block: multiple of 16, <= max_rows, and small enough to
    give >= min_blocks blocks when rows allow (v7x: 2 TensorCores)."""
    rows16 = _round_up(max(rows, 1), 16)
    tile = min(max_rows, rows16)
    if min_blocks > 1:
        tile = min(tile, max(16, _round_up(rows16 // min_blocks, 16)))
    return tile


# ------------------------------ Pallas kernels ------------------------------ #
def _conv_bn_relu_pool(x_ref, w_ref, s_ref):
    """conv-as-matmul + folded BN + ReLU + 2x2 maxpool.

    x_ref holds 4 pool-parity slabs of im2col rows, slab-major: (4*T, K).
    One MXU push for all 4 slabs, then slab-max + shift + ReLU.
    BN scale is pre-folded into w; padded output channels rely on zero weight
    columns AND zero shift entries so they stay exactly 0.
    """
    t = x_ref.shape[0] // 4
    acc = jnp.dot(x_ref[...], w_ref[...], preferred_element_type=jnp.float32)
    m = jnp.maximum(jnp.maximum(acc[0:t], acc[t:2 * t]),
                    jnp.maximum(acc[2 * t:3 * t], acc[3 * t:4 * t]))
    return jnp.maximum(m + s_ref[...], 0.0)


def _conv_pool_kernel(x_ref, w_ref, s_ref, o_ref):
    o_ref[...] = _conv_bn_relu_pool(x_ref, w_ref, s_ref).astype(o_ref.dtype)


def _conv_pool_1x1_kernel(x_ref, w_ref, s_ref, w3_ref, s3_ref, o_ref):
    # conv2 + BN + ReLU + pool, then the 1x1 conv3 + BN + ReLU, all in VMEM.
    pooled = _conv_bn_relu_pool(x_ref, w_ref, s_ref).astype(w3_ref.dtype)
    z3 = jnp.dot(pooled, w3_ref[...], preferred_element_type=jnp.float32)
    o_ref[...] = jnp.maximum(z3 + s3_ref[...], 0.0).astype(o_ref.dtype)


def _tail_kernel(p4_ref, oa_ref, w4_ref, s4_ref, w5_ref, s5_ref,
                 w1f_ref, w1oa_ref, s1_ref, w2_ref, s2_ref, q_ref):
    # conv4 + BN + ReLU + pool3 (one merged MXU push over the 4 parity slabs)
    pooled = _conv_bn_relu_pool(p4_ref, w4_ref, s4_ref).astype(w5_ref.dtype)
    c_in = pooled.shape[-1]
    w5 = w5_ref[...]
    n_pos = w5.shape[0] // c_in            # conv5 kernel positions (hk*hk)
    nbp = pooled.shape[0] // n_pos         # padded batch rows
    # conv5: full-extent conv == per-kernel-position matmuls summed; rows are
    # position-major so each position's batch block is a contiguous slice.
    h5 = jnp.dot(pooled[0:nbp], w5[0:c_in], preferred_element_type=jnp.float32)
    for p in range(1, n_pos):
        h5 = h5 + jnp.dot(pooled[p * nbp:(p + 1) * nbp],
                          w5[p * c_in:(p + 1) * c_in],
                          preferred_element_type=jnp.float32)
    h5 = jnp.maximum(h5 + s5_ref[...], 0.0)
    # linear1 on [conv5 features | orientation+action] via split weights
    z1 = (jnp.dot(h5.astype(w1f_ref.dtype), w1f_ref[...],
                  preferred_element_type=jnp.float32)
          + jnp.dot(oa_ref[...], w1oa_ref[...],
                    preferred_element_type=jnp.float32))
    y1 = jnp.maximum(z1 + s1_ref[...], 0.0)
    # linear2 + BN2
    q = jnp.dot(y1.astype(w2_ref.dtype), w2_ref[...],
                preferred_element_type=jnp.float32)
    q_ref[...] = q + s2_ref[...]


# ------------------------------ call wrappers ------------------------------- #
def _conv_call(kernel, patches, operands, *, min_m_blocks=1):
    """Fused conv + BN + ReLU + 2x2 maxpool (optionally + fused 1x1 conv).

    patches: (4, M, K) bf16 (shared across heads) or (2, 4, M, K) bf16 per head.
    operands: weight/shift arrays (leading head dim iff patches has one); the
              last weight's trailing dim is the output width.
    Returns (M, C) / (2, M, C) bf16 with rows ordered like the patch rows.
    """
    per_head = patches.ndim == 4
    m, k = patches.shape[-2], patches.shape[-1]
    c_out = operands[-2].shape[-1]
    tile = _pick_tile(m, min_blocks=min_m_blocks)
    mp = _round_up(m, tile)
    n_t = mp // tile
    if mp != m:
        pad_cfg = ((0, 0),) * (patches.ndim - 2) + ((0, mp - m), (0, 0))
        patches = jnp.pad(patches, pad_cfg)

    if per_head:
        # lay rows out slab-major per M-tile -> the kernel needs no reshape
        pr = (patches.reshape(2, 4, n_t, tile, k)
              .transpose(0, 2, 1, 3, 4).reshape(2, n_t * 4 * tile, k))
        grid = (2, n_t)
        x_spec = pl.BlockSpec((None, 4 * tile, k), lambda h, mm: (h, mm, 0))

        def _op_spec(a):
            return pl.BlockSpec((None,) + a.shape[1:],
                                lambda h, mm: (h,) + (0,) * (a.ndim - 1))

        out_spec = pl.BlockSpec((None, tile, c_out), lambda h, mm: (h, mm, 0))
        out_shape = jax.ShapeDtypeStruct((2, mp, c_out), _DT)
    else:
        pr = (patches.reshape(4, n_t, tile, k)
              .transpose(1, 0, 2, 3).reshape(n_t * 4 * tile, k))
        grid = (n_t,)
        x_spec = pl.BlockSpec((4 * tile, k), lambda mm: (mm, 0))

        def _op_spec(a):
            return pl.BlockSpec(a.shape, lambda mm: (0,) * a.ndim)

        out_spec = pl.BlockSpec((tile, c_out), lambda mm: (mm, 0))
        out_shape = jax.ShapeDtypeStruct((mp, c_out), _DT)

    out = pl.pallas_call(
        kernel,
        out_shape=out_shape,
        grid=grid,
        in_specs=[x_spec] + [_op_spec(a) for a in operands],
        out_specs=out_spec,
        compiler_params=_compiler_params(len(grid)),
    )(pr, *operands)
    return out[..., :m, :] if mp != m else out


def _tail_call(p4, oa, params):
    """conv4+pool3 + conv5 + linear1(+BN+ReLU) + linear2(+BN) in one kernel."""
    _, _, m4, k4 = p4.shape
    pr = p4.reshape(2, 4 * m4, k4)          # slab-major rows (single M block)
    nbp = oa.shape[0]
    w4, s4 = params["conv4"]
    w5, s5 = params["conv5"]
    w1f, w1oa, s1 = params["lin1"]
    w2, s2 = params["lin2"]

    def per_head(a):
        return pl.BlockSpec((None,) + a.shape[1:],
                            lambda h: (h,) + (0,) * (a.ndim - 1))

    def shared(a):
        return pl.BlockSpec(a.shape, lambda h: (0,) * a.ndim)

    return pl.pallas_call(
        _tail_kernel,
        out_shape=jax.ShapeDtypeStruct((2, nbp, 1), jnp.float32),
        grid=(2,),
        in_specs=[per_head(pr), shared(oa),
                  per_head(w4), per_head(s4), per_head(w5), per_head(s5),
                  per_head(w1f), per_head(w1oa), per_head(s1),
                  per_head(w2), per_head(s2)],
        out_specs=pl.BlockSpec((None, nbp, 1), lambda h: (h, 0, 0)),
        compiler_params=_compiler_params(1),
    )(pr, oa, w4, s4, w5, s5, w1f, w1oa, s1, w2, s2)


# --------------------------------- XLA glue --------------------------------- #
def _pooled_patches(x_nhwc, kh, kw, pad, *, pos_major=False, nb_pad=None):
    """im2col for a stride-1 conv whose output is immediately 2x2/2 max-pooled.

    Returns (4, M, kh*kw*C): slab 2*r1+r0 holds patch rows of conv-output
    pixels (2*i+r1, 2*j+r0), so an elementwise max over the slab axis IS the
    pooled conv output.  Rows are ordered (batch, i, j) by default, or
    (i, j, batch padded to nb_pad) when pos_major=True (used by the fused tail
    so conv5's per-position blocks are contiguous row slices).
    """
    nb, h, w, c = x_nhwc.shape
    oh, ow = h // 2, w // 2
    xp = jnp.pad(x_nhwc, ((0, 0), (pad, pad), (pad, pad), (0, 0)))
    slabs = []
    for r1 in range(2):
        for r0 in range(2):
            pats = []
            for di in range(kh):
                for dj in range(kw):
                    s1, s0 = r1 + di, r0 + dj
                    pats.append(xp[:, s1:s1 + 2 * oh - 1:2,
                                   s0:s0 + 2 * ow - 1:2, :])
            p = jnp.stack(pats, axis=3)                  # (NB, oh, ow, kh*kw, C)
            if pos_major:
                p = jnp.transpose(p, (1, 2, 0, 3, 4))    # (oh, ow, NB, kh*kw, C)
                if nb_pad is not None and nb_pad > nb:
                    p = jnp.pad(p, ((0, 0), (0, 0), (0, nb_pad - nb),
                                    (0, 0), (0, 0)))
                rows = oh * ow * p.shape[2]
            else:
                rows = nb * oh * ow
            slabs.append(p.reshape(rows, kh * kw * c))
    return jnp.stack(slabs, axis=0)                      # (4, M, kh*kw*C)


# --------------------------- parameter construction -------------------------- #
def _fold_conv(key, ic, oc, kh, kw, ic_pad=None, oc_pad=None):
    ic_pad = ic if ic_pad is None else ic_pad
    oc_pad = oc if oc_pad is None else oc_pad
    ks = jax.random.split(key, 6)
    w = 0.1 * jax.random.normal(ks[0], (oc, ic, kh, kw), jnp.float32)
    b = 0.1 * jax.random.normal(ks[1], (oc,), jnp.float32)
    gamma = 1.0 + 0.1 * jax.random.normal(ks[2], (oc,), jnp.float32)
    beta = 0.1 * jax.random.normal(ks[3], (oc,), jnp.float32)
    mean = 0.1 * jax.random.normal(ks[4], (oc,), jnp.float32)
    var = jnp.abs(jax.random.normal(ks[5], (oc,), jnp.float32)) + 0.5
    # BN(conv(x)) = (x @ (W*s)) + ((b - mean)*s + beta),  s = gamma/sqrt(var+eps)
    scale = gamma / jnp.sqrt(var + _EPS)
    shift = (b - mean) * scale + beta
    w_k = jnp.transpose(w, (2, 3, 1, 0)) * scale          # (KH,KW,IC,OC), scaled
    w_k = jnp.pad(w_k, ((0, 0), (0, 0), (0, ic_pad - ic), (0, oc_pad - oc)))
    w_mat = w_k.reshape(kh * kw * ic_pad, oc_pad).astype(_DT)
    # zero pad columns + zero pad shift => padded channels stay exactly 0
    shift = jnp.pad(shift, (0, oc_pad - oc)).reshape(1, oc_pad)
    return w_mat, shift


def _fold_linear(key, in_f, out_f):
    ks = jax.random.split(key, 6)
    w = 0.1 * jax.random.normal(ks[0], (out_f, in_f), jnp.float32)
    b = 0.1 * jax.random.normal(ks[1], (out_f,), jnp.float32)
    gamma = 1.0 + 0.1 * jax.random.normal(ks[2], (out_f,), jnp.float32)
    beta = 0.1 * jax.random.normal(ks[3], (out_f,), jnp.float32)
    mean = 0.1 * jax.random.normal(ks[4], (out_f,), jnp.float32)
    var = jnp.abs(jax.random.normal(ks[5], (out_f,), jnp.float32)) + 0.5
    scale = gamma / jnp.sqrt(var + _EPS)
    shift = ((b - mean) * scale + beta).reshape(1, out_f)
    w_mat = (w.T * scale).astype(_DT)                      # (in, out), scaled
    return w_mat, shift


def init_critic_params(key, image_size, action_dim, orientation_dim, out_channels):
    _, H, W = image_size
    assert H % 8 == 0 and W % 8 == 0 and H == W, \
        "Critic assumes square images with H, W divisible by 8"
    hk = H // 8
    keys = jax.random.split(key, 14)

    def head(kk):
        c1 = _fold_conv(kk[0], 3, 10, 3, 3, oc_pad=_CPAD)
        c2 = _fold_conv(kk[1], 10, 16, 3, 3, ic_pad=_CPAD)
        c3 = _fold_conv(kk[2], 16, 10, 1, 1, oc_pad=_CPAD)
        c4 = _fold_conv(kk[3], 10, 16, 3, 3, ic_pad=_CPAD)
        c5 = _fold_conv(kk[4], 16, out_channels, hk, hk)
        l1w, l1s = _fold_linear(kk[5], out_channels + orientation_dim + action_dim, 10)
        l2w, l2s = _fold_linear(kk[6], 10, 1)
        # split lin1 rows to match torch.cat([features, orientation, action], 1)
        return (c1, c2, c3, c4, c5,
                (l1w[:out_channels], l1w[out_channels:], l1s),
                (l2w, l2s))

    h0 = head(keys[:7])
    h1 = head(keys[7:])
    stack = lambda a, b: jnp.stack([a, b], axis=0)
    return {
        # conv1: the two heads' (27,16) weights merged along output channels
        "conv1": (jnp.concatenate([h0[0][0], h1[0][0]], axis=1),
                  jnp.concatenate([h0[0][1], h1[0][1]], axis=1)),
        "conv2": jax.tree_util.tree_map(stack, h0[1], h1[1]),
        "conv3": jax.tree_util.tree_map(stack, h0[2], h1[2]),
        "conv4": jax.tree_util.tree_map(stack, h0[3], h1[3]),
        "conv5": jax.tree_util.tree_map(stack, h0[4], h1[4]),
        "lin1": jax.tree_util.tree_map(stack, h0[5], h1[5]),
        "lin2": jax.tree_util.tree_map(stack, h0[6], h1[6]),
    }


# ---------------------------------- forward ---------------------------------- #
@jax.jit
def critic_forward(x_nchw, orientation, action, params):
    nb, _, H, W = x_nchw.shape
    x = jnp.transpose(x_nchw, (0, 2, 3, 1)).astype(_DT)          # NHWC, bf16

    # stage 1: conv1+BN+ReLU+pool1, both heads merged on output channels
    p1 = _pooled_patches(x, 3, 3, 1)                             # (4, M1, 27)
    h1 = _conv_call(_conv_pool_kernel, p1, params["conv1"],
                    min_m_blocks=2)                              # (M1, 32)

    # stage 2: conv2+BN+ReLU+pool2 fused with conv3(1x1)+BN+ReLU, per head
    h1 = h1.reshape(nb, H // 2, W // 2, 2 * _CPAD)
    x1 = jnp.stack([h1[..., :_CPAD], h1[..., _CPAD:]], axis=0)   # (2, nb, H/2, W/2, 16)
    p2 = jax.vmap(lambda a: _pooled_patches(a, 3, 3, 1))(x1)     # (2, 4, M2, 144)
    h2 = _conv_call(_conv_pool_1x1_kernel, p2,
                    params["conv2"] + params["conv3"])           # (2, M2, 16)

    # tail: conv4+BN+ReLU+pool3 + conv5 + linear1(+BN+ReLU) + linear2(+BN)
    x2 = h2.reshape(2, nb, H // 4, W // 4, _CPAD)
    nbp = _round_up(max(nb, 16), 16)                             # padded batch rows
    p4 = jax.vmap(lambda a: _pooled_patches(a, 3, 3, 1,
                                            pos_major=True, nb_pad=nbp))(x2)
    oa = jnp.concatenate([orientation, action], axis=1).astype(_DT)
    oa = jnp.pad(oa, ((0, nbp - nb), (0, 0)))
    q = _tail_call(p4, oa, params)                               # (2, nbp, 1) f32
    return q[0, :nb], q[1, :nb]


# --------------------------- pure-JAX reference (f32) ------------------------ #
def _ref_forward(x_nchw, orientation, action, params):
    x = jnp.transpose(x_nchw, (0, 2, 3, 1)).astype(_DT).astype(jnp.float32)
    oa = jnp.concatenate([orientation, action], 1).astype(_DT).astype(jnp.float32)

    def conv(xh, w_mat, shift, kh, kw, pad):
        icp = w_mat.shape[0] // (kh * kw)
        wf = w_mat.astype(jnp.float32).reshape(kh, kw, icp, w_mat.shape[-1])
        y = lax.conv_general_dilated(xh, wf, (1, 1), ((pad, pad), (pad, pad)),
                                     dimension_numbers=("NHWC", "HWIO", "NHWC"))
        return jnp.maximum(y + shift.reshape(1, 1, 1, -1), 0.0)

    def pool(xh):
        return lax.reduce_window(xh, -jnp.inf, lax.max,
                                 (1, 2, 2, 1), (1, 2, 2, 1), "VALID")

    w1, s1 = params["conv1"]
    qs = []
    for h in range(2):
        a = pool(conv(x, w1[:, h * _CPAD:(h + 1) * _CPAD],
                      s1[:, h * _CPAD:(h + 1) * _CPAD], 3, 3, 1))
        a = pool(conv(a, params["conv2"][0][h], params["conv2"][1][h], 3, 3, 1))
        a = conv(a, params["conv3"][0][h], params["conv3"][1][h], 1, 1, 0)
        a = pool(conv(a, params["conv4"][0][h], params["conv4"][1][h], 3, 3, 1))
        a = a.reshape(a.shape[0], -1)
        w5, s5 = params["conv5"]
        a = jnp.maximum(a @ w5[h].astype(jnp.float32) + s5[h], 0.0)
        w1f, w1oa, sl1 = params["lin1"]
        z = (a @ w1f[h].astype(jnp.float32)
             + oa @ w1oa[h].astype(jnp.float32) + sl1[h])
        z = jnp.maximum(z, 0.0)
        w2, sl2 = params["lin2"]
        qs.append(z @ w2[h].astype(jnp.float32) + sl2[h])
    return qs[0], qs[1]


if __name__ == "__main__":
    key = jax.random.PRNGKey(0)
    k_param, k_x, k_or, k_ac = jax.random.split(key, 4)

    image_size = (3, 16, 16)        # (C, H, W)
    action_dim = 2
    orientation_dim = 2
    critic_out_channels = 16
    batch = 2

    params = init_critic_params(
        k_param, image_size, action_dim, orientation_dim, critic_out_channels)

    x = jax.random.normal(k_x, (batch, 3, 16, 16), jnp.float32)            # NCHW
    orientation = jax.random.normal(k_or, (batch, orientation_dim), jnp.float32)
    action = jax.random.normal(k_ac, (batch, action_dim), jnp.float32)

    q1, q2 = critic_forward(x, orientation, action, params)
    jax.block_until_ready((q1, q2))
    assert q1.shape == (batch, 1) and q2.shape == (batch, 1)

    # cross-check against a pure-XLA reference (folded bf16 weights, f32 math)
    r1, r2 = _ref_forward(x, orientation, action, params)
    err = max(float(jnp.max(jnp.abs(q1 - r1))), float(jnp.max(jnp.abs(q2 - r2))))
    ref_mag = max(float(jnp.max(jnp.abs(r1))), float(jnp.max(jnp.abs(r2))))
    assert err <= 5e-2 + 5e-2 * ref_mag, f"mismatch vs pure-JAX reference: {err}"

    print("KERNEL_OK")
</pallas_src>

<mosaic_0001>
module attributes {stable_mosaic.version = 11 : i64} {
  func.func @_conv_pool_kernel(%arg0: i32, %arg1: memref<256x27xbf16, #tpu.memory_space<vmem>>, %arg2: memref<27x32xbf16, #tpu.memory_space<vmem>>, %arg3: memref<1x32xf32, #tpu.memory_space<vmem>>, %arg4: memref<64x32xbf16, #tpu.memory_space<vmem>>) attributes {dimension_semantics = [#tpu.dimension_semantics<parallel>], iteration_bounds = array<i64: 2>, scalar_prefetch = 0 : i64, scratch_operands = 0 : i64, tpu.core_type = #tpu.core_type<tc>, window_params = [{transform_indices = @transform_0, window_bounds = array<i64: 256, 27>}, {pipeline_mode = #tpu.pipeline_mode<synchronous>, transform_indices = @transform_1, window_bounds = array<i64: 27, 32>}, {pipeline_mode = #tpu.pipeline_mode<synchronous>, transform_indices = @transform_2, window_bounds = array<i64: 1, 32>}, {transform_indices = @transform_3, window_bounds = array<i64: 64, 32>}]} {
    %c0 = arith.constant 0 : index
    %c0_0 = arith.constant 0 : index
    %0 = vector.load %arg1[%c0, %c0_0] : memref<256x27xbf16, #tpu.memory_space<vmem>>, vector<256x27xbf16>
    %c0_1 = arith.constant 0 : index
    %c0_2 = arith.constant 0 : index
    %1 = vector.load %arg2[%c0_1, %c0_2] : memref<27x32xbf16, #tpu.memory_space<vmem>>, vector<27x32xbf16>
    %cst = arith.constant dense<0.000000e+00> : vector<256x32xf32>
    %2 = tpu.matmul %0, %1, %cst {dimension_numbers = #tpu.dot_dimension_numbers<[1], [0], [0], [1], [0, 0, 1, 1], [], []>} : vector<256x27xbf16>, vector<27x32xbf16>, vector<256x32xf32> -> vector<256x32xf32>
    %3 = vector.extract_strided_slice %2 {offsets = [0, 0], sizes = [64, 32], strides = [1, 1]} : vector<256x32xf32> to vector<64x32xf32>
    %4 = vector.extract_strided_slice %2 {offsets = [64, 0], sizes = [64, 32], strides = [1, 1]} : vector<256x32xf32> to vector<64x32xf32>
    %5 = arith.maximumf %3, %4 : vector<64x32xf32>
    %6 = vector.extract_strided_slice %2 {offsets = [128, 0], sizes = [64, 32], strides = [1, 1]} : vector<256x32xf32> to vector<64x32xf32>
    %7 = vector.extract_strided_slice %2 {offsets = [192, 0], sizes = [64, 32], strides = [1, 1]} : vector<256x32xf32> to vector<64x32xf32>
    %8 = arith.maximumf %6, %7 : vector<64x32xf32>
    %9 = arith.maximumf %5, %8 : vector<64x32xf32>
    %c0_3 = arith.constant 0 : index
    %c0_4 = arith.constant 0 : index
    %10 = vector.load %arg3[%c0_3, %c0_4] : memref<1x32xf32, #tpu.memory_space<vmem>>, vector<1x32xf32>
    %11 = vector.broadcast %10 : vector<1x32xf32> to vector<64x32xf32>
    %12 = arith.addf %9, %11 : vector<64x32xf32>
    %cst_5 = arith.constant 0.000000e+00 : f32
    %13 = vector.broadcast %cst_5 : f32 to vector<64x32xf32>
    %14 = arith.maximumf %12, %13 : vector<64x32xf32>
    %15 = arith.truncf %14 : vector<64x32xf32> to vector<64x32xbf16>
    %c0_6 = arith.constant 0 : index
    %c0_7 = arith.constant 0 : index
    %16 = vector.load %arg4[%c0_6, %c0_7] : memref<64x32xbf16, #tpu.memory_space<vmem>>, vector<64x32xbf16>
    tpu.vector_store %arg4[%c0_6, %c0_7], %15 {strides = array<i32>} : memref<64x32xbf16, #tpu.memory_space<vmem>>, vector<64x32xbf16>,
    return
  }
  func.func @transform_0(%arg0: i32) -> (i32, i32) {
    %c0_i32 = arith.constant 0 : i32
    %c0_i32_0 = arith.constant 0 : i32
    return %arg0, %c0_i32 : i32, i32
  }
  func.func @transform_1(%arg0: i32) -> (i32, i32) {
    %c0_i32 = arith.constant 0 : i32
    %c0_i32_0 = arith.constant 0 : i32
    %c0_i32_1 = arith.constant 0 : i32
    return %c0_i32, %c0_i32_0 : i32, i32
  }
  func.func @transform_2(%arg0: i32) -> (i32, i32) {
    %c0_i32 = arith.constant 0 : i32
    %c0_i32_0 = arith.constant 0 : i32
    %c0_i32_1 = arith.constant 0 : i32
    return %c0_i32, %c0_i32_0 : i32, i32
  }
  func.func @transform_3(%arg0: i32) -> (i32, i32) {
    %c0_i32 = arith.constant 0 : i32
    %c0_i32_0 = arith.constant 0 : i32
    return %arg0, %c0_i32 : i32, i32
  }
}

module attributes {stable_mosaic.version = 11 : i64} {
  func.func @_conv_pool_1x1_kernel(%arg0: i32, %arg1: i32, %arg2: memref<1x128x144xbf16, #tpu.memory_space<vmem>>, %arg3: memref<1x144x16xbf16, #tpu.memory_space<vmem>>, %arg4: memref<1x1x16xf32, #tpu.memory_space<vmem>>, %arg5: memref<1x16x16xbf16, #tpu.memory_space<vmem>>, %arg6: memref<1x1x16xf32, #tpu.memory_space<vmem>>, %arg7: memref<1x32x16xbf16, #tpu.memory_space<vmem>>) attributes {dimension_semantics = [#tpu.dimension_semantics<parallel>, #tpu.dimension_semantics<parallel>], iteration_bounds = array<i64: 2, 1>, scalar_prefetch = 0 : i64, scratch_operands = 0 : i64, tpu.core_type = #tpu.core_type<tc>, window_params = [{transform_indices = @transform_0, window_bounds = array<i64: 1, 128, 144>}, {transform_indices = @transform_1, window_bounds = array<i64: 1, 144, 16>}, {transform_indices = @transform_2, window_bounds = array<i64: 1, 1, 16>}, {transform_indices = @transform_3, window_bounds = array<i64: 1, 16, 16>}, {transform_indices = @transform_4, window_bounds = array<i64: 1, 1, 16>}, {transform_indices = @transform_5, window_bounds = array<i64: 1, 32, 16>}]} {
    %c0 = arith.constant 0 : index
    %c0_0 = arith.constant 0 : index
    %c0_1 = arith.constant 0 : index
    %0 = vector.load %arg2[%c0, %c0_0, %c0_1] : memref<1x128x144xbf16, #tpu.memory_space<vmem>>, vector<1x128x144xbf16>
    %1 = vector.shape_cast %0 : vector<1x128x144xbf16> to vector<128x144xbf16>
    %c0_2 = arith.constant 0 : index
    %c0_3 = arith.constant 0 : index
    %c0_4 = arith.constant 0 : index
    %2 = vector.load %arg3[%c0_2, %c0_3, %c0_4] : memref<1x144x16xbf16, #tpu.memory_space<vmem>>, vector<1x144x16xbf16>
    %3 = vector.shape_cast %2 : vector<1x144x16xbf16> to vector<144x16xbf16>
    %cst = arith.constant dense<0.000000e+00> : vector<128x16xf32>
    %4 = tpu.matmul %1, %3, %cst {dimension_numbers = #tpu.dot_dimension_numbers<[1], [0], [0], [1], [0, 0, 1, 1], [], []>} : vector<128x144xbf16>, vector<144x16xbf16>, vector<128x16xf32> -> vector<128x16xf32>
    %5 = vector.extract_strided_slice %4 {offsets = [0, 0], sizes = [32, 16], strides = [1, 1]} : vector<128x16xf32> to vector<32x16xf32>
    %6 = vector.extract_strided_slice %4 {offsets = [32, 0], sizes = [32, 16], strides = [1, 1]} : vector<128x16xf32> to vector<32x16xf32>
    %7 = arith.maximumf %5, %6 : vector<32x16xf32>
    %8 = vector.extract_strided_slice %4 {offsets = [64, 0], sizes = [32, 16], strides = [1, 1]} : vector<128x16xf32> to vector<32x16xf32>
    %9 = vector.extract_strided_slice %4 {offsets = [96, 0], sizes = [32, 16], strides = [1, 1]} : vector<128x16xf32> to vector<32x16xf32>
    %10 = arith.maximumf %8, %9 : vector<32x16xf32>
    %11 = arith.maximumf %7, %10 : vector<32x16xf32>
    %c0_5 = arith.constant 0 : index
    %c0_6 = arith.constant 0 : index
    %c0_7 = arith.constant 0 : index
    %12 = vector.load %arg4[%c0_5, %c0_6, %c0_7] : memref<1x1x16xf32, #tpu.memory_space<vmem>>, vector<1x1x16xf32>
    %13 = vector.shape_cast %12 : vector<1x1x16xf32> to vector<1x16xf32>
    %14 = vector.broadcast %13 : vector<1x16xf32> to vector<32x16xf32>
    %15 = arith.addf %11, %14 : vector<32x16xf32>
    %cst_8 = arith.constant 0.000000e+00 : f32
    %16 = vector.broadcast %cst_8 : f32 to vector<32x16xf32>
    %17 = arith.maximumf %15, %16 : vector<32x16xf32>
    %18 = arith.truncf %17 : vector<32x16xf32> to vector<32x16xbf16>
    %c0_9 = arith.constant 0 : index
    %c0_10 = arith.constant 0 : index
    %c0_11 = arith.constant 0 : index
    %19 = vector.load %arg5[%c0_9, %c0_10, %c0_11] : memref<1x16x16xbf16, #tpu.memory_space<vmem>>, vector<1x16x16xbf16>
    %20 = vector.shape_cast %19 : vector<1x16x16xbf16> to vector<16x16xbf16>
    %cst_12 = arith.constant dense<0.000000e+00> : vector<32x16xf32>
    %21 = tpu.matmul %18, %20, %cst_12 {dimension_numbers = #tpu.dot_dimension_numbers<[1], [0], [0], [1], [0, 0, 1, 1], [], []>} : vector<32x16xbf16>, vector<16x16xbf16>, vector<32x16xf32> -> vector<32x16xf32>
    %c0_13 = arith.constant 0 : index
    %c0_14 = arith.constant 0 : index
    %c0_15 = arith.constant 0 : index
    %22 = vector.load %arg6[%c0_13, %c0_14, %c0_15] : memref<1x1x16xf32, #tpu.memory_space<vmem>>, vector<1x1x16xf32>
    %23 = vector.shape_cast %22 : vector<1x1x16xf32> to vector<1x16xf32>
    %24 = vector.broadcast %23 : vector<1x16xf32> to vector<32x16xf32>
    %25 = arith.addf %21, %24 : vector<32x16xf32>
    %cst_16 = arith.constant 0.000000e+00 : f32
    %26 = vector.broadcast %cst_16 : f32 to vector<32x16xf32>
    %27 = arith.maximumf %25, %26 : vector<32x16xf32>
    %28 = arith.truncf %27 : vector<32x16xf32> to vector<32x16xbf16>
    %c0_17 = arith.constant 0 : index
    %c0_18 = arith.constant 0 : index
    %c0_19 = arith.constant 0 : index
    %29 = vector.load %arg7[%c0_17, %c0_18, %c0_19] : memref<1x32x16xbf16, #tpu.memory_space<vmem>>, vector<1x32x16xbf16>
    %30 = vector.shape_cast %29 : vector<1x32x16xbf16> to vector<32x16xbf16>
    %31 = vector.shape_cast %28 : vector<32x16xbf16> to vector<1x32x16xbf16>
    tpu.vector_store %arg7[%c0_17, %c0_18, %c0_19], %31 {strides = array<i32>} : memref<1x32x16xbf16, #tpu.memory_space<vmem>>, vector<1x32x16xbf16>,
    return
  }
  func.func @transform_0(%arg0: i32, %arg1: i32) -> (i32, i32, i32) {
    %c0_i32 = arith.constant 0 : i32
    %c0_i32_0 = arith.constant 0 : i32
    return %arg0, %arg1, %c0_i32 : i32, i32, i32
  }
  func.func @transform_1(%arg0: i32, %arg1: i32) -> (i32, i32, i32) {
    %c0_i32 = arith.constant 0 : i32
    %c0_i32_0 = arith.constant 0 : i32
    %c0_i32_1 = arith.constant 0 : i32
    return %arg0, %c0_i32, %c0_i32_0 : i32, i32, i32
  }
  func.func @transform_2(%arg0: i32, %arg1: i32) -> (i32, i32, i32) {
    %c0_i32 = arith.constant 0 : i32
    %c0_i32_0 = arith.constant 0 : i32
    %c0_i32_1 = arith.constant 0 : i32
    return %arg0, %c0_i32, %c0_i32_0 : i32, i32, i32
  }
  func.func @transform_3(%arg0: i32, %arg1: i32) -> (i32, i32, i32) {
    %c0_i32 = arith.constant 0 : i32
    %c0_i32_0 = arith.constant 0 : i32
    %c0_i32_1 = arith.constant 0 : i32
    return %arg0, %c0_i32, %c0_i32_0 : i32, i32, i32
  }
  func.func @transform_4(%arg0: i32, %arg1: i32) -> (i32, i32, i32) {
    %c0_i32 = arith.constant 0 : i32
    %c0_i32_0 = arith.constant 0 : i32
    %c0_i32_1 = arith.constant 0 : i32
    return %arg0, %c0_i32, %c0_i32_0 : i32, i32, i32
  }
  func.func @transform_5(%arg0: i32, %arg1: i32) -> (i32, i32, i32) {
    %c0_i32 = arith.constant 0 : i32
    %c0_i32_0 = arith.constant 0 : i32
    return %arg0, %arg1, %c0_i32 : i32, i32, i32
  }
}

module attributes {stable_mosaic.version = 11 : i64} {
  func.func @_tail_kernel(%arg0: i32, %arg1: memref<1x256x144xbf16, #tpu.memory_space<vmem>>, %arg2: memref<16x4xbf16, #tpu.memory_space<vmem>>, %arg3: memref<1x144x16xbf16, #tpu.memory_space<vmem>>, %arg4: memref<1x1x16xf32, #tpu.memory_space<vmem>>, %arg5: memref<1x64x16xbf16, #tpu.memory_space<vmem>>, %arg6: memref<1x1x16xf32, #tpu.memory_space<vmem>>, %arg7: memref<1x16x10xbf16, #tpu.memory_space<vmem>>, %arg8: memref<1x4x10xbf16, #tpu.memory_space<vmem>>, %arg9: memref<1x1x10xf32, #tpu.memory_space<vmem>>, %arg10: memref<1x10x1xbf16, #tpu.memory_space<vmem>>, %arg11: memref<1x1x1xf32, #tpu.memory_space<vmem>>, %arg12: memref<1x16x1xf32, #tpu.memory_space<vmem>>) attributes {dimension_semantics = [#tpu.dimension_semantics<parallel>], iteration_bounds = array<i64: 2>, scalar_prefetch = 0 : i64, scratch_operands = 0 : i64, tpu.core_type = #tpu.core_type<tc>, window_params = [{transform_indices = @transform_0, window_bounds = array<i64: 1, 256, 144>}, {pipeline_mode = #tpu.pipeline_mode<synchronous>, transform_indices = @transform_1, window_bounds = array<i64: 16, 4>}, {transform_indices = @transform_2, window_bounds = array<i64: 1, 144, 16>}, {transform_indices = @transform_3, window_bounds = array<i64: 1, 1, 16>}, {transform_indices = @transform_4, window_bounds = array<i64: 1, 64, 16>}, {transform_indices = @transform_5, window_bounds = array<i64: 1, 1, 16>}, {transform_indices = @transform_6, window_bounds = array<i64: 1, 16, 10>}, {transform_indices = @transform_7, window_bounds = array<i64: 1, 4, 10>}, {transform_indices = @transform_8, window_bounds = array<i64: 1, 1, 10>}, {transform_indices = @transform_9, window_bounds = array<i64: 1, 10, 1>}, {transform_indices = @transform_10, window_bounds = array<i64: 1, 1, 1>}, {transform_indices = @transform_11, window_bounds = array<i64: 1, 16, 1>}]} {
    %c0 = arith.constant 0 : index
    %c0_0 = arith.constant 0 : index
    %c0_1 = arith.constant 0 : index
    %0 = vector.load %arg1[%c0, %c0_0, %c0_1] : memref<1x256x144xbf16, #tpu.memory_space<vmem>>, vector<1x256x144xbf16>
    %1 = vector.shape_cast %0 : vector<1x256x144xbf16> to vector<256x144xbf16>
    %c0_2 = arith.constant 0 : index
    %c0_3 = arith.constant 0 : index
    %c0_4 = arith.constant 0 : index
    %2 = vector.load %arg3[%c0_2, %c0_3, %c0_4] : memref<1x144x16xbf16, #tpu.memory_space<vmem>>, vector<1x144x16xbf16>
    %3 = vector.shape_cast %2 : vector<1x144x16xbf16> to vector<144x16xbf16>
    %cst = arith.constant dense<0.000000e+00> : vector<256x16xf32>
    %4 = tpu.matmul %1, %3, %cst {dimension_numbers = #tpu.dot_dimension_numbers<[1], [0], [0], [1], [0, 0, 1, 1], [], []>} : vector<256x144xbf16>, vector<144x16xbf16>, vector<256x16xf32> -> vector<256x16xf32>
    %5 = vector.extract_strided_slice %4 {offsets = [0, 0], sizes = [64, 16], strides = [1, 1]} : vector<256x16xf32> to vector<64x16xf32>
    %6 = vector.extract_strided_slice %4 {offsets = [64, 0], sizes = [64, 16], strides = [1, 1]} : vector<256x16xf32> to vector<64x16xf32>
    %7 = arith.maximumf %5, %6 : vector<64x16xf32>
    %8 = vector.extract_strided_slice %4 {offsets = [128, 0], sizes = [64, 16], strides = [1, 1]} : vector<256x16xf32> to vector<64x16xf32>
    %9 = vector.extract_strided_slice %4 {offsets = [192, 0], sizes = [64, 16], strides = [1, 1]} : vector<256x16xf32> to vector<64x16xf32>
    %10 = arith.maximumf %8, %9 : vector<64x16xf32>
    %11 = arith.maximumf %7, %10 : vector<64x16xf32>
    %c0_5 = arith.constant 0 : index
    %c0_6 = arith.constant 0 : index
    %c0_7 = arith.constant 0 : index
    %12 = vector.load %arg4[%c0_5, %c0_6, %c0_7] : memref<1x1x16xf32, #tpu.memory_space<vmem>>, vector<1x1x16xf32>
    %13 = vector.shape_cast %12 : vector<1x1x16xf32> to vector<1x16xf32>
    %14 = vector.broadcast %13 : vector<1x16xf32> to vector<64x16xf32>
    %15 = arith.addf %11, %14 : vector<64x16xf32>
    %cst_8 = arith.constant 0.000000e+00 : f32
    %16 = vector.broadcast %cst_8 : f32 to vector<64x16xf32>
    %17 = arith.maximumf %15, %16 : vector<64x16xf32>
    %18 = arith.truncf %17 : vector<64x16xf32> to vector<64x16xbf16>
    %c0_9 = arith.constant 0 : index
    %c0_10 = arith.constant 0 : index
    %c0_11 = arith.constant 0 : index
    %19 = vector.load %arg5[%c0_9, %c0_10, %c0_11] : memref<1x64x16xbf16, #tpu.memory_space<vmem>>, vector<1x64x16xbf16>
    %20 = vector.shape_cast %19 : vector<1x64x16xbf16> to vector<64x16xbf16>
    %21 = vector.extract_strided_slice %18 {offsets = [0, 0], sizes = [16, 16], strides = [1, 1]} : vector<64x16xbf16> to vector<16x16xbf16>
    %22 = vector.extract_strided_slice %20 {offsets = [0, 0], sizes = [16, 16], strides = [1, 1]} : vector<64x16xbf16> to vector<16x16xbf16>
    %cst_12 = arith.constant dense<0.000000e+00> : vector<16x16xf32>
    %23 = tpu.matmul %21, %22, %cst_12 {dimension_numbers = #tpu.dot_dimension_numbers<[1], [0], [0], [1], [0, 0, 1, 1], [], []>} : vector<16x16xbf16>, vector<16x16xbf16>, vector<16x16xf32> -> vector<16x16xf32>
    %24 = vector.extract_strided_slice %18 {offsets = [16, 0], sizes = [16, 16], strides = [1, 1]} : vector<64x16xbf16> to vector<16x16xbf16>
    %25 = vector.extract_strided_slice %20 {offsets = [16, 0], sizes = [16, 16], strides = [1, 1]} : vector<64x16xbf16> to vector<16x16xbf16>
    %cst_13 = arith.constant dense<0.000000e+00> : vector<16x16xf32>
    %26 = tpu.matmul %24, %25, %cst_13 {dimension_numbers = #tpu.dot_dimension_numbers<[1], [0], [0], [1], [0, 0, 1, 1], [], []>} : vector<16x16xbf16>, vector<16x16xbf16>, vector<16x16xf32> -> vector<16x16xf32>
    %27 = arith.addf %23, %26 : vector<16x16xf32>
    %28 = vector.extract_strided_slice %18 {offsets = [32, 0], sizes = [16, 16], strides = [1, 1]} : vector<64x16xbf16> to vector<16x16xbf16>
    %29 = vector.extract_strided_slice %20 {offsets = [32, 0], sizes = [16, 16], strides = [1, 1]} : vector<64x16xbf16> to vector<16x16xbf16>
    %cst_14 = arith.constant dense<0.000000e+00> : vector<16x16xf32>
    %30 = tpu.matmul %28, %29, %cst_14 {dimension_numbers = #tpu.dot_dimension_numbers<[1], [0], [0], [1], [0, 0, 1, 1], [], []>} : vector<16x16xbf16>, vector<16x16xbf16>, vector<16x16xf32> -> vector<16x16xf32>
    %31 = arith.addf %27, %30 : vector<16x16xf32>
    %32 = vector.extract_strided_slice %18 {offsets = [48, 0], sizes = [16, 16], strides = [1, 1]} : vector<64x16xbf16> to vector<16x16xbf16>
    %33 = vector.extract_strided_slice %20 {offsets = [48, 0], sizes = [16, 16], strides = [1, 1]} : vector<64x16xbf16> to vector<16x16xbf16>
    %cst_15 = arith.constant dense<0.000000e+00> : vector<16x16xf32>
    %34 = tpu.matmul %32, %33, %cst_15 {dimension_numbers = #tpu.dot_dimension_numbers<[1], [0], [0], [1], [0, 0, 1, 1], [], []>} : vector<16x16xbf16>, vector<16x16xbf16>, vector<16x16xf32> -> vector<16x16xf32>
    %35 = arith.addf %31, %34 : vector<16x16xf32>
    %c0_16 = arith.constant 0 : index
    %c0_17 = arith.constant 0 : index
    %c0_18 = arith.constant 0 : index
    %36 = vector.load %arg6[%c0_16, %c0_17, %c0_18] : memref<1x1x16xf32, #tpu.memory_space<vmem>>, vector<1x1x16xf32>
    %37 = vector.shape_cast %36 : vector<1x1x16xf32> to vector<1x16xf32>
    %38 = vector.broadcast %37 : vector<1x16xf32> to vector<16x16xf32>
    %39 = arith.addf %35, %38 : vector<16x16xf32>
    %cst_19 = arith.constant 0.000000e+00 : f32
    %40 = vector.broadcast %cst_19 : f32 to vector<16x16xf32>
    %41 = arith.maximumf %39, %40 : vector<16x16xf32>
    %42 = arith.truncf %41 : vector<16x16xf32> to vector<16x16xbf16>
    %c0_20 = arith.constant 0 : index
    %c0_21 = arith.constant 0 : index
    %c0_22 = arith.constant 0 : index
    %43 = vector.load %arg7[%c0_20, %c0_21, %c0_22] : memref<1x16x10xbf16, #tpu.memory_space<vmem>>, vector<1x16x10xbf16>
    %44 = vector.shape_cast %43 : vector<1x16x10xbf16> to vector<16x10xbf16>
    %cst_23 = arith.constant dense<0.000000e+00> : vector<16x10xf32>
    %45 = tpu.matmul %42, %44, %cst_23 {dimension_numbers = #tpu.dot_dimension_numbers<[1], [0], [0], [1], [0, 0, 1, 1], [], []>} : vector<16x16xbf16>, vector<16x10xbf16>, vector<16x10xf32> -> vector<16x10xf32>
    %c0_24 = arith.constant 0 : index
    %c0_25 = arith.constant 0 : index
    %46 = vector.load %arg2[%c0_24, %c0_25] : memref<16x4xbf16, #tpu.memory_space<vmem>>, vector<16x4xbf16>
    %c0_26 = arith.constant 0 : index
    %c0_27 = arith.constant 0 : index
    %c0_28 = arith.constant 0 : index
    %47 = vector.load %arg8[%c0_26, %c0_27, %c0_28] : memref<1x4x10xbf16, #tpu.memory_space<vmem>>, vector<1x4x10xbf16>
    %48 = vector.shape_cast %47 : vector<1x4x10xbf16> to vector<4x10xbf16>
    %cst_29 = arith.constant dense<0.000000e+00> : vector<16x10xf32>
    %49 = tpu.matmul %46, %48, %cst_29 {dimension_numbers = #tpu.dot_dimension_numbers<[1], [0], [0], [1], [0, 0, 1, 1], [], []>} : vector<16x4xbf16>, vector<4x10xbf16>, vector<16x10xf32> -> vector<16x10xf32>
    %50 = arith.addf %45, %49 : vector<16x10xf32>
    %c0_30 = arith.constant 0 : index
    %c0_31 = arith.constant 0 : index
    %c0_32 = arith.constant 0 : index
    %51 = vector.load %arg9[%c0_30, %c0_31, %c0_32] : memref<1x1x10xf32, #tpu.memory_space<vmem>>, vector<1x1x10xf32>
    %52 = vector.shape_cast %51 : vector<1x1x10xf32> to vector<1x10xf32>
    %53 = vector.broadcast %52 : vector<1x10xf32> to vector<16x10xf32>
    %54 = arith.addf %50, %53 : vector<16x10xf32>
    %cst_33 = arith.constant 0.000000e+00 : f32
    %55 = vector.broadcast %cst_33 : f32 to vector<16x10xf32>
    %56 = arith.maximumf %54, %55 : vector<16x10xf32>
    %57 = arith.truncf %56 : vector<16x10xf32> to vector<16x10xbf16>
    %c0_34 = arith.constant 0 : index
    %c0_35 = arith.constant 0 : index
    %c0_36 = arith.constant 0 : index
    %58 = vector.load %arg10[%c0_34, %c0_35, %c0_36] : memref<1x10x1xbf16, #tpu.memory_space<vmem>>, vector<1x10x1xbf16>
    %59 = vector.shape_cast %58 : vector<1x10x1xbf16> to vector<10x1xbf16>
    %cst_37 = arith.constant dense<0.000000e+00> : vector<16x1xf32>
    %60 = tpu.matmul %57, %59, %cst_37 {dimension_numbers = #tpu.dot_dimension_numbers<[1], [0], [0], [1], [0, 0, 1, 1], [], []>} : vector<16x10xbf16>, vector<10x1xbf16>, vector<16x1xf32> -> vector<16x1xf32>
    %c0_38 = arith.constant 0 : index
    %c0_39 = arith.constant 0 : index
    %c0_40 = arith.constant 0 : index
    %61 = vector.load %arg11[%c0_38, %c0_39, %c0_40] : memref<1x1x1xf32, #tpu.memory_space<vmem>>, vector<1x1x1xf32>
    %62 = vector.shape_cast %61 : vector<1x1x1xf32> to vector<1x1xf32>
    %63 = vector.broadcast %62 : vector<1x1xf32> to vector<16x1xf32>
    %64 = arith.addf %60, %63 : vector<16x1xf32>
    %c0_41 = arith.constant 0 : index
    %c0_42 = arith.constant 0 : index
    %c0_43 = arith.constant 0 : index
    %65 = vector.load %arg12[%c0_41, %c0_42, %c0_43] : memref<1x16x1xf32, #tpu.memory_space<vmem>>, vector<1x16x1xf32>
    %66 = vector.shape_cast %65 : vector<1x16x1xf32> to vector<16x1xf32>
    %67 = vector.shape_cast %64 : vector<16x1xf32> to vector<1x16x1xf32>
    tpu.vector_store %arg12[%c0_41, %c0_42, %c0_43], %67 {strides = array<i32>} : memref<1x16x1xf32, #tpu.memory_space<vmem>>, vector<1x16x1xf32>,
    return
  }
  func.func @transform_0(%arg0: i32) -> (i32, i32, i32) {
    %c0_i32 = arith.constant 0 : i32
    %c0_i32_0 = arith.constant 0 : i32
    %c0_i32_1 = arith.constant 0 : i32
    return %arg0, %c0_i32, %c0_i32_0 : i32, i32, i32
  }
  func.func @transform_1(%arg0: i32) -> (i32, i32) {
    %c0_i32 = arith.constant 0 : i32
    %c0_i32_0 = arith.constant 0 : i32
    %c0_i32_1 = arith.constant 0 : i32
    return %c0_i32, %c0_i32_0 : i32, i32
  }
  func.func @transform_2(%arg0: i32) -> (i32, i32, i32) {
    %c0_i32 = arith.constant 0 : i32
    %c0_i32_0 = arith.constant 0 : i32
    %c0_i32_1 = arith.constant 0 : i32
    return %arg0, %c0_i32, %c0_i32_0 : i32, i32, i32
  }
  func.func @transform_3(%arg0: i32) -> (i32, i32, i32) {
    %c0_i32 = arith.constant 0 : i32
    %c0_i32_0 = arith.constant 0 : i32
    %c0_i32_1 = arith.constant 0 : i32
    return %arg0, %c0_i32, %c0_i32_0 : i32, i32, i32
  }
  func.func @transform_4(%arg0: i32) -> (i32, i32, i32) {
    %c0_i32 = arith.constant 0 : i32
    %c0_i32_0 = arith.constant 0 : i32
    %c0_i32_1 = arith.constant 0 : i32
    return %arg0, %c0_i32, %c0_i32_0 : i32, i32, i32
  }
  func.func @transform_5(%arg0: i32) -> (i32, i32, i32) {
    %c0_i32 = arith.constant 0 : i32
    %c0_i32_0 = arith.constant 0 : i32
    %c0_i32_1 = arith.constant 0 : i32
    return %arg0, %c0_i32, %c0_i32_0 : i32, i32, i32
  }
  func.func @transform_6(%arg0: i32) -> (i32, i32, i32) {
    %c0_i32 = arith.constant 0 : i32
    %c0_i32_0 = arith.constant 0 : i32
    %c0_i32_1 = arith.constant 0 : i32
    return %arg0, %c0_i32, %c0_i32_0 : i32, i32, i32
  }
  func.func @transform_7(%arg0: i32) -> (i32, i32, i32) {
    %c0_i32 = arith.constant 0 : i32
    %c0_i32_0 = arith.constant 0 : i32
    %c0_i32_1 = arith.constant 0 : i32
    return %arg0, %c0_i32, %c0_i32_0 : i32, i32, i32
  }
  func.func @transform_8(%arg0: i32) -> (i32, i32, i32) {
    %c0_i32 = arith.constant 0 : i32
    %c0_i32_0 = arith.constant 0 : i32
    %c0_i32_1 = arith.constant 0 : i32
    return %arg0, %c0_i32, %c0_i32_0 : i32, i32, i32
  }
  func.func @transform_9(%arg0: i32) -> (i32, i32, i32) {
    %c0_i32 = arith.constant 0 : i32
    %c0_i32_0 = arith.constant 0 : i32
    %c0_i32_1 = arith.constant 0 : i32
    return %arg0, %c0_i32, %c0_i32_0 : i32, i32, i32
  }
  func.func @transform_10(%arg0: i32) -> (i32, i32, i32) {
    %c0_i32 = arith.constant 0 : i32
    %c0_i32_0 = arith.constant 0 : i32
    %c0_i32_1 = arith.constant 0 : i32
    return %arg0, %c0_i32, %c0_i32_0 : i32, i32, i32
  }
  func.func @transform_11(%arg0: i32) -> (i32, i32, i32) {
    %c0_i32 = arith.constant 0 : i32
    %c0_i32_0 = arith.constant 0 : i32
    %c0_i32_1 = arith.constant 0 : i32
    return %arg0, %c0_i32, %c0_i32_0 : i32, i32, i32
  }
}

</mosaic_0001>

<llo_original>
// kernel: critic_forward.3
$region0: #{critic_forward.3}
  #allocation0 [shape = 'u32[]', space=smem, size = 0x4, offset = 0x4, fixed_abs, tag = 'smem constant byte address 0x4 - core index']
  #allocation1 [shape = 'u32[144,128]{1,0:T(1,128)}', space=vmem, size = 0x12000, scoped, tag = 'internal scratch']
  %s0 = inlined_call_operand.vmem [shape: bf16[512,27], index: 0, kind: input, shape index: {}]
  %s1 = inlined_call_operand.vmem [shape: bf16[27,32], index: 1, kind: input, shape index: {}]
  %s2 = inlined_call_operand.vmem [shape: f32[1,32], index: 2, kind: input, shape index: {}]
  %s3 = inlined_call_operand.vmem [shape: bf16[128,32], index: 3, kind: output, shape index: {}]
  %s4 = sld [smem:[#allocation0]]
  $region45: #{critic_forward.3} parent=0
    _
  %s6 = ssub.s32 1, %s4
  %s7 = scalar_select 0, %s6, %s4
  loop: start=0, step=1, limit=4
  $region2: #{critic_forward.3} parent=0 // loop_pre_header
    _
  $region3: #{critic_forward.3} parent=0 // loop_header
    %s9 = sphi 0, %s13
    %p10 = scmp.ge.s32.totalorder %s9, 4
    %s19 = sphi 0, %s21
    %s22 = sphi 0, %s19
    %s23 = sphi 0, %s22
    %s39 = sphi 0, %s23
    %s43 = sphi 0, %s43
    %s45 = sphi 0, %s43
    %s46 = sphi 0, %s45
    %s60 = sphi 0, %s46
    %s64 = sphi 0, %s64
    %s66 = sphi 0, %s64
    %s67 = sphi 0, %s66
    %s81 = sphi 0, %s67
    %s87 = sphi 0, %s89
    %s90 = sphi 0, %s87
    %s91 = sphi 0, %s90
    %s107 = sphi 0, %s91
  $region4: #{critic_forward.3} parent=0 // loop_header_branch
    %12 = sbr.rel (%p10) target = $region8
  $region5: #{critic_forward.3} parent=0 // loop_body
    %s14 = ssub.s32 %s9, 1
    %s15 = ssub.s32 %s9, 2
    %s16 = sadd.s32 %s9, 1
    %s17 = ssub.s32 %s9, %s16
    %p18 = scmp.eq.s32.totalorder %s17, 0
    %s20 = sadd.s32 %s19, 1
    %s21 = scalar_select %p18, %s19, %s20
    %p24 = pneg %p18
    %p25 = scmp.eq.s32.totalorder %s9, 1
    %p26 = por %p24, %p25
    %p27 = scmp.ne.s32.totalorder %s19, %s22
    %p28 = scmp.eq.s32.totalorder %s9, 0
    %p29 = por %p27, %p28
    %p30 = scmp.ne.s32.totalorder %s19, %s22
    %p31 = scmp.eq.s32.totalorder %s14, 1
    %p32 = por %p30, %p31
    %p33 = scmp.ne.s32.totalorder %s22, %s23
    %p34 = scmp.eq.s32.totalorder %s14, 0
    %p35 = por %p33, %p34
    %p36 = scmp.ne.s32.totalorder %s22, %s23
    %p37 = scmp.eq.s32.totalorder %s15, 1
    %p38 = por %p36, %p37
    %p40 = scmp.ne.s32.totalorder %s23, %s39
    %p41 = scmp.eq.s32.totalorder %s15, 0
    %p42 = por %p40, %p41
    %s44 = sadd.s32 %s43, 1
    %p47 = scmp.eq.s32.totalorder %s9, 1
    %p48 = scmp.ne.s32.totalorder %s43, %s45
    %p49 = scmp.eq.s32.totalorder %s9, 0
    %p50 = por %p48, %p49
    %p51 = scmp.ne.s32.totalorder %s43, %s45
    %p52 = scmp.eq.s32.totalorder %s14, 1
    %p53 = por %p51, %p52
    %p54 = scmp.ne.s32.totalorder %s45, %s46
    %p55 = scmp.eq.s32.totalorder %s14, 0
    %p56 = por %p54, %p55
    %p57 = scmp.ne.s32.totalorder %s45, %s46
    %p58 = scmp.eq.s32.totalorder %s15, 1
    %p59 = por %p57, %p58
    %p61 = scmp.ne.s32.totalorder %s46, %s60
    %p62 = scmp.eq.s32.totalorder %s15, 0
    %p63 = por %p61, %p62
    %s65 = sadd.s32 %s64, 1
    %p68 = scmp.eq.s32.totalorder %s9, 1
    %p69 = scmp.ne.s32.totalorder %s64, %s66
    %p70 = scmp.eq.s32.totalorder %s9, 0
    %p71 = por %p69, %p70
    %p72 = scmp.ne.s32.totalorder %s64, %s66
    %p73 = scmp.eq.s32.totalorder %s14, 1
    %p74 = por %p72, %p73
    %p75 = scmp.ne.s32.totalorder %s66, %s67
    %p76 = scmp.eq.s32.totalorder %s14, 0
    %p77 = por %p75, %p76
    %p78 = scmp.ne.s32.totalorder %s66, %s67
    %p79 = scmp.eq.s32.totalorder %s15, 1
    %p80 = por %p78, %p79
    %p82 = scmp.ne.s32.totalorder %s67, %s81
    %p83 = scmp.eq.s32.totalorder %s15, 0
    %p84 = por %p82, %p83
    %s85 = ssub.s32 %s9, %s16
    %p86 = scmp.eq.s32.totalorder %s85, 0
    %s88 = sadd.s32 %s87, 1
    %s89 = scalar_select %p86, %s87, %s88
    %p92 = pneg %p86
    %p93 = scmp.eq.s32.totalorder %s9, 1
    %p94 = por %p92, %p93
    %p95 = scmp.ne.s32.totalorder %s87, %s90
    %p96 = scmp.eq.s32.totalorder %s9, 0
    %p97 = por %p95, %p96
    %p98 = scmp.ne.s32.totalorder %s87, %s90
    %p99 = scmp.eq.s32.totalorder %s14, 1
    %p100 = por %p98, %p99
    %p101 = scmp.ne.s32.totalorder %s90, %s91
    %p102 = scmp.eq.s32.totalorder %s14, 0
    %p103 = por %p101, %p102
    %p104 = scmp.ne.s32.totalorder %s90, %s91
    %p105 = scmp.eq.s32.totalorder %s15, 1
    %p106 = por %p104, %p105
    %p108 = scmp.ne.s32.totalorder %s91, %s107
    %p109 = scmp.eq.s32.totalorder %s15, 0
    %p110 = por %p108, %p109
    %p111 = scmp.le.s32.totalorder 1, %s9
    %p112 = scmp.lt.s32.totalorder %s9, 3
    %p113 = pnand %p111, %p112
    %p114 = pneg %p113
    // Predicated region
    $region9: #{critic_forward.3} parent=5 // pred_check
      _
    $region10: #{critic_forward.3} parent=5 // pred_check_branch
      %116 = sbr.rel (%p113) target = $region12
    $region11: #{critic_forward.3} parent=5 // pred_region
      %s117 = ssub.s32 %s9, 1
      // Predicated region
      $region13: #{critic_forward.3} parent=11 // pred_check
        %p118 = pneg %p56
      $region14: #{critic_forward.3} parent=11 // pred_check_branch
        %120 = sbr.rel (%p118) target = $region16
      $region15: #{critic_forward.3} parent=11 // pred_region
        _
      $region16: #{critic_forward.3} parent=11 // pred_fallthru
        _
      // Predicated region
      $region17: #{critic_forward.3} parent=11 // pred_check
        %p121 = pneg %p77
      $region18: #{critic_forward.3} parent=11 // pred_check_branch
        %123 = sbr.rel (%p121) target = $region20
      $region19: #{critic_forward.3} parent=11 // pred_region
        _
      $region20: #{critic_forward.3} parent=11 // pred_fallthru
        _
    $region12: #{critic_forward.3} parent=5 // pred_fallthru
      _
    %p124 = scmp.lt.s32.totalorder %s9, 2
    // Predicated region
    $region21: #{critic_forward.3} parent=5 // pred_check
      %p125 = pneg %p124
    $region22: #{critic_forward.3} parent=5 // pred_check_branch
      %127 = sbr.rel (%p125) target = $region24
    $region23: #{critic_forward.3} parent=5 // pred_region
      // Predicated region
      $region25: #{critic_forward.3} parent=23 // pred_check
        %p128 = pneg %p29
      $region26: #{critic_forward.3} parent=23 // pred_check_branch
        %130 = sbr.rel (%p128) target = $region28
      $region27: #{critic_forward.3} parent=23 // pred_region
        %s131 = smul.u32 32, %s9
        %p132 = scmp.lt.s32.totalorder %s131, 63
        %s133 = scalar_select %p132, %s131, 63
        %s134 = smul.addr %s133, 4
        %s135 = scalar_lea.vmem %s0, %s134
        %s136 = smul.u32 32, %s9
      $region28: #{critic_forward.3} parent=23 // pred_fallthru
        _
    $region24: #{critic_forward.3} parent=5 // pred_fallthru
      _
    %p137 = scmp.le.s32.totalorder 1, %s9
    %p138 = scmp.lt.s32.totalorder %s9, 3
    %p139 = pnand %p137, %p138
    %p140 = pneg %p139
    // Predicated region
    $region29: #{critic_forward.3} parent=5 // pred_check
      _
    $region30: #{critic_forward.3} parent=5 // pred_check_branch
      %142 = sbr.rel (%p139) target = $region32
    $region31: #{critic_forward.3} parent=5 // pred_region
      %s143 = ssub.s32 %s9, 1
      %s144 = smul.u32 32, %s14
      %p145 = scmp.lt.s32.totalorder %s144, 63
      %s146 = scalar_select %p145, %s144, 63
      %s147 = smul.addr %s146, 4
      %s148 = scalar_lea.vmem %s0, %s147
      %p149 = pneg %p35
      %p150 = pneg %p32
      %p151 = pneg %p56
      %p152 = pneg %p53
      %p153 = pneg %p77
      %p154 = pneg %p74
      %p155 = pneg %p103
      %p156 = pneg %p100
      %s157 = smul.u32 8, %s14
      %p158 = scmp.lt.s32.totalorder %s157, 15
      %s159 = scalar_select %p158, %s157, 15
      %s160 = smul.addr %s159, 4
      %s161 = scalar_lea.vmem %s3, %s160
      %s162 = smul.u32 32, %s14
      %p163 = scmp.lt.s32.totalorder %s162, 63
      %s164 = scalar_select %p163, %s162, 63
      %s165 = smul.addr %s164, 4
      %s166 = scalar_lea.vmem %s0, %s165
      %s167 = smul.u32 32, %s14
      %s168 = smul.u32 8, %s14
      %p169 = scmp.lt.s32.totalorder %s168, 15
      %s170 = scalar_select %p169, %s168, 15
      %s171 = smul.addr %s170, 4
      %s172 = scalar_lea.vmem %s3, %s171
      %s173 = smul.u32 8, %s14
      %v175 = vld [vmem:[%s166] sm:$0xf]
      %v176 = vld [vmem:[%s166 + $0x4] sm:$0xf]
      %v177 = vld [vmem:[%s166 + $0x8] sm:$0xf]
      %v178 = vld [vmem:[%s166 + $0xc] sm:$0xf]
      %v179 = vld [vmem:[%s166 + $0x10] sm:$0xf]
      %v180 = vld [vmem:[%s166 + $0x14] sm:$0xf]
      %v181 = vld [vmem:[%s166 + $0x18] sm:$0xf]
      %v182 = vld [vmem:[%s166 + $0x1c] sm:$0xf]
      %v183 = vld [vmem:[%s166 + $0x20] sm:$0xf]
      %v184 = vld [vmem:[%s166 + $0x24] sm:$0xf]
      %v185 = vld [vmem:[%s166 + $0x28] sm:$0xf]
      %v186 = vld [vmem:[%s166 + $0x2c] sm:$0xf]
      %v187 = vld [vmem:[%s166 + $0x30] sm:$0xf]
      %v188 = vld [vmem:[%s166 + $0x34] sm:$0xf]
      %v189 = vld [vmem:[%s166 + $0x38] sm:$0xf]
      %v190 = vld [vmem:[%s166 + $0x3c] sm:$0xf]
      %v191 = vld [vmem:[%s166 + $0x40] sm:$0xf]
      %v192 = vld [vmem:[%s166 + $0x44] sm:$0xf]
      %v193 = vld [vmem:[%s166 + $0x48] sm:$0xf]
      %v194 = vld [vmem:[%s166 + $0x4c] sm:$0xf]
      %v195 = vld [vmem:[%s166 + $0x50] sm:$0xf]
      %v196 = vld [vmem:[%s166 + $0x54] sm:$0xf]
      %v197 = vld [vmem:[%s166 + $0x58] sm:$0xf]
      %v198 = vld [vmem:[%s166 + $0x5c] sm:$0xf]
      %v199 = vld [vmem:[%s166 + $0x60] sm:$0xf]
      %v200 = vld [vmem:[%s166 + $0x64] sm:$0xf]
      %v201 = vld [vmem:[%s166 + $0x68] sm:$0xf]
      %v202 = vld [vmem:[%s166 + $0x6c] sm:$0xf]
      %v203 = vld [vmem:[%s166 + $0x70] sm:$0xf]
      %v204 = vld [vmem:[%s166 + $0x74] sm:$0xf]
      %v205 = vld [vmem:[%s166 + $0x78] sm:$0xf]
      %v206 = vld [vmem:[%s166 + $0x7c] sm:$0xf]
      %v207 = vld [vmem:[%s1] sm:$0xf]
      %v208 = vld [vmem:[%s1 + $0x4] sm:$0xf]
      %v209 = vld [vmem:[%s1 + $0x8] sm:$0xf]
      %v210 = vld [vmem:[%s1 + $0xc] sm:$0x3]
      %v243 = vunpack.c.l.b16 %v175
      %v244 = vunpack.c.l.b16 %v176
      %v245 = vunpack.c.l.b16 %v177
      %v246 = vunpack.c.l.b16 %v178
      %v247 = vunpack.c.l.b16 %v179
      %v248 = vunpack.c.l.b16 %v180
      %v249 = vunpack.c.l.b16 %v181
      %v250 = vunpack.c.l.b16 %v182
      %v251 = vunpack.c.l.b16 %v183
      %v252 = vunpack.c.l.b16 %v184
      %v253 = vunpack.c.l.b16 %v185
      %v254 = vunpack.c.l.b16 %v186
      %v255 = vunpack.c.l.b16 %v187
      %v256 = vunpack.c.l.b16 %v188
      %v257 = vunpack.c.l.b16 %v189
      %v258 = vunpack.c.l.b16 %v190
      %v259 = vunpack.c.l.b16 %v191
      %v260 = vunpack.c.l.b16 %v192
      %v261 = vunpack.c.l.b16 %v193
      %v262 = vunpack.c.l.b16 %v194
      %v263 = vunpack.c.l.b16 %v195
      %v264 = vunpack.c.l.b16 %v196
      %v265 = vunpack.c.l.b16 %v197
      %v266 = vunpack.c.l.b16 %v198
      %v267 = vunpack.c.l.b16 %v199
      %v268 = vunpack.c.l.b16 %v200
      %v269 = vunpack.c.l.b16 %v201
      %v270 = vunpack.c.l.b16 %v202
      %v271 = vunpack.c.l.b16 %v203
      %v272 = vunpack.c.l.b16 %v204
      %v273 = vunpack.c.l.b16 %v205
      %v274 = vunpack.c.l.b16 %v206
      %v275 = vpack.c.b16 %v244, %v243
      %v276 = vpack.c.b16 %v246, %v245
      %v277 = vpack.c.b16 %v248, %v247
      %v278 = vpack.c.b16 %v250, %v249
      %v279 = vpack.c.b16 %v252, %v251
      %v280 = vpack.c.b16 %v254, %v253
      %v281 = vpack.c.b16 %v256, %v255
      %v282 = vpack.c.b16 %v258, %v257
      %v283 = vpack.c.b16 %v260, %v259
      %v284 = vpack.c.b16 %v262, %v261
      %v285 = vpack.c.b16 %v264, %v263
      %v286 = vpack.c.b16 %v266, %v265
      %v287 = vpack.c.b16 %v268, %v267
      %v288 = vpack.c.b16 %v270, %v269
      %v289 = vpack.c.b16 %v272, %v271
      %v290 = vpack.c.b16 %v274, %v273
      %v295 = vunpack.c.l.b16 %v207
      %v296 = vunpack.c.l.b16 %v208
      %v297 = vunpack.c.l.b16 %v209
      %v298 = vunpack.c.l.b16 %v210
      %v299 = vpack.c.b16 %v296, %v295
      %v300 = vpack.c.b16 %v298, %v297
      %vm302 = vcmask 220160
      %v304 = vsel %vm302, %v275, 0
      %v307 = vsel %vm302, %v276, 0
      %v310 = vsel %vm302, %v277, 0
      %v313 = vsel %vm302, %v278, 0
      %v316 = vsel %vm302, %v279, 0
      %v319 = vsel %vm302, %v280, 0
      %v322 = vsel %vm302, %v281, 0
      %v325 = vsel %vm302, %v282, 0
      %v328 = vsel %vm302, %v283, 0
      %v331 = vsel %vm302, %v284, 0
      %v334 = vsel %vm302, %v285, 0
      %v337 = vsel %vm302, %v286, 0
      %v340 = vsel %vm302, %v287, 0
      %v343 = vsel %vm302, %v288, 0
      %v346 = vsel %vm302, %v289, 0
      %v349 = vsel %vm302, %v290, 0
      %vm351 = vcmask 1044480
      %vm352 = vcmask 1045504
      %v353 = vsel %vm351, 4294967295, 65535
      %v354 = vsel %vm352, %v353, 0
      %v356 = vand.u32 %v300, %v354
      %358 = vmatprep.subr.bf16.mxu0 0
      %359 = vmatpush1.bf16.msra.mxu0 %v299
      %360 = vmatprep.subr.bf16.mxu0 0
      %361 = vmatpush1.bf16.msra.mxu0 %v356
      %362 = vmatprep.subr.bf16.mxu0 0
      %363 = vmatpush1.bf16.msra.mxu0 0
      %364 = vmatprep.subr.bf16.mxu0 0
      %365 = vmatpush1.bf16.msra.mxu0 0
      %366 = vmatprep.subr.bf16.mxu0 0
      %367 = vmatpush1.bf16.msra.mxu0 0
      %368 = vmatprep.subr.bf16.mxu0 0
      %369 = vmatpush1.bf16.msra.mxu0 0
      %370 = vmatprep.subr.bf16.mxu0 0
      %371 = vmatpush1.bf16.msra.mxu0 0
      %372 = vmatprep.subr.bf16.mxu0 0
      %373 = vmatpush1.bf16.msra.mxu0 0
      %374 = vmatprep.subr.bf16.mxu0 0
      %375 = vmatpush1.bf16.msra.mxu0 0
      %376 = vmatprep.subr.bf16.mxu0 0
      %377 = vmatpush1.bf16.msra.mxu0 0
      %378 = vmatprep.subr.bf16.mxu0 0
      %379 = vmatpush1.bf16.msra.mxu0 0
      %380 = vmatprep.subr.bf16.mxu0 0
      %381 = vmatpush1.bf16.msra.mxu0 0
      %382 = vmatprep.subr.bf16.mxu0 0
      %383 = vmatpush1.bf16.msra.mxu0 0
      %384 = vmatprep.subr.bf16.mxu0 0
      %385 = vmatpush1.bf16.msra.mxu0 0
      %386 = vmatprep.subr.bf16.mxu0 0
      %387 = vmatpush1.bf16.msra.mxu0 0
      %388 = vmatprep.subr.bf16.mxu0 0
      %389 = vmatpush1.bf16.msra.mxu0 0
      %390 = vmatprep.mubr.bf16.mxu0 0
      %391 = vmatmul.mubr.bf16.gmra.mrb[0].mxu0 %v304
      %v392 = vpop.f32.mrb[0].mxu0
      %v393 = vadd.f32 0.0, %v392
      %v394 = vpop.f32.mrb[0].mxu0
      %v395 = vpop.f32.mrb[0].mxu0
      %v396 = vadd.f32 0.0, %v395
      %v397 = vpop.f32.mrb[0].mxu0
      %398 = vmatprep.mubr.bf16.mxu0 0
      %399 = vmatmul.mubr.bf16.gmra.mrb[0].mxu0 %v307
      %v400 = vpop.f32.mrb[0].mxu0
      %v401 = vadd.f32 0.0, %v400
      %v402 = vpop.f32.mrb[0].mxu0
      %v403 = vpop.f32.mrb[0].mxu0
      %v404 = vadd.f32 0.0, %v403
      %v405 = vpop.f32.mrb[0].mxu0
      %406 = vmatprep.mubr.bf16.mxu0 0
      %407 = vmatmul.mubr.bf16.gmra.mrb[0].mxu0 %v310
      %v408 = vpop.f32.mrb[0].mxu0
      %v409 = vadd.f32 0.0, %v408
      %v410 = vpop.f32.mrb[0].mxu0
      %v411 = vpop.f32.mrb[0].mxu0
      %v412 = vadd.f32 0.0, %v411
      %v413 = vpop.f32.mrb[0].mxu0
      %414 = vmatprep.mubr.bf16.mxu0 0
      %415 = vmatmul.mubr.bf16.gmra.mrb[0].mxu0 %v313
      %v416 = vpop.f32.mrb[0].mxu0
      %v417 = vadd.f32 0.0, %v416
      %v418 = vpop.f32.mrb[0].mxu0
      %v419 = vpop.f32.mrb[0].mxu0
      %v420 = vadd.f32 0.0, %v419
      %v421 = vpop.f32.mrb[0].mxu0
      %422 = vmatprep.mubr.bf16.mxu0 0
      %423 = vmatmul.mubr.bf16.gmra.mrb[0].mxu0 %v316
      %v424 = vpop.f32.mrb[0].mxu0
      %v425 = vadd.f32 0.0, %v424
      %v426 = vpop.f32.mrb[0].mxu0
      %v427 = vpop.f32.mrb[0].mxu0
      %v428 = vadd.f32 0.0, %v427
      %v429 = vpop.f32.mrb[0].mxu0
      %430 = vmatprep.mubr.bf16.mxu0 0
      %431 = vmatmul.mubr.bf16.gmra.mrb[0].mxu0 %v319
      %v432 = vpop.f32.mrb[0].mxu0
      %v433 = vadd.f32 0.0, %v432
      %v434 = vpop.f32.mrb[0].mxu0
      %v435 = vpop.f32.mrb[0].mxu0
      %v436 = vadd.f32 0.0, %v435
      %v437 = vpop.f32.mrb[0].mxu0
      %438 = vmatprep.mubr.bf16.mxu0 0
      %439 = vmatmul.mubr.bf16.gmra.mrb[0].mxu0 %v322
      %v440 = vpop.f32.mrb[0].mxu0
      %v441 = vadd.f32 0.0, %v440
      %v442 = vpop.f32.mrb[0].mxu0
      %v443 = vpop.f32.mrb[0].mxu0
      %v444 = vadd.f32 0.0, %v443
      %v445 = vpop.f32.mrb[0].mxu0
      %446 = vmatprep.mubr.bf16.mxu0 0
      %447 = vmatmul.mubr.bf16.gmra.mrb[0].mxu0 %v325
      %v448 = vpop.f32.mrb[0].mxu0
      %v449 = vadd.f32 0.0, %v448
      %v450 = vpop.f32.mrb[0].mxu0
      %v451 = vpop.f32.mrb[0].mxu0
      %v452 = vadd.f32 0.0, %v451
      %v453 = vpop.f32.mrb[0].mxu0
      %454 = vmatprep.mubr.bf16.mxu0 0
      %455 = vmatmul.mubr.bf16.gmra.mrb[0].mxu0 %v328
      %v456 = vpop.f32.mrb[0].mxu0
      %v457 = vadd.f32 0.0, %v456
      %v458 = vpop.f32.mrb[0].mxu0
      %v459 = vpop.f32.mrb[0].mxu0
      %v460 = vadd.f32 0.0, %v459
      %v461 = vpop.f32.mrb[0].mxu0
      %462 = vmatprep.mubr.bf16.mxu0 0
      %463 = vmatmul.mubr.bf16.gmra.mrb[0].mxu0 %v331
      %v464 = vpop.f32.mrb[0].mxu0
      %v465 = vadd.f32 0.0, %v464
      %v466 = vpop.f32.mrb[0].mxu0
      %v467 = vpop.f32.mrb[0].mxu0
      %v468 = vadd.f32 0.0, %v467
      %v469 = vpop.f32.mrb[0].mxu0
      %470 = vmatprep.mubr.bf16.mxu0 0
      %471 = vmatmul.mubr.bf16.gmra.mrb[0].mxu0 %v334
      %v472 = vpop.f32.mrb[0].mxu0
      %v473 = vadd.f32 0.0, %v472
      %v474 = vpop.f32.mrb[0].mxu0
      %v475 = vpop.f32.mrb[0].mxu0
      %v476 = vadd.f32 0.0, %v475
      %v477 = vpop.f32.mrb[0].mxu0
      %478 = vmatprep.mubr.bf16.mxu0 0
      %479 = vmatmul.mubr.bf16.gmra.mrb[0].mxu0 %v337
      %v480 = vpop.f32.mrb[0].mxu0
      %v481 = vadd.f32 0.0, %v480
      %v482 = vpop.f32.mrb[0].mxu0
      %v483 = vpop.f32.mrb[0].mxu0
      %v484 = vadd.f32 0.0, %v483
      %v485 = vpop.f32.mrb[0].mxu0
      %486 = vmatprep.mubr.bf16.mxu0 0
      %487 = vmatmul.mubr.bf16.gmra.mrb[0].mxu0 %v340
      %v488 = vpop.f32.mrb[0].mxu0
      %v489 = vadd.f32 0.0, %v488
      %v490 = vpop.f32.mrb[0].mxu0
      %v491 = vpop.f32.mrb[0].mxu0
      %v492 = vadd.f32 0.0, %v491
      %v493 = vpop.f32.mrb[0].mxu0
      %494 = vmatprep.mubr.bf16.mxu0 0
      %495 = vmatmul.mubr.bf16.gmra.mrb[0].mxu0 %v343
      %v496 = vpop.f32.mrb[0].mxu0
      %v497 = vadd.f32 0.0, %v496
      %v498 = vpop.f32.mrb[0].mxu0
      %v499 = vpop.f32.mrb[0].mxu0
      %v500 = vadd.f32 0.0, %v499
      %v501 = vpop.f32.mrb[0].mxu0
      %502 = vmatprep.mubr.bf16.mxu0 0
      %503 = vmatmul.mubr.bf16.gmra.mrb[0].mxu0 %v346
      %v504 = vpop.f32.mrb[0].mxu0
      %v505 = vadd.f32 0.0, %v504
      %v506 = vpop.f32.mrb[0].mxu0
      %v507 = vpop.f32.mrb[0].mxu0
      %v508 = vadd.f32 0.0, %v507
      %v509 = vpop.f32.mrb[0].mxu0
      %510 = vmatprep.mubr.bf16.mxu0 0
      %511 = vmatmul.mubr.bf16.gmra.mrb[0].mxu0 %v349
      %v512 = vpop.f32.mrb[0].mxu0
      %v513 = vadd.f32 0.0, %v512
      %v514 = vpop.f32.mrb[0].mxu0
      %v515 = vpop.f32.mrb[0].mxu0
      %v516 = vadd.f32 0.0, %v515
      %v517 = vpop.f32.mrb[0].mxu0
      %518 = vdwg.mxu0
      %v519 = vmax.f32 %v393, %v425
      %v520 = vmax.f32 %v396, %v428
      %v521 = vmax.f32 %v401, %v433
      %v522 = vmax.f32 %v404, %v436
      %v523 = vmax.f32 %v409, %v441
      %v524 = vmax.f32 %v412, %v444
      %v525 = vmax.f32 %v417, %v449
      %v526 = vmax.f32 %v420, %v452
      %v527 = vmax.f32 %v457, %v489
      %v528 = vmax.f32 %v460, %v492
      %v529 = vmax.f32 %v465, %v497
      %v530 = vmax.f32 %v468, %v500
      %v531 = vmax.f32 %v473, %v505
      %v532 = vmax.f32 %v476, %v508
      %v533 = vmax.f32 %v481, %v513
      %v534 = vmax.f32 %v484, %v516
      %v535 = vmax.f32 %v519, %v527
      %v536 = vmax.f32 %v520, %v528
      %v537 = vmax.f32 %v521, %v529
      %v538 = vmax.f32 %v522, %v530
      %v539 = vmax.f32 %v523, %v531
      %v540 = vmax.f32 %v524, %v532
      %v541 = vmax.f32 %v525, %v533
      %v542 = vmax.f32 %v526, %v534
      %v543 = vld [vmem:[%s2] sm:$0x1]
      %v545 = vlaneseq
      %v546 = vshrl.u32 %v545, 7
      %v547 = vsub.s32 0, %v546
      %v548 = vrot.slane %v543, %v547
      %v550 = vadd.f32 %v535, %v548
      %v551 = vadd.f32 %v536, %v548
      %v552 = vadd.f32 %v537, %v548
      %v553 = vadd.f32 %v538, %v548
      %v554 = vadd.f32 %v539, %v548
      %v555 = vadd.f32 %v540, %v548
      %v556 = vadd.f32 %v541, %v548
      %v557 = vadd.f32 %v542, %v548
      %v558 = vmax.f32 %v550, 0.0
      %v559 = vmax.f32 %v551, 0.0
      %v560 = vmax.f32 %v552, 0.0
      %v561 = vmax.f32 %v553, 0.0
      %v562 = vmax.f32 %v554, 0.0
      %v563 = vmax.f32 %v555, 0.0
      %v564 = vmax.f32 %v556, 0.0
      %v565 = vmax.f32 %v557, 0.0
      %v566 = vpack.c.bf16 %v559, %v558
      %v567 = vpack.c.bf16 %v561, %v560
      %v568 = vpack.c.bf16 %v563, %v562
      %v569 = vpack.c.bf16 %v565, %v564
      %v574 = vunpack.c.l.b16 %v566
      %v575 = vunpack.c.h.b16 %v566
      %v576 = vunpack.c.l.b16 %v567
      %v577 = vunpack.c.h.b16 %v567
      %v578 = vunpack.c.l.b16 %v568
      %v579 = vunpack.c.h.b16 %v568
      %v580 = vunpack.c.l.b16 %v569
      %v581 = vunpack.c.h.b16 %v569
      %v582 = vpack.c.b16 %v574, %v574
      %v583 = vpack.c.b16 %v575, %v575
      %v584 = vpack.c.b16 %v576, %v576
      %v585 = vpack.c.b16 %v577, %v577
      %v586 = vpack.c.b16 %v578, %v578
      %v587 = vpack.c.b16 %v579, %v579
      %v588 = vpack.c.b16 %v580, %v580
      %v589 = vpack.c.b16 %v581, %v581
      %vm598 = vcmask 257024
      %599 = vst.msk [vmem:[%s172] sm:$0xf] %vm598, %v582
      %600 = vst.msk [vmem:[%s172 + $0x4] sm:$0xf] %vm598, %v583
      %601 = vst.msk [vmem:[%s172 + $0x8] sm:$0xf] %vm598, %v584
      %602 = vst.msk [vmem:[%s172 + $0xc] sm:$0xf] %vm598, %v585
      %603 = vst.msk [vmem:[%s172 + $0x10] sm:$0xf] %vm598, %v586
      %604 = vst.msk [vmem:[%s172 + $0x14] sm:$0xf] %vm598, %v587
      %605 = vst.msk [vmem:[%s172 + $0x18] sm:$0xf] %vm598, %v588
      %606 = vst.msk [vmem:[%s172 + $0x1c] sm:$0xf] %vm598, %v589
      %s607 = smul.u32 8, %s14
      %p608 = scmp.lt.s32.totalorder %s607, 15
      %s609 = scalar_select %p608, %s607, 15
      %s610 = smul.addr %s609, 4
      %s611 = scalar_lea.vmem %s3, %s610
      // Predicated region
      $region33: #{critic_forward.3} parent=31 // pred_check
        %p612 = pneg %p100
      $region34: #{critic_forward.3} parent=31 // pred_check_branch
        %614 = sbr.rel (%p612) target = $region36
      $region35: #{critic_forward.3} parent=31 // pred_region
        %s615 = smul.u32 8, %s14
      $region36: #{critic_forward.3} parent=31 // pred_fallthru
        _
    $region32: #{critic_forward.3} parent=5 // pred_fallthru
      _
    %p616 = scmp.le.s32.totalorder 2, %s9
    // Predicated region
    $region37: #{critic_forward.3} parent=5 // pred_check
      %p617 = pneg %p616
    $region38: #{critic_forward.3} parent=5 // pred_check_branch
      %619 = sbr.rel (%p617) target = $region40
    $region39: #{critic_forward.3} parent=5 // pred_region
      %s620 = ssub.s32 %s9, 2
      // Predicated region
      $region41: #{critic_forward.3} parent=39 // pred_check
        %p621 = pneg %p106
      $region42: #{critic_forward.3} parent=39 // pred_check_branch
        %623 = sbr.rel (%p621) target = $region44
      $region43: #{critic_forward.3} parent=39 // pred_region
        %s624 = smul.u32 8, %s15
        %p625 = scmp.lt.s32.totalorder %s624, 15
        %s626 = scalar_select %p625, %s624, 15
        %s627 = smul.addr %s626, 4
        %s628 = scalar_lea.vmem %s3, %s627
      $region44: #{critic_forward.3} parent=39 // pred_fallthru
        _
    $region40: #{critic_forward.3} parent=5 // pred_fallthru
      _
  $region6: #{critic_forward.3} parent=0 // loop_footer
    %s13 = sadd.s32 1, %s9
  $region7: #{critic_forward.3} parent=0 // loop_footer_branch
    %8 = sbr.rel target = $region3
  $region8: #{critic_forward.3} parent=0 // loop_exit
    _

// kernel: critic_forward.4
$region0: #{critic_forward.4}
  #allocation0 [shape = 'u32[]', space=smem, size = 0x4, offset = 0x4, fixed_abs, tag = 'smem constant byte address 0x4 - core index']
  #allocation1 [shape = 'u32[144,128]{1,0:T(1,128)}', space=vmem, size = 0x12000, scoped, tag = 'internal scratch']
  %s0 = inlined_call_operand.vmem [shape: bf16[2,128,144], index: 0, kind: input, shape index: {}]
  %s1 = inlined_call_operand.vmem [shape: bf16[2,144,16], index: 1, kind: input, shape index: {}]
  %s2 = inlined_call_operand.vmem [shape: f32[2,1,16], index: 2, kind: input, shape index: {}]
  %s3 = inlined_call_operand.vmem [shape: bf16[2,16,16], index: 3, kind: input, shape index: {}]
  %s4 = inlined_call_operand.vmem [shape: f32[2,1,16], index: 4, kind: input, shape index: {}]
  %s5 = inlined_call_operand.vmem [shape: bf16[2,32,16], index: 5, kind: output, shape index: {}]
  %s6 = sld [smem:[#allocation0]]
  $region53: #{critic_forward.4} parent=0
    _
  %s8 = ssub.s32 1, %s6
  %s9 = scalar_select 0, %s8, %s6
  loop: start=0, step=1, limit=4
  $region2: #{critic_forward.4} parent=0 // loop_pre_header
    _
  $region3: #{critic_forward.4} parent=0 // loop_header
    %s11 = sphi 0, %s15
    %p12 = scmp.ge.s32.totalorder %s11, 4
    %s18 = sphi 0, %s30
    %s19 = sphi 0, %s26
    %s20 = sphi 0, %s18
    %s21 = sphi 0, %s19
    %s22 = sphi 0, %s20
    %s23 = sphi 0, %s21
    %s35 = sphi 0, %s37
    %s38 = sphi 0, %s35
    %s39 = sphi 0, %s38
    %s55 = sphi 0, %s39
    %s61 = sphi 0, %s63
    %s64 = sphi 0, %s61
    %s65 = sphi 0, %s64
    %s81 = sphi 0, %s65
    %s87 = sphi 0, %s89
    %s90 = sphi 0, %s87
    %s91 = sphi 0, %s90
    %s107 = sphi 0, %s91
    %s113 = sphi 0, %s115
    %s116 = sphi 0, %s113
    %s117 = sphi 0, %s116
    %s133 = sphi 0, %s117
    %s139 = sphi 0, %s141
    %s142 = sphi 0, %s139
    %s143 = sphi 0, %s142
    %s159 = sphi 0, %s143
    %s167 = sphi 0, %s169
    %s170 = sphi 0, %s167
    %s171 = sphi 0, %s170
    %s187 = sphi 0, %s171
  $region4: #{critic_forward.4} parent=0 // loop_header_branch
    %14 = sbr.rel (%p12) target = $region8
  $region5: #{critic_forward.4} parent=0 // loop_body
    %s16 = ssub.s32 %s11, 1
    %s17 = ssub.s32 %s11, 2
    %s24 = sadd.s32 1, %s19
    %p25 = scmp.ge.s32.totalorder %s24, 1
    %s26 = scalar_select %p25, 0, %s24
    %s27 = sadd.s32 1, %s18
    %s28 = scalar_select %p25, %s27, %s18
    %p29 = scmp.ge.s32.totalorder %s28, 2
    %s30 = scalar_select %p29, 0, %s28
    %s31 = ssub.s32 %s18, %s30
    %s32 = ssub.s32 %s19, %s26
    %s33 = sor.u32 %s31, %s32
    %p34 = scmp.eq.s32.totalorder %s33, 0
    %s36 = sadd.s32 %s35, 1
    %s37 = scalar_select %p34, %s35, %s36
    %p40 = pneg %p34
    %p41 = scmp.eq.s32.totalorder %s11, 1
    %p42 = por %p40, %p41
    %p43 = scmp.ne.s32.totalorder %s35, %s38
    %p44 = scmp.eq.s32.totalorder %s11, 0
    %p45 = por %p43, %p44
    %p46 = scmp.ne.s32.totalorder %s35, %s38
    %p47 = scmp.eq.s32.totalorder %s16, 1
    %p48 = por %p46, %p47
    %p49 = scmp.ne.s32.totalorder %s38, %s39
    %p50 = scmp.eq.s32.totalorder %s16, 0
    %p51 = por %p49, %p50
    %p52 = scmp.ne.s32.totalorder %s38, %s39
    %p53 = scmp.eq.s32.totalorder %s17, 1
    %p54 = por %p52, %p53
    %p56 = scmp.ne.s32.totalorder %s39, %s55
    %p57 = scmp.eq.s32.totalorder %s17, 0
    %p58 = por %p56, %p57
    %s59 = ssub.s32 %s18, %s30
    %p60 = scmp.eq.s32.totalorder %s59, 0
    %s62 = sadd.s32 %s61, 1
    %s63 = scalar_select %p60, %s61, %s62
    %p66 = pneg %p60
    %p67 = scmp.eq.s32.totalorder %s11, 1
    %p68 = por %p66, %p67
    %p69 = scmp.ne.s32.totalorder %s61, %s64
    %p70 = scmp.eq.s32.totalorder %s11, 0
    %p71 = por %p69, %p70
    %p72 = scmp.ne.s32.totalorder %s61, %s64
    %p73 = scmp.eq.s32.totalorder %s16, 1
    %p74 = por %p72, %p73
    %p75 = scmp.ne.s32.totalorder %s64, %s65
    %p76 = scmp.eq.s32.totalorder %s16, 0
    %p77 = por %p75, %p76
    %p78 = scmp.ne.s32.totalorder %s64, %s65
    %p79 = scmp.eq.s32.totalorder %s17, 1
    %p80 = por %p78, %p79
    %p82 = scmp.ne.s32.totalorder %s65, %s81
    %p83 = scmp.eq.s32.totalorder %s17, 0
    %p84 = por %p82, %p83
    %s85 = ssub.s32 %s18, %s30
    %p86 = scmp.eq.s32.totalorder %s85, 0
    %s88 = sadd.s32 %s87, 1
    %s89 = scalar_select %p86, %s87, %s88
    %p92 = pneg %p86
    %p93 = scmp.eq.s32.totalorder %s11, 1
    %p94 = por %p92, %p93
    %p95 = scmp.ne.s32.totalorder %s87, %s90
    %p96 = scmp.eq.s32.totalorder %s11, 0
    %p97 = por %p95, %p96
    %p98 = scmp.ne.s32.totalorder %s87, %s90
    %p99 = scmp.eq.s32.totalorder %s16, 1
    %p100 = por %p98, %p99
    %p101 = scmp.ne.s32.totalorder %s90, %s91
    %p102 = scmp.eq.s32.totalorder %s16, 0
    %p103 = por %p101, %p102
    %p104 = scmp.ne.s32.totalorder %s90, %s91
    %p105 = scmp.eq.s32.totalorder %s17, 1
    %p106 = por %p104, %p105
    %p108 = scmp.ne.s32.totalorder %s91, %s107
    %p109 = scmp.eq.s32.totalorder %s17, 0
    %p110 = por %p108, %p109
    %s111 = ssub.s32 %s18, %s30
    %p112 = scmp.eq.s32.totalorder %s111, 0
    %s114 = sadd.s32 %s113, 1
    %s115 = scalar_select %p112, %s113, %s114
    %p118 = pneg %p112
    %p119 = scmp.eq.s32.totalorder %s11, 1
    %p120 = por %p118, %p119
    %p121 = scmp.ne.s32.totalorder %s113, %s116
    %p122 = scmp.eq.s32.totalorder %s11, 0
    %p123 = por %p121, %p122
    %p124 = scmp.ne.s32.totalorder %s113, %s116
    %p125 = scmp.eq.s32.totalorder %s16, 1
    %p126 = por %p124, %p125
    %p127 = scmp.ne.s32.totalorder %s116, %s117
    %p128 = scmp.eq.s32.totalorder %s16, 0
    %p129 = por %p127, %p128
    %p130 = scmp.ne.s32.totalorder %s116, %s117
    %p131 = scmp.eq.s32.totalorder %s17, 1
    %p132 = por %p130, %p131
    %p134 = scmp.ne.s32.totalorder %s117, %s133
    %p135 = scmp.eq.s32.totalorder %s17, 0
    %p136 = por %p134, %p135
    %s137 = ssub.s32 %s18, %s30
    %p138 = scmp.eq.s32.totalorder %s137, 0
    %s140 = sadd.s32 %s139, 1
    %s141 = scalar_select %p138, %s139, %s140
    %p144 = pneg %p138
    %p145 = scmp.eq.s32.totalorder %s11, 1
    %p146 = por %p144, %p145
    %p147 = scmp.ne.s32.totalorder %s139, %s142
    %p148 = scmp.eq.s32.totalorder %s11, 0
    %p149 = por %p147, %p148
    %p150 = scmp.ne.s32.totalorder %s139, %s142
    %p151 = scmp.eq.s32.totalorder %s16, 1
    %p152 = por %p150, %p151
    %p153 = scmp.ne.s32.totalorder %s142, %s143
    %p154 = scmp.eq.s32.totalorder %s16, 0
    %p155 = por %p153, %p154
    %p156 = scmp.ne.s32.totalorder %s142, %s143
    %p157 = scmp.eq.s32.totalorder %s17, 1
    %p158 = por %p156, %p157
    %p160 = scmp.ne.s32.totalorder %s143, %s159
    %p161 = scmp.eq.s32.totalorder %s17, 0
    %p162 = por %p160, %p161
    %s163 = ssub.s32 %s18, %s30
    %s164 = ssub.s32 %s19, %s26
    %s165 = sor.u32 %s163, %s164
    %p166 = scmp.eq.s32.totalorder %s165, 0
    %s168 = sadd.s32 %s167, 1
    %s169 = scalar_select %p166, %s167, %s168
    %p172 = pneg %p166
    %p173 = scmp.eq.s32.totalorder %s11, 1
    %p174 = por %p172, %p173
    %p175 = scmp.ne.s32.totalorder %s167, %s170
    %p176 = scmp.eq.s32.totalorder %s11, 0
    %p177 = por %p175, %p176
    %p178 = scmp.ne.s32.totalorder %s167, %s170
    %p179 = scmp.eq.s32.totalorder %s16, 1
    %p180 = por %p178, %p179
    %p181 = scmp.ne.s32.totalorder %s170, %s171
    %p182 = scmp.eq.s32.totalorder %s16, 0
    %p183 = por %p181, %p182
    %p184 = scmp.ne.s32.totalorder %s170, %s171
    %p185 = scmp.eq.s32.totalorder %s17, 1
    %p186 = por %p184, %p185
    %p188 = scmp.ne.s32.totalorder %s171, %s187
    %p189 = scmp.eq.s32.totalorder %s17, 0
    %p190 = por %p188, %p189
    %p191 = scmp.le.s32.totalorder 1, %s11
    %p192 = scmp.lt.s32.totalorder %s11, 3
    %p193 = pnand %p191, %p192
    %p194 = pneg %p193
    // Predicated region
    $region9: #{critic_forward.4} parent=5 // pred_check
      _
    $region10: #{critic_forward.4} parent=5 // pred_check_branch
      %196 = sbr.rel (%p193) target = $region12
    $region11: #{critic_forward.4} parent=5 // pred_region
      %s197 = ssub.s32 %s11, 1
    $region12: #{critic_forward.4} parent=5 // pred_fallthru
      _
    %p198 = scmp.lt.s32.totalorder %s11, 2
    // Predicated region
    $region13: #{critic_forward.4} parent=5 // pred_check
      %p199 = pneg %p198
    $region14: #{critic_forward.4} parent=5 // pred_check_branch
      %201 = sbr.rel (%p199) target = $region16
    $region15: #{critic_forward.4} parent=5 // pred_region
      // Predicated region
      $region17: #{critic_forward.4} parent=15 // pred_check
        %p202 = pneg %p45
      $region18: #{critic_forward.4} parent=15 // pred_check_branch
        %204 = sbr.rel (%p202) target = $region20
      $region19: #{critic_forward.4} parent=15 // pred_region
        %s205 = smul.u32 16, %s19
        %p206 = scmp.lt.s32.totalorder %s18, 1
        %s207 = scalar_select %p206, %s18, 1
        %p208 = scmp.lt.s32.totalorder %s205, 15
        %s209 = scalar_select %p208, %s205, 15
        %s210 = smul.addr %s209, 2
        %s211 = smul.addr %s207, 32
        %s212 = sadd.s32 %s210, %s211
        %s213 = smul.addr %s212, 4
        %s214 = scalar_lea.vmem %s0, %s213
        %s215 = smul.u32 16, %s19
      $region20: #{critic_forward.4} parent=15 // pred_fallthru
        _
      // Predicated region
      $region21: #{critic_forward.4} parent=15 // pred_check
        %p216 = pneg %p71
      $region22: #{critic_forward.4} parent=15 // pred_check_branch
        %218 = sbr.rel (%p216) target = $region24
      $region23: #{critic_forward.4} parent=15 // pred_region
        %p219 = scmp.lt.s32.totalorder %s18, 1
        %s220 = scalar_select %p219, %s18, 1
        %s221 = smul.addr %s220, 18
        %s222 = smul.addr %s221, 4
        %s223 = scalar_lea.vmem %s1, %s222
      $region24: #{critic_forward.4} parent=15 // pred_fallthru
        _
      // Predicated region
      $region25: #{critic_forward.4} parent=15 // pred_check
        %p224 = pneg %p97
      $region26: #{critic_forward.4} parent=15 // pred_check_branch
        %226 = sbr.rel (%p224) target = $region28
      $region27: #{critic_forward.4} parent=15 // pred_region
        %p227 = scmp.lt.s32.totalorder %s18, 1
        %s228 = scalar_select %p227, %s18, 1
        %s229 = scalar_lea.vmem %s2, %s228
      $region28: #{critic_forward.4} parent=15 // pred_fallthru
        _
      // Predicated region
      $region29: #{critic_forward.4} parent=15 // pred_check
        %p230 = pneg %p123
      $region30: #{critic_forward.4} parent=15 // pred_check_branch
        %232 = sbr.rel (%p230) target = $region32
      $region31: #{critic_forward.4} parent=15 // pred_region
        %p233 = scmp.lt.s32.totalorder %s18, 1
        %s234 = scalar_select %p233, %s18, 1
        %s235 = smul.addr %s234, 2
        %s236 = smul.addr %s235, 4
        %s237 = scalar_lea.vmem %s3, %s236
      $region32: #{critic_forward.4} parent=15 // pred_fallthru
        _
      // Predicated region
      $region33: #{critic_forward.4} parent=15 // pred_check
        %p238 = pneg %p149
      $region34: #{critic_forward.4} parent=15 // pred_check_branch
        %240 = sbr.rel (%p238) target = $region36
      $region35: #{critic_forward.4} parent=15 // pred_region
        %p241 = scmp.lt.s32.totalorder %s18, 1
        %s242 = scalar_select %p241, %s18, 1
        %s243 = scalar_lea.vmem %s4, %s242
      $region36: #{critic_forward.4} parent=15 // pred_fallthru
        _
    $region16: #{critic_forward.4} parent=5 // pred_fallthru
      _
    %p244 = scmp.le.s32.totalorder 1, %s11
    %p245 = scmp.lt.s32.totalorder %s11, 3
    %p246 = pnand %p244, %p245
    %p247 = pneg %p246
    // Predicated region
    $region37: #{critic_forward.4} parent=5 // pred_check
      _
    $region38: #{critic_forward.4} parent=5 // pred_check_branch
      %249 = sbr.rel (%p246) target = $region40
    $region39: #{critic_forward.4} parent=5 // pred_region
      %s250 = ssub.s32 %s11, 1
      %s251 = smul.u32 16, %s21
      %p252 = scmp.lt.s32.totalorder %s20, 1
      %s253 = scalar_select %p252, %s20, 1
      %p254 = scmp.lt.s32.totalorder %s251, 15
      %s255 = scalar_select %p254, %s251, 15
      %s256 = smul.addr %s255, 2
      %s257 = smul.addr %s253, 32
      %s258 = sadd.s32 %s256, %s257
      %s259 = smul.addr %s258, 4
      %s260 = scalar_lea.vmem %s0, %s259
      %p261 = pneg %p51
      %p262 = pneg %p48
      %p263 = scmp.lt.s32.totalorder %s20, 1
      %s264 = scalar_select %p263, %s20, 1
      %s265 = smul.addr %s264, 18
      %s266 = smul.addr %s265, 4
      %s267 = scalar_lea.vmem %s1, %s266
      %p268 = pneg %p77
      %p269 = pneg %p74
      %p270 = scmp.lt.s32.totalorder %s20, 1
      %s271 = scalar_select %p270, %s20, 1
      %s272 = scalar_lea.vmem %s2, %s271
      %p273 = pneg %p103
      %p274 = pneg %p100
      %p275 = scmp.lt.s32.totalorder %s20, 1
      %s276 = scalar_select %p275, %s20, 1
      %s277 = smul.addr %s276, 2
      %s278 = smul.addr %s277, 4
      %s279 = scalar_lea.vmem %s3, %s278
      %p280 = pneg %p129
      %p281 = pneg %p126
      %p282 = scmp.lt.s32.totalorder %s20, 1
      %s283 = scalar_select %p282, %s20, 1
      %s284 = scalar_lea.vmem %s4, %s283
      %p285 = pneg %p155
      %p286 = pneg %p152
      %p287 = pneg %p183
      %p288 = pneg %p180
      %s289 = smul.u32 4, %s21
      %p290 = scmp.lt.s32.totalorder %s20, 1
      %s291 = scalar_select %p290, %s20, 1
      %p292 = scmp.lt.s32.totalorder %s289, 3
      %s293 = scalar_select %p292, %s289, 3
      %s294 = smul.addr %s291, 4
      %s295 = sadd.s32 %s293, %s294
      %s296 = smul.addr %s295, 4
      %s297 = scalar_lea.vmem %s5, %s296
      %s298 = smul.u32 16, %s21
      %p299 = scmp.lt.s32.totalorder %s20, 1
      %s300 = scalar_select %p299, %s20, 1
      %p301 = scmp.lt.s32.totalorder %s298, 15
      %s302 = scalar_select %p301, %s298, 15
      %s303 = smul.addr %s302, 2
      %s304 = smul.addr %s300, 32
      %s305 = sadd.s32 %s303, %s304
      %s306 = smul.addr %s305, 4
      %s307 = scalar_lea.vmem %s0, %s306
      %s308 = smul.u32 16, %s21
      %p309 = scmp.lt.s32.totalorder %s20, 1
      %s310 = scalar_select %p309, %s20, 1
      %s311 = smul.addr %s310, 18
      %s312 = smul.addr %s311, 4
      %s313 = scalar_lea.vmem %s1, %s312
      %p314 = scmp.lt.s32.totalorder %s20, 1
      %s315 = scalar_select %p314, %s20, 1
      %s316 = scalar_lea.vmem %s2, %s315
      %p317 = scmp.lt.s32.totalorder %s20, 1
      %s318 = scalar_select %p317, %s20, 1
      %s319 = smul.addr %s318, 2
      %s320 = smul.addr %s319, 4
      %s321 = scalar_lea.vmem %s3, %s320
      %p322 = scmp.lt.s32.totalorder %s20, 1
      %s323 = scalar_select %p322, %s20, 1
      %s324 = scalar_lea.vmem %s4, %s323
      %s325 = smul.u32 4, %s21
      %p326 = scmp.lt.s32.totalorder %s20, 1
      %s327 = scalar_select %p326, %s20, 1
      %p328 = scmp.lt.s32.totalorder %s325, 3
      %s329 = scalar_select %p328, %s325, 3
      %s330 = smul.addr %s327, 4
      %s331 = sadd.s32 %s329, %s330
      %s332 = smul.addr %s331, 4
      %s333 = scalar_lea.vmem %s5, %s332
      %s334 = smul.u32 4, %s21
      %v336 = vld [vmem:[%s307] sm:$0xff]
      %v337 = vld [vmem:[%s307 + $0x8] sm:$0xff]
      %v338 = vld [vmem:[%s307 + $0x10] sm:$0xff]
      %v339 = vld [vmem:[%s307 + $0x18] sm:$0xff]
      %v340 = vld [vmem:[%s307 + $0x20] sm:$0xff]
      %v341 = vld [vmem:[%s307 + $0x28] sm:$0xff]
      %v342 = vld [vmem:[%s307 + $0x30] sm:$0xff]
      %v343 = vld [vmem:[%s307 + $0x38] sm:$0xff]
      %v344 = vld [vmem:[%s307 + $0x40] sm:$0xff]
      %v345 = vld [vmem:[%s307 + $0x48] sm:$0xff]
      %v346 = vld [vmem:[%s307 + $0x50] sm:$0xff]
      %v347 = vld [vmem:[%s307 + $0x58] sm:$0xff]
      %v348 = vld [vmem:[%s307 + $0x60] sm:$0xff]
      %v349 = vld [vmem:[%s307 + $0x68] sm:$0xff]
      %v350 = vld [vmem:[%s307 + $0x70] sm:$0xff]
      %v351 = vld [vmem:[%s307 + $0x78] sm:$0xff]
      %v352 = vld [vmem:[%s313] sm:$0xf]
      %v353 = vld [vmem:[%s313 + $0x4] sm:$0xf]
      %v354 = vld [vmem:[%s313 + $0x8] sm:$0xf]
      %v355 = vld [vmem:[%s313 + $0xc] sm:$0xf]
      %v356 = vld [vmem:[%s313 + $0x10] sm:$0xf]
      %v357 = vld [vmem:[%s313 + $0x14] sm:$0xf]
      %v358 = vld [vmem:[%s313 + $0x18] sm:$0xf]
      %v359 = vld [vmem:[%s313 + $0x1c] sm:$0xf]
      %v360 = vld [vmem:[%s313 + $0x20] sm:$0xf]
      %v361 = vld [vmem:[%s313 + $0x24] sm:$0xf]
      %v362 = vld [vmem:[%s313 + $0x28] sm:$0xf]
      %v363 = vld [vmem:[%s313 + $0x2c] sm:$0xf]
      %v364 = vld [vmem:[%s313 + $0x30] sm:$0xf]
      %v365 = vld [vmem:[%s313 + $0x34] sm:$0xf]
      %v366 = vld [vmem:[%s313 + $0x38] sm:$0xf]
      %v367 = vld [vmem:[%s313 + $0x3c] sm:$0xf]
      %v368 = vld [vmem:[%s313 + $0x40] sm:$0xf]
      %v369 = vld [vmem:[%s313 + $0x44] sm:$0xf]
      %v386 = vunpack.c.l.b16 %v336
      %v387 = vunpack.c.h.b16 %v336
      %v388 = vunpack.c.l.b16 %v337
      %v389 = vunpack.c.h.b16 %v337
      %v390 = vunpack.c.l.b16 %v338
      %v391 = vunpack.c.h.b16 %v338
      %v392 = vunpack.c.l.b16 %v339
      %v393 = vunpack.c.h.b16 %v339
      %v394 = vunpack.c.l.b16 %v340
      %v395 = vunpack.c.h.b16 %v340
      %v396 = vunpack.c.l.b16 %v341
      %v397 = vunpack.c.h.b16 %v341
      %v398 = vunpack.c.l.b16 %v342
      %v399 = vunpack.c.h.b16 %v342
      %v400 = vunpack.c.l.b16 %v343
      %v401 = vunpack.c.h.b16 %v343
      %v402 = vunpack.c.l.b16 %v344
      %v403 = vunpack.c.h.b16 %v344
      %v404 = vunpack.c.l.b16 %v345
      %v405 = vunpack.c.h.b16 %v345
      %v406 = vunpack.c.l.b16 %v346
      %v407 = vunpack.c.h.b16 %v346
      %v408 = vunpack.c.l.b16 %v347
      %v409 = vunpack.c.h.b16 %v347
      %v410 = vunpack.c.l.b16 %v348
      %v411 = vunpack.c.h.b16 %v348
      %v412 = vunpack.c.l.b16 %v349
      %v413 = vunpack.c.h.b16 %v349
      %v414 = vunpack.c.l.b16 %v350
      %v415 = vunpack.c.h.b16 %v350
      %v416 = vunpack.c.l.b16 %v351
      %v417 = vunpack.c.h.b16 %v351
      %v418 = vpack.c.b16 %v388, %v386
      %v419 = vpack.c.b16 %v389, %v387
      %v420 = vpack.c.b16 %v392, %v390
      %v421 = vpack.c.b16 %v393, %v391
      %v422 = vpack.c.b16 %v396, %v394
      %v423 = vpack.c.b16 %v397, %v395
      %v424 = vpack.c.b16 %v400, %v398
      %v425 = vpack.c.b16 %v401, %v399
      %v426 = vpack.c.b16 %v404, %v402
      %v427 = vpack.c.b16 %v405, %v403
      %v428 = vpack.c.b16 %v408, %v406
      %v429 = vpack.c.b16 %v409, %v407
      %v430 = vpack.c.b16 %v412, %v410
      %v431 = vpack.c.b16 %v413, %v411
      %v432 = vpack.c.b16 %v416, %v414
      %v433 = vpack.c.b16 %v417, %v415
      %v460 = vunpack.c.l.b16 %v352
      %v461 = vunpack.c.l.b16 %v353
      %v462 = vunpack.c.l.b16 %v354
      %v463 = vunpack.c.l.b16 %v355
      %v464 = vunpack.c.l.b16 %v356
      %v465 = vunpack.c.l.b16 %v357
      %v466 = vunpack.c.l.b16 %v358
      %v467 = vunpack.c.l.b16 %v359
      %v468 = vunpack.c.l.b16 %v360
      %v469 = vunpack.c.l.b16 %v361
      %v470 = vunpack.c.l.b16 %v362
      %v471 = vunpack.c.l.b16 %v363
      %v472 = vunpack.c.l.b16 %v364
      %v473 = vunpack.c.l.b16 %v365
      %v474 = vunpack.c.l.b16 %v366
      %v475 = vunpack.c.l.b16 %v367
      %v476 = vunpack.c.l.b16 %v368
      %v477 = vunpack.c.l.b16 %v369
      %v478 = vpack.c.b16 %v461, %v460
      %v479 = vpack.c.b16 %v463, %v462
      %v480 = vpack.c.b16 %v465, %v464
      %v481 = vpack.c.b16 %v467, %v466
      %v482 = vpack.c.b16 %v469, %v468
      %v483 = vpack.c.b16 %v471, %v470
      %v484 = vpack.c.b16 %v473, %v472
      %v485 = vpack.c.b16 %v475, %v474
      %v486 = vpack.c.b16 %v477, %v476
      %vm496 = vcmask 130048
      %v498 = vsel %vm496, %v419, 0
      %v501 = vsel %vm496, %v421, 0
      %v504 = vsel %vm496, %v423, 0
      %v507 = vsel %vm496, %v425, 0
      %v510 = vsel %vm496, %v427, 0
      %v513 = vsel %vm496, %v429, 0
      %v516 = vsel %vm496, %v431, 0
      %v519 = vsel %vm496, %v433, 0
      %521 = vmatprep.subr.bf16.mxu0 0
      %522 = vmatpush1.bf16.msra.mxu0 %v478
      %523 = vmatprep.subr.bf16.mxu0 0
      %524 = vmatpush1.bf16.msra.mxu0 %v479
      %525 = vmatprep.subr.bf16.mxu0 0
      %526 = vmatpush1.bf16.msra.mxu0 %v480
      %527 = vmatprep.subr.bf16.mxu0 0
      %528 = vmatpush1.bf16.msra.mxu0 %v481
      %529 = vmatprep.subr.bf16.mxu0 0
      %530 = vmatpush1.bf16.msra.mxu0 %v482
      %531 = vmatprep.subr.bf16.mxu0 0
      %532 = vmatpush1.bf16.msra.mxu0 %v483
      %533 = vmatprep.subr.bf16.mxu0 0
      %534 = vmatpush1.bf16.msra.mxu0 %v484
      %535 = vmatprep.subr.bf16.mxu0 0
      %536 = vmatpush1.bf16.msra.mxu0 %v485
      %537 = vmatprep.subr.bf16.mxu0 0
      %538 = vmatpush1.bf16.msra.mxu0 %v486
      %539 = vmatprep.subr.bf16.mxu0 0
      %540 = vmatpush1.bf16.msra.mxu0 0
      %541 = vmatprep.subr.bf16.mxu0 0
      %542 = vmatpush1.bf16.msra.mxu0 0
      %543 = vmatprep.subr.bf16.mxu0 0
      %544 = vmatpush1.bf16.msra.mxu0 0
      %545 = vmatprep.subr.bf16.mxu0 0
      %546 = vmatpush1.bf16.msra.mxu0 0
      %547 = vmatprep.subr.bf16.mxu0 0
      %548 = vmatpush1.bf16.msra.mxu0 0
      %549 = vmatprep.subr.bf16.mxu0 0
      %550 = vmatpush1.bf16.msra.mxu0 0
      %551 = vmatprep.subr.bf16.mxu0 0
      %552 = vmatpush1.bf16.msra.mxu0 0
      %553 = vmatprep.mubr.bf16.mxu0 %v498
      %554 = vmatmul.mubr.bf16.gmra.mrb[0].mxu0 %v418
      %v555 = vpop.f32.mrb[0].mxu0
      %v556 = vadd.f32 0.0, %v555
      %v557 = vpop.f32.mrb[0].mxu0
      %v558 = vpop.f32.mrb[0].mxu0
      %v559 = vadd.f32 0.0, %v558
      %v560 = vpop.f32.mrb[0].mxu0
      %561 = vmatprep.mubr.bf16.mxu0 %v501
      %562 = vmatmul.mubr.bf16.gmra.mrb[0].mxu0 %v420
      %v563 = vpop.f32.mrb[0].mxu0
      %v564 = vadd.f32 0.0, %v563
      %v565 = vpop.f32.mrb[0].mxu0
      %v566 = vpop.f32.mrb[0].mxu0
      %v567 = vadd.f32 0.0, %v566
      %v568 = vpop.f32.mrb[0].mxu0
      %569 = vmatprep.mubr.bf16.mxu0 %v504
      %570 = vmatmul.mubr.bf16.gmra.mrb[0].mxu0 %v422
      %v571 = vpop.f32.mrb[0].mxu0
      %v572 = vadd.f32 0.0, %v571
      %v573 = vpop.f32.mrb[0].mxu0
      %v574 = vpop.f32.mrb[0].mxu0
      %v575 = vadd.f32 0.0, %v574
      %v576 = vpop.f32.mrb[0].mxu0
      %577 = vmatprep.mubr.bf16.mxu0 %v507
      %578 = vmatmul.mubr.bf16.gmra.mrb[0].mxu0 %v424
      %v579 = vpop.f32.mrb[0].mxu0
      %v580 = vadd.f32 0.0, %v579
      %v581 = vpop.f32.mrb[0].mxu0
      %v582 = vpop.f32.mrb[0].mxu0
      %v583 = vadd.f32 0.0, %v582
      %v584 = vpop.f32.mrb[0].mxu0
      %585 = vmatprep.mubr.bf16.mxu0 %v510
      %586 = vmatmul.mubr.bf16.gmra.mrb[0].mxu0 %v426
      %v587 = vpop.f32.mrb[0].mxu0
      %v588 = vadd.f32 0.0, %v587
      %v589 = vpop.f32.mrb[0].mxu0
      %v590 = vpop.f32.mrb[0].mxu0
      %v591 = vadd.f32 0.0, %v590
      %v592 = vpop.f32.mrb[0].mxu0
      %593 = vmatprep.mubr.bf16.mxu0 %v513
      %594 = vmatmul.mubr.bf16.gmra.mrb[0].mxu0 %v428
      %v595 = vpop.f32.mrb[0].mxu0
      %v596 = vadd.f32 0.0, %v595
      %v597 = vpop.f32.mrb[0].mxu0
      %v598 = vpop.f32.mrb[0].mxu0
      %v599 = vadd.f32 0.0, %v598
      %v600 = vpop.f32.mrb[0].mxu0
      %601 = vmatprep.mubr.bf16.mxu0 %v516
      %602 = vmatmul.mubr.bf16.gmra.mrb[0].mxu0 %v430
      %v603 = vpop.f32.mrb[0].mxu0
      %v604 = vadd.f32 0.0, %v603
      %v605 = vpop.f32.mrb[0].mxu0
      %v606 = vpop.f32.mrb[0].mxu0
      %v607 = vadd.f32 0.0, %v606
      %v608 = vpop.f32.mrb[0].mxu0
      %609 = vmatprep.mubr.bf16.mxu0 %v519
      %610 = vmatmul.mubr.bf16.gmra.mrb[0].mxu0 %v432
      %v611 = vpop.f32.mrb[0].mxu0
      %v612 = vadd.f32 0.0, %v611
      %v613 = vpop.f32.mrb[0].mxu0
      %v614 = vpop.f32.mrb[0].mxu0
      %v615 = vadd.f32 0.0, %v614
      %v616 = vpop.f32.mrb[0].mxu0
      %617 = vdwg.mxu0
      %v618 = vmax.f32 %v556, %v572
      %v619 = vmax.f32 %v559, %v575
      %v620 = vmax.f32 %v564, %v580
      %v621 = vmax.f32 %v567, %v583
      %v622 = vmax.f32 %v588, %v604
      %v623 = vmax.f32 %v591, %v607
      %v624 = vmax.f32 %v596, %v612
      %v625 = vmax.f32 %v599, %v615
      %v626 = vmax.f32 %v618, %v622
      %v627 = vmax.f32 %v619, %v623
      %v628 = vmax.f32 %v620, %v624
      %v629 = vmax.f32 %v621, %v625
      %v630 = vld [vmem:[%s316] sm:$0x1]
      %v632 = vlaneseq
      %v633 = vshrl.u32 %v632, 7
      %v634 = vsub.s32 0, %v633
      %v635 = vrot.slane %v630, %v634
      %v637 = vadd.f32 %v626, %v635
      %v638 = vadd.f32 %v627, %v635
      %v639 = vadd.f32 %v628, %v635
      %v640 = vadd.f32 %v629, %v635
      %v641 = vmax.f32 %v637, 0.0
      %v642 = vmax.f32 %v638, 0.0
      %v643 = vmax.f32 %v639, 0.0
      %v644 = vmax.f32 %v640, 0.0
      %v645 = vpack.c.bf16 %v642, %v641
      %v646 = vpack.c.bf16 %v644, %v643
      %v647 = vld [vmem:[%s321] sm:$0xf]
      %v648 = vld [vmem:[%s321 + $0x4] sm:$0xf]
      %v649 = vld [vmem:[%s324] sm:$0x1]
      %v651 = vlaneseq
      %v652 = vshrl.u32 %v651, 7
      %v653 = vsub.s32 0, %v652
      %v654 = vrot.slane %v649, %v653
      %v658 = vunpack.c.l.b16 %v647
      %v659 = vunpack.c.l.b16 %v648
      %v660 = vpack.c.b16 %v659, %v658
      %v663 = vsel %vm496, %v645, 0
      %v666 = vsel %vm496, %v646, 0
      %668 = vmatprep.subr.bf16.mxu0 0
      %669 = vmatpush1.bf16.msra.mxu0 %v660
      %670 = vmatprep.subr.bf16.mxu0 0
      %671 = vmatpush1.bf16.msra.mxu0 0
      %672 = vmatprep.subr.bf16.mxu0 0
      %673 = vmatpush1.bf16.msra.mxu0 0
      %674 = vmatprep.subr.bf16.mxu0 0
      %675 = vmatpush1.bf16.msra.mxu0 0
      %676 = vmatprep.subr.bf16.mxu0 0
      %677 = vmatpush1.bf16.msra.mxu0 0
      %678 = vmatprep.subr.bf16.mxu0 0
      %679 = vmatpush1.bf16.msra.mxu0 0
      %680 = vmatprep.subr.bf16.mxu0 0
      %681 = vmatpush1.bf16.msra.mxu0 0
      %682 = vmatprep.subr.bf16.mxu0 0
      %683 = vmatpush1.bf16.msra.mxu0 0
      %684 = vmatprep.subr.bf16.mxu0 0
      %685 = vmatpush1.bf16.msra.mxu0 0
      %686 = vmatprep.subr.bf16.mxu0 0
      %687 = vmatpush1.bf16.msra.mxu0 0
      %688 = vmatprep.subr.bf16.mxu0 0
      %689 = vmatpush1.bf16.msra.mxu0 0
      %690 = vmatprep.subr.bf16.mxu0 0
      %691 = vmatpush1.bf16.msra.mxu0 0
      %692 = vmatprep.subr.bf16.mxu0 0
      %693 = vmatpush1.bf16.msra.mxu0 0
      %694 = vmatprep.subr.bf16.mxu0 0
      %695 = vmatpush1.bf16.msra.mxu0 0
      %696 = vmatprep.subr.bf16.mxu0 0
      %697 = vmatpush1.bf16.msra.mxu0 0
      %698 = vmatprep.subr.bf16.mxu0 0
      %699 = vmatpush1.bf16.msra.mxu0 0
      %700 = vmatprep.mubr.bf16.mxu0 0
      %701 = vmatmul.mubr.bf16.gmra.mrb[0].mxu0 %v663
      %v702 = vpop.f32.mrb[0].mxu0
      %v703 = vadd.f32 %v654, %v702
      %v704 = vpop.f32.mrb[0].mxu0
      %v705 = vpop.f32.mrb[0].mxu0
      %v706 = vadd.f32 %v654, %v705
      %v707 = vpop.f32.mrb[0].mxu0
      %708 = vmatprep.mubr.bf16.mxu0 0
      %709 = vmatmul.mubr.bf16.gmra.mrb[0].mxu0 %v666
      %v710 = vpop.f32.mrb[0].mxu0
      %v711 = vadd.f32 %v654, %v710
      %v712 = vpop.f32.mrb[0].mxu0
      %v713 = vpop.f32.mrb[0].mxu0
      %v714 = vadd.f32 %v654, %v713
      %v715 = vpop.f32.mrb[0].mxu0
      %716 = vdwg.mxu0
      %v717 = vmax.f32 %v703, 0.0
      %v718 = vmax.f32 %v706, 0.0
      %v719 = vmax.f32 %v711, 0.0
      %v720 = vmax.f32 %v714, 0.0
      %v721 = vpack.c.bf16 %v718, %v717
      %v722 = vpack.c.bf16 %v720, %v719
      %v725 = vunpack.c.l.b16 %v721
      %v726 = vunpack.c.h.b16 %v721
      %v727 = vunpack.c.l.b16 %v722
      %v728 = vunpack.c.h.b16 %v722
      %v729 = vpack.c.b16 %v725, %v725
      %v730 = vpack.c.b16 %v726, %v726
      %v731 = vpack.c.b16 %v727, %v727
      %v732 = vpack.c.b16 %v728, %v728
      %vm737 = vcmask 125952
      %738 = vst.msk [vmem:[%s333] sm:$0xf] %vm737, %v729
      %739 = vst.msk [vmem:[%s333 + $0x4] sm:$0xf] %vm737, %v730
      %740 = vst.msk [vmem:[%s333 + $0x8] sm:$0xf] %vm737, %v731
      %741 = vst.msk [vmem:[%s333 + $0xc] sm:$0xf] %vm737, %v732
      %s742 = smul.u32 4, %s21
      %p743 = scmp.lt.s32.totalorder %s20, 1
      %s744 = scalar_select %p743, %s20, 1
      %p745 = scmp.lt.s32.totalorder %s742, 3
      %s746 = scalar_select %p745, %s742, 3
      %s747 = smul.addr %s744, 4
      %s748 = sadd.s32 %s746, %s747
      %s749 = smul.addr %s748, 4
      %s750 = scalar_lea.vmem %s5, %s749
      // Predicated region
      $region41: #{critic_forward.4} parent=39 // pred_check
        %p751 = pneg %p180
      $region42: #{critic_forward.4} parent=39 // pred_check_branch
        %753 = sbr.rel (%p751) target = $region44
      $region43: #{critic_forward.4} parent=39 // pred_region
        %s754 = smul.u32 4, %s21
      $region44: #{critic_forward.4} parent=39 // pred_fallthru
        _
    $region40: #{critic_forward.4} parent=5 // pred_fallthru
      _
    %p755 = scmp.le.s32.totalorder 2, %s11
    // Predicated region
    $region45: #{critic_forward.4} parent=5 // pred_check
      %p756 = pneg %p755
    $region46: #{critic_forward.4} parent=5 // pred_check_branch
      %758 = sbr.rel (%p756) target = $region48
    $region47: #{critic_forward.4} parent=5 // pred_region
      %s759 = ssub.s32 %s11, 2
      // Predicated region
      $region49: #{critic_forward.4} parent=47 // pred_check
        %p760 = pneg %p186
      $region50: #{critic_forward.4} parent=47 // pred_check_branch
        %762 = sbr.rel (%p760) target = $region52
      $region51: #{critic_forward.4} parent=47 // pred_region
        %s763 = smul.u32 4, %s23
        %p764 = scmp.lt.s32.totalorder %s22, 1
        %s765 = scalar_select %p764, %s22, 1
        %p766 = scmp.lt.s32.totalorder %s763, 3
        %s767 = scalar_select %p766, %s763, 3
        %s768 = smul.addr %s765, 4
        %s769 = sadd.s32 %s767, %s768
        %s770 = smul.addr %s769, 4
        %s771 = scalar_lea.vmem %s5, %s770
      $region52: #{critic_forward.4} parent=47 // pred_fallthru
        _
    $region48: #{critic_forward.4} parent=5 // pred_fallthru
      _
  $region6: #{critic_forward.4} parent=0 // loop_footer
    %s15 = sadd.s32 1, %s11
  $region7: #{critic_forward.4} parent=0 // loop_footer_branch
    %10 = sbr.rel target = $region3
  $region8: #{critic_forward.4} parent=0 // loop_exit
    _

// kernel: critic_forward.5
$region0: #{critic_forward.5}
  #allocation0 [shape = 'u32[]', space=smem, size = 0x4, offset = 0x4, fixed_abs, tag = 'smem constant byte address 0x4 - core index']
  #allocation1 [shape = 'u32[144,128]{1,0:T(1,128)}', space=vmem, size = 0x12000, scoped, tag = 'internal scratch']
  %s0 = inlined_call_operand.vmem [shape: bf16[2,256,144], index: 0, kind: input, shape index: {}]
  %s1 = inlined_call_operand.vmem [shape: bf16[16,4], index: 1, kind: input, shape index: {}]
  %s2 = inlined_call_operand.vmem [shape: bf16[2,144,16], index: 2, kind: input, shape index: {}]
  %s3 = inlined_call_operand.vmem [shape: f32[2,1,16], index: 3, kind: input, shape index: {}]
  %s4 = inlined_call_operand.vmem [shape: bf16[2,64,16], index: 4, kind: input, shape index: {}]
  %s5 = inlined_call_operand.vmem [shape: f32[2,1,16], index: 5, kind: input, shape index: {}]
  %s6 = inlined_call_operand.vmem [shape: bf16[2,16,10], index: 6, kind: input, shape index: {}]
  %s7 = inlined_call_operand.vmem [shape: bf16[2,4,10], index: 7, kind: input, shape index: {}]
  %s8 = inlined_call_operand.vmem [shape: f32[2,1,10], index: 8, kind: input, shape index: {}]
  %s9 = inlined_call_operand.vmem [shape: bf16[2,10,1], index: 9, kind: input, shape index: {}]
  %s10 = inlined_call_operand.vmem [shape: f32[2,1,1], index: 10, kind: input, shape index: {}]
  %s11 = inlined_call_operand.vmem [shape: f32[2,16,1], index: 11, kind: output, shape index: {}]
  %s12 = sld [smem:[#allocation0]]
  $region77: #{critic_forward.5} parent=0
    _
  %s14 = ssub.s32 1, %s12
  %s15 = scalar_select 0, %s14, %s12
  loop: start=0, step=1, limit=4
  $region2: #{critic_forward.5} parent=0 // loop_pre_header
    _
  $region3: #{critic_forward.5} parent=0 // loop_header
    %s17 = sphi 0, %s21
    %p18 = scmp.ge.s32.totalorder %s17, 4
    %s27 = sphi 0, %s29
    %s30 = sphi 0, %s27
    %s31 = sphi 0, %s30
    %s47 = sphi 0, %s31
    %s51 = sphi 0, %s51
    %s53 = sphi 0, %s51
    %s54 = sphi 0, %s53
    %s68 = sphi 0, %s54
    %s74 = sphi 0, %s76
    %s77 = sphi 0, %s74
    %s78 = sphi 0, %s77
    %s94 = sphi 0, %s78
    %s100 = sphi 0, %s102
    %s103 = sphi 0, %s100
    %s104 = sphi 0, %s103
    %s120 = sphi 0, %s104
    %s126 = sphi 0, %s128
    %s129 = sphi 0, %s126
    %s130 = sphi 0, %s129
    %s146 = sphi 0, %s130
    %s152 = sphi 0, %s154
    %s155 = sphi 0, %s152
    %s156 = sphi 0, %s155
    %s172 = sphi 0, %s156
    %s178 = sphi 0, %s180
    %s181 = sphi 0, %s178
    %s182 = sphi 0, %s181
    %s198 = sphi 0, %s182
    %s204 = sphi 0, %s206
    %s207 = sphi 0, %s204
    %s208 = sphi 0, %s207
    %s224 = sphi 0, %s208
    %s230 = sphi 0, %s232
    %s233 = sphi 0, %s230
    %s234 = sphi 0, %s233
    %s250 = sphi 0, %s234
    %s256 = sphi 0, %s258
    %s259 = sphi 0, %s256
    %s260 = sphi 0, %s259
    %s276 = sphi 0, %s260
    %s282 = sphi 0, %s284
    %s285 = sphi 0, %s282
    %s286 = sphi 0, %s285
    %s302 = sphi 0, %s286
    %s308 = sphi 0, %s310
    %s311 = sphi 0, %s308
    %s312 = sphi 0, %s311
    %s328 = sphi 0, %s312
  $region4: #{critic_forward.5} parent=0 // loop_header_branch
    %20 = sbr.rel (%p18) target = $region8
  $region5: #{critic_forward.5} parent=0 // loop_body
    %s22 = ssub.s32 %s17, 1
    %s23 = ssub.s32 %s17, 2
    %s24 = sadd.s32 %s17, 1
    %s25 = ssub.s32 %s17, %s24
    %p26 = scmp.eq.s32.totalorder %s25, 0
    %s28 = sadd.s32 %s27, 1
    %s29 = scalar_select %p26, %s27, %s28
    %p32 = pneg %p26
    %p33 = scmp.eq.s32.totalorder %s17, 1
    %p34 = por %p32, %p33
    %p35 = scmp.ne.s32.totalorder %s27, %s30
    %p36 = scmp.eq.s32.totalorder %s17, 0
    %p37 = por %p35, %p36
    %p38 = scmp.ne.s32.totalorder %s27, %s30
    %p39 = scmp.eq.s32.totalorder %s22, 1
    %p40 = por %p38, %p39
    %p41 = scmp.ne.s32.totalorder %s30, %s31
    %p42 = scmp.eq.s32.totalorder %s22, 0
    %p43 = por %p41, %p42
    %p44 = scmp.ne.s32.totalorder %s30, %s31
    %p45 = scmp.eq.s32.totalorder %s23, 1
    %p46 = por %p44, %p45
    %p48 = scmp.ne.s32.totalorder %s31, %s47
    %p49 = scmp.eq.s32.totalorder %s23, 0
    %p50 = por %p48, %p49
    %s52 = sadd.s32 %s51, 1
    %p55 = scmp.eq.s32.totalorder %s17, 1
    %p56 = scmp.ne.s32.totalorder %s51, %s53
    %p57 = scmp.eq.s32.totalorder %s17, 0
    %p58 = por %p56, %p57
    %p59 = scmp.ne.s32.totalorder %s51, %s53
    %p60 = scmp.eq.s32.totalorder %s22, 1
    %p61 = por %p59, %p60
    %p62 = scmp.ne.s32.totalorder %s53, %s54
    %p63 = scmp.eq.s32.totalorder %s22, 0
    %p64 = por %p62, %p63
    %p65 = scmp.ne.s32.totalorder %s53, %s54
    %p66 = scmp.eq.s32.totalorder %s23, 1
    %p67 = por %p65, %p66
    %p69 = scmp.ne.s32.totalorder %s54, %s68
    %p70 = scmp.eq.s32.totalorder %s23, 0
    %p71 = por %p69, %p70
    %s72 = ssub.s32 %s17, %s24
    %p73 = scmp.eq.s32.totalorder %s72, 0
    %s75 = sadd.s32 %s74, 1
    %s76 = scalar_select %p73, %s74, %s75
    %p79 = pneg %p73
    %p80 = scmp.eq.s32.totalorder %s17, 1
    %p81 = por %p79, %p80
    %p82 = scmp.ne.s32.totalorder %s74, %s77
    %p83 = scmp.eq.s32.totalorder %s17, 0
    %p84 = por %p82, %p83
    %p85 = scmp.ne.s32.totalorder %s74, %s77
    %p86 = scmp.eq.s32.totalorder %s22, 1
    %p87 = por %p85, %p86
    %p88 = scmp.ne.s32.totalorder %s77, %s78
    %p89 = scmp.eq.s32.totalorder %s22, 0
    %p90 = por %p88, %p89
    %p91 = scmp.ne.s32.totalorder %s77, %s78
    %p92 = scmp.eq.s32.totalorder %s23, 1
    %p93 = por %p91, %p92
    %p95 = scmp.ne.s32.totalorder %s78, %s94
    %p96 = scmp.eq.s32.totalorder %s23, 0
    %p97 = por %p95, %p96
    %s98 = ssub.s32 %s17, %s24
    %p99 = scmp.eq.s32.totalorder %s98, 0
    %s101 = sadd.s32 %s100, 1
    %s102 = scalar_select %p99, %s100, %s101
    %p105 = pneg %p99
    %p106 = scmp.eq.s32.totalorder %s17, 1
    %p107 = por %p105, %p106
    %p108 = scmp.ne.s32.totalorder %s100, %s103
    %p109 = scmp.eq.s32.totalorder %s17, 0
    %p110 = por %p108, %p109
    %p111 = scmp.ne.s32.totalorder %s100, %s103
    %p112 = scmp.eq.s32.totalorder %s22, 1
    %p113 = por %p111, %p112
    %p114 = scmp.ne.s32.totalorder %s103, %s104
    %p115 = scmp.eq.s32.totalorder %s22, 0
    %p116 = por %p114, %p115
    %p117 = scmp.ne.s32.totalorder %s103, %s104
    %p118 = scmp.eq.s32.totalorder %s23, 1
    %p119 = por %p117, %p118
    %p121 = scmp.ne.s32.totalorder %s104, %s120
    %p122 = scmp.eq.s32.totalorder %s23, 0
    %p123 = por %p121, %p122
    %s124 = ssub.s32 %s17, %s24
    %p125 = scmp.eq.s32.totalorder %s124, 0
    %s127 = sadd.s32 %s126, 1
    %s128 = scalar_select %p125, %s126, %s127
    %p131 = pneg %p125
    %p132 = scmp.eq.s32.totalorder %s17, 1
    %p133 = por %p131, %p132
    %p134 = scmp.ne.s32.totalorder %s126, %s129
    %p135 = scmp.eq.s32.totalorder %s17, 0
    %p136 = por %p134, %p135
    %p137 = scmp.ne.s32.totalorder %s126, %s129
    %p138 = scmp.eq.s32.totalorder %s22, 1
    %p139 = por %p137, %p138
    %p140 = scmp.ne.s32.totalorder %s129, %s130
    %p141 = scmp.eq.s32.totalorder %s22, 0
    %p142 = por %p140, %p141
    %p143 = scmp.ne.s32.totalorder %s129, %s130
    %p144 = scmp.eq.s32.totalorder %s23, 1
    %p145 = por %p143, %p144
    %p147 = scmp.ne.s32.totalorder %s130, %s146
    %p148 = scmp.eq.s32.totalorder %s23, 0
    %p149 = por %p147, %p148
    %s150 = ssub.s32 %s17, %s24
    %p151 = scmp.eq.s32.totalorder %s150, 0
    %s153 = sadd.s32 %s152, 1
    %s154 = scalar_select %p151, %s152, %s153
    %p157 = pneg %p151
    %p158 = scmp.eq.s32.totalorder %s17, 1
    %p159 = por %p157, %p158
    %p160 = scmp.ne.s32.totalorder %s152, %s155
    %p161 = scmp.eq.s32.totalorder %s17, 0
    %p162 = por %p160, %p161
    %p163 = scmp.ne.s32.totalorder %s152, %s155
    %p164 = scmp.eq.s32.totalorder %s22, 1
    %p165 = por %p163, %p164
    %p166 = scmp.ne.s32.totalorder %s155, %s156
    %p167 = scmp.eq.s32.totalorder %s22, 0
    %p168 = por %p166, %p167
    %p169 = scmp.ne.s32.totalorder %s155, %s156
    %p170 = scmp.eq.s32.totalorder %s23, 1
    %p171 = por %p169, %p170
    %p173 = scmp.ne.s32.totalorder %s156, %s172
    %p174 = scmp.eq.s32.totalorder %s23, 0
    %p175 = por %p173, %p174
    %s176 = ssub.s32 %s17, %s24
    %p177 = scmp.eq.s32.totalorder %s176, 0
    %s179 = sadd.s32 %s178, 1
    %s180 = scalar_select %p177, %s178, %s179
    %p183 = pneg %p177
    %p184 = scmp.eq.s32.totalorder %s17, 1
    %p185 = por %p183, %p184
    %p186 = scmp.ne.s32.totalorder %s178, %s181
    %p187 = scmp.eq.s32.totalorder %s17, 0
    %p188 = por %p186, %p187
    %p189 = scmp.ne.s32.totalorder %s178, %s181
    %p190 = scmp.eq.s32.totalorder %s22, 1
    %p191 = por %p189, %p190
    %p192 = scmp.ne.s32.totalorder %s181, %s182
    %p193 = scmp.eq.s32.totalorder %s22, 0
    %p194 = por %p192, %p193
    %p195 = scmp.ne.s32.totalorder %s181, %s182
    %p196 = scmp.eq.s32.totalorder %s23, 1
    %p197 = por %p195, %p196
    %p199 = scmp.ne.s32.totalorder %s182, %s198
    %p200 = scmp.eq.s32.totalorder %s23, 0
    %p201 = por %p199, %p200
    %s202 = ssub.s32 %s17, %s24
    %p203 = scmp.eq.s32.totalorder %s202, 0
    %s205 = sadd.s32 %s204, 1
    %s206 = scalar_select %p203, %s204, %s205
    %p209 = pneg %p203
    %p210 = scmp.eq.s32.totalorder %s17, 1
    %p211 = por %p209, %p210
    %p212 = scmp.ne.s32.totalorder %s204, %s207
    %p213 = scmp.eq.s32.totalorder %s17, 0
    %p214 = por %p212, %p213
    %p215 = scmp.ne.s32.totalorder %s204, %s207
    %p216 = scmp.eq.s32.totalorder %s22, 1
    %p217 = por %p215, %p216
    %p218 = scmp.ne.s32.totalorder %s207, %s208
    %p219 = scmp.eq.s32.totalorder %s22, 0
    %p220 = por %p218, %p219
    %p221 = scmp.ne.s32.totalorder %s207, %s208
    %p222 = scmp.eq.s32.totalorder %s23, 1
    %p223 = por %p221, %p222
    %p225 = scmp.ne.s32.totalorder %s208, %s224
    %p226 = scmp.eq.s32.totalorder %s23, 0
    %p227 = por %p225, %p226
    %s228 = ssub.s32 %s17, %s24
    %p229 = scmp.eq.s32.totalorder %s228, 0
    %s231 = sadd.s32 %s230, 1
    %s232 = scalar_select %p229, %s230, %s231
    %p235 = pneg %p229
    %p236 = scmp.eq.s32.totalorder %s17, 1
    %p237 = por %p235, %p236
    %p238 = scmp.ne.s32.totalorder %s230, %s233
    %p239 = scmp.eq.s32.totalorder %s17, 0
    %p240 = por %p238, %p239
    %p241 = scmp.ne.s32.totalorder %s230, %s233
    %p242 = scmp.eq.s32.totalorder %s22, 1
    %p243 = por %p241, %p242
    %p244 = scmp.ne.s32.totalorder %s233, %s234
    %p245 = scmp.eq.s32.totalorder %s22, 0
    %p246 = por %p244, %p245
    %p247 = scmp.ne.s32.totalorder %s233, %s234
    %p248 = scmp.eq.s32.totalorder %s23, 1
    %p249 = por %p247, %p248
    %p251 = scmp.ne.s32.totalorder %s234, %s250
    %p252 = scmp.eq.s32.totalorder %s23, 0
    %p253 = por %p251, %p252
    %s254 = ssub.s32 %s17, %s24
    %p255 = scmp.eq.s32.totalorder %s254, 0
    %s257 = sadd.s32 %s256, 1
    %s258 = scalar_select %p255, %s256, %s257
    %p261 = pneg %p255
    %p262 = scmp.eq.s32.totalorder %s17, 1
    %p263 = por %p261, %p262
    %p264 = scmp.ne.s32.totalorder %s256, %s259
    %p265 = scmp.eq.s32.totalorder %s17, 0
    %p266 = por %p264, %p265
    %p267 = scmp.ne.s32.totalorder %s256, %s259
    %p268 = scmp.eq.s32.totalorder %s22, 1
    %p269 = por %p267, %p268
    %p270 = scmp.ne.s32.totalorder %s259, %s260
    %p271 = scmp.eq.s32.totalorder %s22, 0
    %p272 = por %p270, %p271
    %p273 = scmp.ne.s32.totalorder %s259, %s260
    %p274 = scmp.eq.s32.totalorder %s23, 1
    %p275 = por %p273, %p274
    %p277 = scmp.ne.s32.totalorder %s260, %s276
    %p278 = scmp.eq.s32.totalorder %s23, 0
    %p279 = por %p277, %p278
    %s280 = ssub.s32 %s17, %s24
    %p281 = scmp.eq.s32.totalorder %s280, 0
    %s283 = sadd.s32 %s282, 1
    %s284 = scalar_select %p281, %s282, %s283
    %p287 = pneg %p281
    %p288 = scmp.eq.s32.totalorder %s17, 1
    %p289 = por %p287, %p288
    %p290 = scmp.ne.s32.totalorder %s282, %s285
    %p291 = scmp.eq.s32.totalorder %s17, 0
    %p292 = por %p290, %p291
    %p293 = scmp.ne.s32.totalorder %s282, %s285
    %p294 = scmp.eq.s32.totalorder %s22, 1
    %p295 = por %p293, %p294
    %p296 = scmp.ne.s32.totalorder %s285, %s286
    %p297 = scmp.eq.s32.totalorder %s22, 0
    %p298 = por %p296, %p297
    %p299 = scmp.ne.s32.totalorder %s285, %s286
    %p300 = scmp.eq.s32.totalorder %s23, 1
    %p301 = por %p299, %p300
    %p303 = scmp.ne.s32.totalorder %s286, %s302
    %p304 = scmp.eq.s32.totalorder %s23, 0
    %p305 = por %p303, %p304
    %s306 = ssub.s32 %s17, %s24
    %p307 = scmp.eq.s32.totalorder %s306, 0
    %s309 = sadd.s32 %s308, 1
    %s310 = scalar_select %p307, %s308, %s309
    %p313 = pneg %p307
    %p314 = scmp.eq.s32.totalorder %s17, 1
    %p315 = por %p313, %p314
    %p316 = scmp.ne.s32.totalorder %s308, %s311
    %p317 = scmp.eq.s32.totalorder %s17, 0
    %p318 = por %p316, %p317
    %p319 = scmp.ne.s32.totalorder %s308, %s311
    %p320 = scmp.eq.s32.totalorder %s22, 1
    %p321 = por %p319, %p320
    %p322 = scmp.ne.s32.totalorder %s311, %s312
    %p323 = scmp.eq.s32.totalorder %s22, 0
    %p324 = por %p322, %p323
    %p325 = scmp.ne.s32.totalorder %s311, %s312
    %p326 = scmp.eq.s32.totalorder %s23, 1
    %p327 = por %p325, %p326
    %p329 = scmp.ne.s32.totalorder %s312, %s328
    %p330 = scmp.eq.s32.totalorder %s23, 0
    %p331 = por %p329, %p330
    %p332 = scmp.le.s32.totalorder 1, %s17
    %p333 = scmp.lt.s32.totalorder %s17, 3
    %p334 = pnand %p332, %p333
    %p335 = pneg %p334
    // Predicated region
    $region9: #{critic_forward.5} parent=5 // pred_check
      _
    $region10: #{critic_forward.5} parent=5 // pred_check_branch
      %337 = sbr.rel (%p334) target = $region12
    $region11: #{critic_forward.5} parent=5 // pred_region
      %s338 = ssub.s32 %s17, 1
      // Predicated region
      $region13: #{critic_forward.5} parent=11 // pred_check
        %p339 = pneg %p64
      $region14: #{critic_forward.5} parent=11 // pred_check_branch
        %341 = sbr.rel (%p339) target = $region16
      $region15: #{critic_forward.5} parent=11 // pred_region
        _
      $region16: #{critic_forward.5} parent=11 // pred_fallthru
        _
    $region12: #{critic_forward.5} parent=5 // pred_fallthru
      _
    %p342 = scmp.lt.s32.totalorder %s17, 2
    // Predicated region
    $region17: #{critic_forward.5} parent=5 // pred_check
      %p343 = pneg %p342
    $region18: #{critic_forward.5} parent=5 // pred_check_branch
      %345 = sbr.rel (%p343) target = $region20
    $region19: #{critic_forward.5} parent=5 // pred_region
      // Predicated region
      $region21: #{critic_forward.5} parent=19 // pred_check
        %p346 = pneg %p37
      $region22: #{critic_forward.5} parent=19 // pred_check_branch
        %348 = sbr.rel (%p346) target = $region24
      $region23: #{critic_forward.5} parent=19 // pred_region
        %p349 = scmp.lt.s32.totalorder %s17, 1
        %s350 = scalar_select %p349, %s17, 1
        %s351 = smul.addr %s350, 64
        %s352 = smul.addr %s351, 4
        %s353 = scalar_lea.vmem %s0, %s352
      $region24: #{critic_forward.5} parent=19 // pred_fallthru
        _
      // Predicated region
      $region25: #{critic_forward.5} parent=19 // pred_check
        %p354 = pneg %p84
      $region26: #{critic_forward.5} parent=19 // pred_check_branch
        %356 = sbr.rel (%p354) target = $region28
      $region27: #{critic_forward.5} parent=19 // pred_region
        %p357 = scmp.lt.s32.totalorder %s17, 1
        %s358 = scalar_select %p357, %s17, 1
        %s359 = smul.addr %s358, 18
        %s360 = smul.addr %s359, 4
        %s361 = scalar_lea.vmem %s2, %s360
      $region28: #{critic_forward.5} parent=19 // pred_fallthru
        _
      // Predicated region
      $region29: #{critic_forward.5} parent=19 // pred_check
        %p362 = pneg %p110
      $region30: #{critic_forward.5} parent=19 // pred_check_branch
        %364 = sbr.rel (%p362) target = $region32
      $region31: #{critic_forward.5} parent=19 // pred_region
        %p365 = scmp.lt.s32.totalorder %s17, 1
        %s366 = scalar_select %p365, %s17, 1
        %s367 = scalar_lea.vmem %s3, %s366
      $region32: #{critic_forward.5} parent=19 // pred_fallthru
        _
      // Predicated region
      $region33: #{critic_forward.5} parent=19 // pred_check
        %p368 = pneg %p136
      $region34: #{critic_forward.5} parent=19 // pred_check_branch
        %370 = sbr.rel (%p368) target = $region36
      $region35: #{critic_forward.5} parent=19 // pred_region
        %p371 = scmp.lt.s32.totalorder %s17, 1
        %s372 = scalar_select %p371, %s17, 1
        %s373 = smul.addr %s372, 8
        %s374 = smul.addr %s373, 4
        %s375 = scalar_lea.vmem %s4, %s374
      $region36: #{critic_forward.5} parent=19 // pred_fallthru
        _
      // Predicated region
      $region37: #{critic_forward.5} parent=19 // pred_check
        %p376 = pneg %p162
      $region38: #{critic_forward.5} parent=19 // pred_check_branch
        %378 = sbr.rel (%p376) target = $region40
      $region39: #{critic_forward.5} parent=19 // pred_region
        %p379 = scmp.lt.s32.totalorder %s17, 1
        %s380 = scalar_select %p379, %s17, 1
        %s381 = scalar_lea.vmem %s5, %s380
      $region40: #{critic_forward.5} parent=19 // pred_fallthru
        _
      // Predicated region
      $region41: #{critic_forward.5} parent=19 // pred_check
        %p382 = pneg %p188
      $region42: #{critic_forward.5} parent=19 // pred_check_branch
        %384 = sbr.rel (%p382) target = $region44
      $region43: #{critic_forward.5} parent=19 // pred_region
        %p385 = scmp.lt.s32.totalorder %s17, 1
        %s386 = scalar_select %p385, %s17, 1
        %s387 = smul.addr %s386, 2
        %s388 = smul.addr %s387, 4
        %s389 = scalar_lea.vmem %s6, %s388
      $region44: #{critic_forward.5} parent=19 // pred_fallthru
        _
      // Predicated region
      $region45: #{critic_forward.5} parent=19 // pred_check
        %p390 = pneg %p214
      $region46: #{critic_forward.5} parent=19 // pred_check_branch
        %392 = sbr.rel (%p390) target = $region48
      $region47: #{critic_forward.5} parent=19 // pred_region
        %p393 = scmp.lt.s32.totalorder %s17, 1
        %s394 = scalar_select %p393, %s17, 1
        %s395 = smul.addr %s394, 2
        %s396 = scalar_lea.vmem %s7, %s395
      $region48: #{critic_forward.5} parent=19 // pred_fallthru
        _
      // Predicated region
      $region49: #{critic_forward.5} parent=19 // pred_check
        %p397 = pneg %p240
      $region50: #{critic_forward.5} parent=19 // pred_check_branch
        %399 = sbr.rel (%p397) target = $region52
      $region51: #{critic_forward.5} parent=19 // pred_region
        %p400 = scmp.lt.s32.totalorder %s17, 1
        %s401 = scalar_select %p400, %s17, 1
        %s402 = scalar_lea.vmem %s8, %s401
      $region52: #{critic_forward.5} parent=19 // pred_fallthru
        _
      // Predicated region
      $region53: #{critic_forward.5} parent=19 // pred_check
        %p403 = pneg %p266
      $region54: #{critic_forward.5} parent=19 // pred_check_branch
        %405 = sbr.rel (%p403) target = $region56
      $region55: #{critic_forward.5} parent=19 // pred_region
        %p406 = scmp.lt.s32.totalorder %s17, 1
        %s407 = scalar_select %p406, %s17, 1
        %s408 = smul.addr %s407, 2
        %s409 = smul.addr %s408, 4
        %s410 = scalar_lea.vmem %s9, %s409
      $region56: #{critic_forward.5} parent=19 // pred_fallthru
        _
      // Predicated region
      $region57: #{critic_forward.5} parent=19 // pred_check
        %p411 = pneg %p292
      $region58: #{critic_forward.5} parent=19 // pred_check_branch
        %413 = sbr.rel (%p411) target = $region60
      $region59: #{critic_forward.5} parent=19 // pred_region
        %p414 = scmp.lt.s32.totalorder %s17, 1
        %s415 = scalar_select %p414, %s17, 1
        %s416 = scalar_lea.vmem %s10, %s415
      $region60: #{critic_forward.5} parent=19 // pred_fallthru
        _
    $region20: #{critic_forward.5} parent=5 // pred_fallthru
      _
    %p417 = scmp.le.s32.totalorder 1, %s17
    %p418 = scmp.lt.s32.totalorder %s17, 3
    %p419 = pnand %p417, %p418
    %p420 = pneg %p419
    // Predicated region
    $region61: #{critic_forward.5} parent=5 // pred_check
      _
    $region62: #{critic_forward.5} parent=5 // pred_check_branch
      %422 = sbr.rel (%p419) target = $region64
    $region63: #{critic_forward.5} parent=5 // pred_region
      %s423 = ssub.s32 %s17, 1
      %p424 = scmp.lt.s32.totalorder %s22, 1
      %s425 = scalar_select %p424, %s22, 1
      %s426 = smul.addr %s425, 64
      %s427 = smul.addr %s426, 4
      %s428 = scalar_lea.vmem %s0, %s427
      %p429 = pneg %p43
      %p430 = pneg %p40
      %p431 = pneg %p64
      %p432 = pneg %p61
      %p433 = scmp.lt.s32.totalorder %s22, 1
      %s434 = scalar_select %p433, %s22, 1
      %s435 = smul.addr %s434, 18
      %s436 = smul.addr %s435, 4
      %s437 = scalar_lea.vmem %s2, %s436
      %p438 = pneg %p90
      %p439 = pneg %p87
      %p440 = scmp.lt.s32.totalorder %s22, 1
      %s441 = scalar_select %p440, %s22, 1
      %s442 = scalar_lea.vmem %s3, %s441
      %p443 = pneg %p116
      %p444 = pneg %p113
      %p445 = scmp.lt.s32.totalorder %s22, 1
      %s446 = scalar_select %p445, %s22, 1
      %s447 = smul.addr %s446, 8
      %s448 = smul.addr %s447, 4
      %s449 = scalar_lea.vmem %s4, %s448
      %p450 = pneg %p142
      %p451 = pneg %p139
      %p452 = scmp.lt.s32.totalorder %s22, 1
      %s453 = scalar_select %p452, %s22, 1
      %s454 = scalar_lea.vmem %s5, %s453
      %p455 = pneg %p168
      %p456 = pneg %p165
      %p457 = scmp.lt.s32.totalorder %s22, 1
      %s458 = scalar_select %p457, %s22, 1
      %s459 = smul.addr %s458, 2
      %s460 = smul.addr %s459, 4
      %s461 = scalar_lea.vmem %s6, %s460
      %p462 = pneg %p194
      %p463 = pneg %p191
      %p464 = scmp.lt.s32.totalorder %s22, 1
      %s465 = scalar_select %p464, %s22, 1
      %s466 = smul.addr %s465, 2
      %s467 = scalar_lea.vmem %s7, %s466
      %p468 = pneg %p220
      %p469 = pneg %p217
      %p470 = scmp.lt.s32.totalorder %s22, 1
      %s471 = scalar_select %p470, %s22, 1
      %s472 = scalar_lea.vmem %s8, %s471
      %p473 = pneg %p246
      %p474 = pneg %p243
      %p475 = scmp.lt.s32.totalorder %s22, 1
      %s476 = scalar_select %p475, %s22, 1
      %s477 = smul.addr %s476, 2
      %s478 = smul.addr %s477, 4
      %s479 = scalar_lea.vmem %s9, %s478
      %p480 = pneg %p272
      %p481 = pneg %p269
      %p482 = scmp.lt.s32.totalorder %s22, 1
      %s483 = scalar_select %p482, %s22, 1
      %s484 = scalar_lea.vmem %s10, %s483
      %p485 = pneg %p298
      %p486 = pneg %p295
      %p487 = pneg %p324
      %p488 = pneg %p321
      %p489 = scmp.lt.s32.totalorder %s22, 1
      %s490 = scalar_select %p489, %s22, 1
      %s491 = smul.addr %s490, 2
      %s492 = smul.addr %s491, 8
      %s493 = scalar_lea.vmem %s11, %s492
      %p494 = scmp.lt.s32.totalorder %s22, 1
      %s495 = scalar_select %p494, %s22, 1
      %s496 = smul.addr %s495, 64
      %s497 = smul.addr %s496, 4
      %s498 = scalar_lea.vmem %s0, %s497
      %p499 = scmp.lt.s32.totalorder %s22, 1
      %s500 = scalar_select %p499, %s22, 1
      %s501 = smul.addr %s500, 18
      %s502 = smul.addr %s501, 4
      %s503 = scalar_lea.vmem %s2, %s502
      %p504 = scmp.lt.s32.totalorder %s22, 1
      %s505 = scalar_select %p504, %s22, 1
      %s506 = scalar_lea.vmem %s3, %s505
      %p507 = scmp.lt.s32.totalorder %s22, 1
      %s508 = scalar_select %p507, %s22, 1
      %s509 = smul.addr %s508, 8
      %s510 = smul.addr %s509, 4
      %s511 = scalar_lea.vmem %s4, %s510
      %p512 = scmp.lt.s32.totalorder %s22, 1
      %s513 = scalar_select %p512, %s22, 1
      %s514 = scalar_lea.vmem %s5, %s513
      %p515 = scmp.lt.s32.totalorder %s22, 1
      %s516 = scalar_select %p515, %s22, 1
      %s517 = smul.addr %s516, 2
      %s518 = smul.addr %s517, 4
      %s519 = scalar_lea.vmem %s6, %s518
      %p520 = scmp.lt.s32.totalorder %s22, 1
      %s521 = scalar_select %p520, %s22, 1
      %s522 = smul.addr %s521, 2
      %s523 = scalar_lea.vmem %s7, %s522
      %p524 = scmp.lt.s32.totalorder %s22, 1
      %s525 = scalar_select %p524, %s22, 1
      %s526 = scalar_lea.vmem %s8, %s525
      %p527 = scmp.lt.s32.totalorder %s22, 1
      %s528 = scalar_select %p527, %s22, 1
      %s529 = smul.addr %s528, 2
      %s530 = smul.addr %s529, 4
      %s531 = scalar_lea.vmem %s9, %s530
      %p532 = scmp.lt.s32.totalorder %s22, 1
      %s533 = scalar_select %p532, %s22, 1
      %s534 = scalar_lea.vmem %s10, %s533
      %p535 = scmp.lt.s32.totalorder %s22, 1
      %s536 = scalar_select %p535, %s22, 1
      %s537 = smul.addr %s536, 2
      %s538 = smul.addr %s537, 8
      %s539 = scalar_lea.vmem %s11, %s538
      %v541 = vld [vmem:[%s498] sm:$0xff]
      %v542 = vld [vmem:[%s498 + $0x8] sm:$0xff]
      %v543 = vld [vmem:[%s498 + $0x10] sm:$0xff]
      %v544 = vld [vmem:[%s498 + $0x18] sm:$0xff]
      %v545 = vld [vmem:[%s498 + $0x20] sm:$0xff]
      %v546 = vld [vmem:[%s498 + $0x28] sm:$0xff]
      %v547 = vld [vmem:[%s498 + $0x30] sm:$0xff]
      %v548 = vld [vmem:[%s498 + $0x38] sm:$0xff]
      %v549 = vld [vmem:[%s498 + $0x40] sm:$0xff]
      %v550 = vld [vmem:[%s498 + $0x48] sm:$0xff]
      %v551 = vld [vmem:[%s498 + $0x50] sm:$0xff]
      %v552 = vld [vmem:[%s498 + $0x58] sm:$0xff]
      %v553 = vld [vmem:[%s498 + $0x60] sm:$0xff]
      %v554 = vld [vmem:[%s498 + $0x68] sm:$0xff]
      %v555 = vld [vmem:[%s498 + $0x70] sm:$0xff]
      %v556 = vld [vmem:[%s498 + $0x78] sm:$0xff]
      %v557 = vld [vmem:[%s498 + $0x80] sm:$0xff]
      %v558 = vld [vmem:[%s498 + $0x88] sm:$0xff]
      %v559 = vld [vmem:[%s498 + $0x90] sm:$0xff]
      %v560 = vld [vmem:[%s498 + $0x98] sm:$0xff]
      %v561 = vld [vmem:[%s498 + $0xa0] sm:$0xff]
      %v562 = vld [vmem:[%s498 + $0xa8] sm:$0xff]
      %v563 = vld [vmem:[%s498 + $0xb0] sm:$0xff]
      %v564 = vld [vmem:[%s498 + $0xb8] sm:$0xff]
      %v565 = vld [vmem:[%s498 + $0xc0] sm:$0xff]
      %v566 = vld [vmem:[%s498 + $0xc8] sm:$0xff]
      %v567 = vld [vmem:[%s498 + $0xd0] sm:$0xff]
      %v568 = vld [vmem:[%s498 + $0xd8] sm:$0xff]
      %v569 = vld [vmem:[%s498 + $0xe0] sm:$0xff]
      %v570 = vld [vmem:[%s498 + $0xe8] sm:$0xff]
      %v571 = vld [vmem:[%s498 + $0xf0] sm:$0xff]
      %v572 = vld [vmem:[%s498 + $0xf8] sm:$0xff]
      %v573 = vld [vmem:[%s503] sm:$0xf]
      %v574 = vld [vmem:[%s503 + $0x4] sm:$0xf]
      %v575 = vld [vmem:[%s503 + $0x8] sm:$0xf]
      %v576 = vld [vmem:[%s503 + $0xc] sm:$0xf]
      %v577 = vld [vmem:[%s503 + $0x10] sm:$0xf]
      %v578 = vld [vmem:[%s503 + $0x14] sm:$0xf]
      %v579 = vld [vmem:[%s503 + $0x18] sm:$0xf]
      %v580 = vld [vmem:[%s503 + $0x1c] sm:$0xf]
      %v581 = vld [vmem:[%s503 + $0x20] sm:$0xf]
      %v582 = vld [vmem:[%s503 + $0x24] sm:$0xf]
      %v583 = vld [vmem:[%s503 + $0x28] sm:$0xf]
      %v584 = vld [vmem:[%s503 + $0x2c] sm:$0xf]
      %v585 = vld [vmem:[%s503 + $0x30] sm:$0xf]
      %v586 = vld [vmem:[%s503 + $0x34] sm:$0xf]
      %v587 = vld [vmem:[%s503 + $0x38] sm:$0xf]
      %v588 = vld [vmem:[%s503 + $0x3c] sm:$0xf]
      %v589 = vld [vmem:[%s503 + $0x40] sm:$0xf]
      %v590 = vld [vmem:[%s503 + $0x44] sm:$0xf]
      %v623 = vunpack.c.l.b16 %v541
      %v624 = vunpack.c.h.b16 %v541
      %v625 = vunpack.c.l.b16 %v542
      %v626 = vunpack.c.h.b16 %v542
      %v627 = vunpack.c.l.b16 %v543
      %v628 = vunpack.c.h.b16 %v543
      %v629 = vunpack.c.l.b16 %v544
      %v630 = vunpack.c.h.b16 %v544
      %v631 = vunpack.c.l.b16 %v545
      %v632 = vunpack.c.h.b16 %v545
      %v633 = vunpack.c.l.b16 %v546
      %v634 = vunpack.c.h.b16 %v546
      %v635 = vunpack.c.l.b16 %v547
      %v636 = vunpack.c.h.b16 %v547
      %v637 = vunpack.c.l.b16 %v548
      %v638 = vunpack.c.h.b16 %v548
      %v639 = vunpack.c.l.b16 %v549
      %v640 = vunpack.c.h.b16 %v549
      %v641 = vunpack.c.l.b16 %v550
      %v642 = vunpack.c.h.b16 %v550
      %v643 = vunpack.c.l.b16 %v551
      %v644 = vunpack.c.h.b16 %v551
      %v645 = vunpack.c.l.b16 %v552
      %v646 = vunpack.c.h.b16 %v552
      %v647 = vunpack.c.l.b16 %v553
      %v648 = vunpack.c.h.b16 %v553
      %v649 = vunpack.c.l.b16 %v554
      %v650 = vunpack.c.h.b16 %v554
      %v651 = vunpack.c.l.b16 %v555
      %v652 = vunpack.c.h.b16 %v555
      %v653 = vunpack.c.l.b16 %v556
      %v654 = vunpack.c.h.b16 %v556
      %v655 = vunpack.c.l.b16 %v557
      %v656 = vunpack.c.h.b16 %v557
      %v657 = vunpack.c.l.b16 %v558
      %v658 = vunpack.c.h.b16 %v558
      %v659 = vunpack.c.l.b16 %v559
      %v660 = vunpack.c.h.b16 %v559
      %v661 = vunpack.c.l.b16 %v560
      %v662 = vunpack.c.h.b16 %v560
      %v663 = vunpack.c.l.b16 %v561
      %v664 = vunpack.c.h.b16 %v561
      %v665 = vunpack.c.l.b16 %v562
      %v666 = vunpack.c.h.b16 %v562
      %v667 = vunpack.c.l.b16 %v563
      %v668 = vunpack.c.h.b16 %v563
      %v669 = vunpack.c.l.b16 %v564
      %v670 = vunpack.c.h.b16 %v564
      %v671 = vunpack.c.l.b16 %v565
      %v672 = vunpack.c.h.b16 %v565
      %v673 = vunpack.c.l.b16 %v566
      %v674 = vunpack.c.h.b16 %v566
      %v675 = vunpack.c.l.b16 %v567
      %v676 = vunpack.c.h.b16 %v567
      %v677 = vunpack.c.l.b16 %v568
      %v678 = vunpack.c.h.b16 %v568
      %v679 = vunpack.c.l.b16 %v569
      %v680 = vunpack.c.h.b16 %v569
      %v681 = vunpack.c.l.b16 %v570
      %v682 = vunpack.c.h.b16 %v570
      %v683 = vunpack.c.l.b16 %v571
      %v684 = vunpack.c.h.b16 %v571
      %v685 = vunpack.c.l.b16 %v572
      %v686 = vunpack.c.h.b16 %v572
      %v687 = vpack.c.b16 %v625, %v623
      %v688 = vpack.c.b16 %v626, %v624
      %v689 = vpack.c.b16 %v629, %v627
      %v690 = vpack.c.b16 %v630, %v628
      %v691 = vpack.c.b16 %v633, %v631
      %v692 = vpack.c.b16 %v634, %v632
      %v693 = vpack.c.b16 %v637, %v635
      %v694 = vpack.c.b16 %v638, %v636
      %v695 = vpack.c.b16 %v641, %v639
      %v696 = vpack.c.b16 %v642, %v640
      %v697 = vpack.c.b16 %v645, %v643
      %v698 = vpack.c.b16 %v646, %v644
      %v699 = vpack.c.b16 %v649, %v647
      %v700 = vpack.c.b16 %v650, %v648
      %v701 = vpack.c.b16 %v653, %v651
      %v702 = vpack.c.b16 %v654, %v652
      %v703 = vpack.c.b16 %v657, %v655
      %v704 = vpack.c.b16 %v658, %v656
      %v705 = vpack.c.b16 %v661, %v659
      %v706 = vpack.c.b16 %v662, %v660
      %v707 = vpack.c.b16 %v665, %v663
      %v708 = vpack.c.b16 %v666, %v664
      %v709 = vpack.c.b16 %v669, %v667
      %v710 = vpack.c.b16 %v670, %v668
      %v711 = vpack.c.b16 %v673, %v671
      %v712 = vpack.c.b16 %v674, %v672
      %v713 = vpack.c.b16 %v677, %v675
      %v714 = vpack.c.b16 %v678, %v676
      %v715 = vpack.c.b16 %v681, %v679
      %v716 = vpack.c.b16 %v682, %v680
      %v717 = vpack.c.b16 %v685, %v683
      %v718 = vpack.c.b16 %v686, %v684
      %v753 = vunpack.c.l.b16 %v573
      %v754 = vunpack.c.l.b16 %v574
      %v755 = vunpack.c.l.b16 %v575
      %v756 = vunpack.c.l.b16 %v576
      %v757 = vunpack.c.l.b16 %v577
      %v758 = vunpack.c.l.b16 %v578
      %v759 = vunpack.c.l.b16 %v579
      %v760 = vunpack.c.l.b16 %v580
      %v761 = vunpack.c.l.b16 %v581
      %v762 = vunpack.c.l.b16 %v582
      %v763 = vunpack.c.l.b16 %v583
      %v764 = vunpack.c.l.b16 %v584
      %v765 = vunpack.c.l.b16 %v585
      %v766 = vunpack.c.l.b16 %v586
      %v767 = vunpack.c.l.b16 %v587
      %v768 = vunpack.c.l.b16 %v588
      %v769 = vunpack.c.l.b16 %v589
      %v770 = vunpack.c.l.b16 %v590
      %v771 = vpack.c.b16 %v754, %v753
      %v772 = vpack.c.b16 %v756, %v755
      %v773 = vpack.c.b16 %v758, %v757
      %v774 = vpack.c.b16 %v760, %v759
      %v775 = vpack.c.b16 %v762, %v761
      %v776 = vpack.c.b16 %v764, %v763
      %v777 = vpack.c.b16 %v766, %v765
      %v778 = vpack.c.b16 %v768, %v767
      %v779 = vpack.c.b16 %v770, %v769
      %vm789 = vcmask 130048
      %v791 = vsel %vm789, %v688, 0
      %v794 = vsel %vm789, %v690, 0
      %v797 = vsel %vm789, %v692, 0
      %v800 = vsel %vm789, %v694, 0
      %v803 = vsel %vm789, %v696, 0
      %v806 = vsel %vm789, %v698, 0
      %v809 = vsel %vm789, %v700, 0
      %v812 = vsel %vm789, %v702, 0
      %v815 = vsel %vm789, %v704, 0
      %v818 = vsel %vm789, %v706, 0
      %v821 = vsel %vm789, %v708, 0
      %v824 = vsel %vm789, %v710, 0
      %v827 = vsel %vm789, %v712, 0
      %v830 = vsel %vm789, %v714, 0
      %v833 = vsel %vm789, %v716, 0
      %v836 = vsel %vm789, %v718, 0
      %838 = vmatprep.subr.bf16.mxu0 0
      %839 = vmatpush1.bf16.msra.mxu0 %v771
      %840 = vmatprep.subr.bf16.mxu0 0
      %841 = vmatpush1.bf16.msra.mxu0 %v772
      %842 = vmatprep.subr.bf16.mxu0 0
      %843 = vmatpush1.bf16.msra.mxu0 %v773
      %844 = vmatprep.subr.bf16.mxu0 0
      %845 = vmatpush1.bf16.msra.mxu0 %v774
      %846 = vmatprep.subr.bf16.mxu0 0
      %847 = vmatpush1.bf16.msra.mxu0 %v775
      %848 = vmatprep.subr.bf16.mxu0 0
      %849 = vmatpush1.bf16.msra.mxu0 %v776
      %850 = vmatprep.subr.bf16.mxu0 0
      %851 = vmatpush1.bf16.msra.mxu0 %v777
      %852 = vmatprep.subr.bf16.mxu0 0
      %853 = vmatpush1.bf16.msra.mxu0 %v778
      %854 = vmatprep.subr.bf16.mxu0 0
      %855 = vmatpush1.bf16.msra.mxu0 %v779
      %856 = vmatprep.subr.bf16.mxu0 0
      %857 = vmatpush1.bf16.msra.mxu0 0
      %858 = vmatprep.subr.bf16.mxu0 0
      %859 = vmatpush1.bf16.msra.mxu0 0
      %860 = vmatprep.subr.bf16.mxu0 0
      %861 = vmatpush1.bf16.msra.mxu0 0
      %862 = vmatprep.subr.bf16.mxu0 0
      %863 = vmatpush1.bf16.msra.mxu0 0
      %864 = vmatprep.subr.bf16.mxu0 0
      %865 = vmatpush1.bf16.msra.mxu0 0
      %866 = vmatprep.subr.bf16.mxu0 0
      %867 = vmatpush1.bf16.msra.mxu0 0
      %868 = vmatprep.subr.bf16.mxu0 0
      %869 = vmatpush1.bf16.msra.mxu0 0
      %870 = vmatprep.mubr.bf16.mxu0 %v791
      %871 = vmatmul.mubr.bf16.gmra.mrb[0].mxu0 %v687
      %v872 = vpop.f32.mrb[0].mxu0
      %v873 = vadd.f32 0.0, %v872
      %v874 = vpop.f32.mrb[0].mxu0
      %v875 = vpop.f32.mrb[0].mxu0
      %v876 = vadd.f32 0.0, %v875
      %v877 = vpop.f32.mrb[0].mxu0
      %878 = vmatprep.mubr.bf16.mxu0 %v794
      %879 = vmatmul.mubr.bf16.gmra.mrb[0].mxu0 %v689
      %v880 = vpop.f32.mrb[0].mxu0
      %v881 = vadd.f32 0.0, %v880
      %v882 = vpop.f32.mrb[0].mxu0
      %v883 = vpop.f32.mrb[0].mxu0
      %v884 = vadd.f32 0.0, %v883
      %v885 = vpop.f32.mrb[0].mxu0
      %886 = vmatprep.mubr.bf16.mxu0 %v797
      %887 = vmatmul.mubr.bf16.gmra.mrb[0].mxu0 %v691
      %v888 = vpop.f32.mrb[0].mxu0
      %v889 = vadd.f32 0.0, %v888
      %v890 = vpop.f32.mrb[0].mxu0
      %v891 = vpop.f32.mrb[0].mxu0
      %v892 = vadd.f32 0.0, %v891
      %v893 = vpop.f32.mrb[0].mxu0
      %894 = vmatprep.mubr.bf16.mxu0 %v800
      %895 = vmatmul.mubr.bf16.gmra.mrb[0].mxu0 %v693
      %v896 = vpop.f32.mrb[0].mxu0
      %v897 = vadd.f32 0.0, %v896
      %v898 = vpop.f32.mrb[0].mxu0
      %v899 = vpop.f32.mrb[0].mxu0
      %v900 = vadd.f32 0.0, %v899
      %v901 = vpop.f32.mrb[0].mxu0
      %902 = vmatprep.mubr.bf16.mxu0 %v803
      %903 = vmatmul.mubr.bf16.gmra.mrb[0].mxu0 %v695
      %v904 = vpop.f32.mrb[0].mxu0
      %v905 = vadd.f32 0.0, %v904
      %v906 = vpop.f32.mrb[0].mxu0
      %v907 = vpop.f32.mrb[0].mxu0
      %v908 = vadd.f32 0.0, %v907
      %v909 = vpop.f32.mrb[0].mxu0
      %910 = vmatprep.mubr.bf16.mxu0 %v806
      %911 = vmatmul.mubr.bf16.gmra.mrb[0].mxu0 %v697
      %v912 = vpop.f32.mrb[0].mxu0
      %v913 = vadd.f32 0.0, %v912
      %v914 = vpop.f32.mrb[0].mxu0
      %v915 = vpop.f32.mrb[0].mxu0
      %v916 = vadd.f32 0.0, %v915
      %v917 = vpop.f32.mrb[0].mxu0
      %918 = vmatprep.mubr.bf16.mxu0 %v809
      %919 = vmatmul.mubr.bf16.gmra.mrb[0].mxu0 %v699
      %v920 = vpop.f32.mrb[0].mxu0
      %v921 = vadd.f32 0.0, %v920
      %v922 = vpop.f32.mrb[0].mxu0
      %v923 = vpop.f32.mrb[0].mxu0
      %v924 = vadd.f32 0.0, %v923
      %v925 = vpop.f32.mrb[0].mxu0
      %926 = vmatprep.mubr.bf16.mxu0 %v812
      %927 = vmatmul.mubr.bf16.gmra.mrb[0].mxu0 %v701
      %v928 = vpop.f32.mrb[0].mxu0
      %v929 = vadd.f32 0.0, %v928
      %v930 = vpop.f32.mrb[0].mxu0
      %v931 = vpop.f32.mrb[0].mxu0
      %v932 = vadd.f32 0.0, %v931
      %v933 = vpop.f32.mrb[0].mxu0
      %934 = vmatprep.mubr.bf16.mxu0 %v815
      %935 = vmatmul.mubr.bf16.gmra.mrb[0].mxu0 %v703
      %v936 = vpop.f32.mrb[0].mxu0
      %v937 = vadd.f32 0.0, %v936
      %v938 = vpop.f32.mrb[0].mxu0
      %v939 = vpop.f32.mrb[0].mxu0
      %v940 = vadd.f32 0.0, %v939
      %v941 = vpop.f32.mrb[0].mxu0
      %942 = vmatprep.mubr.bf16.mxu0 %v818
      %943 = vmatmul.mubr.bf16.gmra.mrb[0].mxu0 %v705
      %v944 = vpop.f32.mrb[0].mxu0
      %v945 = vadd.f32 0.0, %v944
      %v946 = vpop.f32.mrb[0].mxu0
      %v947 = vpop.f32.mrb[0].mxu0
      %v948 = vadd.f32 0.0, %v947
      %v949 = vpop.f32.mrb[0].mxu0
      %950 = vmatprep.mubr.bf16.mxu0 %v821
      %951 = vmatmul.mubr.bf16.gmra.mrb[0].mxu0 %v707
      %v952 = vpop.f32.mrb[0].mxu0
      %v953 = vadd.f32 0.0, %v952
      %v954 = vpop.f32.mrb[0].mxu0
      %v955 = vpop.f32.mrb[0].mxu0
      %v956 = vadd.f32 0.0, %v955
      %v957 = vpop.f32.mrb[0].mxu0
      %958 = vmatprep.mubr.bf16.mxu0 %v824
      %959 = vmatmul.mubr.bf16.gmra.mrb[0].mxu0 %v709
      %v960 = vpop.f32.mrb[0].mxu0
      %v961 = vadd.f32 0.0, %v960
      %v962 = vpop.f32.mrb[0].mxu0
      %v963 = vpop.f32.mrb[0].mxu0
      %v964 = vadd.f32 0.0, %v963
      %v965 = vpop.f32.mrb[0].mxu0
      %966 = vmatprep.mubr.bf16.mxu0 %v827
      %967 = vmatmul.mubr.bf16.gmra.mrb[0].mxu0 %v711
      %v968 = vpop.f32.mrb[0].mxu0
      %v969 = vadd.f32 0.0, %v968
      %v970 = vpop.f32.mrb[0].mxu0
      %v971 = vpop.f32.mrb[0].mxu0
      %v972 = vadd.f32 0.0, %v971
      %v973 = vpop.f32.mrb[0].mxu0
      %974 = vmatprep.mubr.bf16.mxu0 %v830
      %975 = vmatmul.mubr.bf16.gmra.mrb[0].mxu0 %v713
      %v976 = vpop.f32.mrb[0].mxu0
      %v977 = vadd.f32 0.0, %v976
      %v978 = vpop.f32.mrb[0].mxu0
      %v979 = vpop.f32.mrb[0].mxu0
      %v980 = vadd.f32 0.0, %v979
      %v981 = vpop.f32.mrb[0].mxu0
      %982 = vmatprep.mubr.bf16.mxu0 %v833
      %983 = vmatmul.mubr.bf16.gmra.mrb[0].mxu0 %v715
      %v984 = vpop.f32.mrb[0].mxu0
      %v985 = vadd.f32 0.0, %v984
      %v986 = vpop.f32.mrb[0].mxu0
      %v987 = vpop.f32.mrb[0].mxu0
      %v988 = vadd.f32 0.0, %v987
      %v989 = vpop.f32.mrb[0].mxu0
      %990 = vmatprep.mubr.bf16.mxu0 %v836
      %991 = vmatmul.mubr.bf16.gmra.mrb[0].mxu0 %v717
      %v992 = vpop.f32.mrb[0].mxu0
      %v993 = vadd.f32 0.0, %v992
      %v994 = vpop.f32.mrb[0].mxu0
      %v995 = vpop.f32.mrb[0].mxu0
      %v996 = vadd.f32 0.0, %v995
      %v997 = vpop.f32.mrb[0].mxu0
      %998 = vdwg.mxu0
      %v999 = vmax.f32 %v873, %v905
      %v1000 = vmax.f32 %v876, %v908
      %v1001 = vmax.f32 %v881, %v913
      %v1002 = vmax.f32 %v884, %v916
      %v1003 = vmax.f32 %v889, %v921
      %v1004 = vmax.f32 %v892, %v924
      %v1005 = vmax.f32 %v897, %v929
      %v1006 = vmax.f32 %v900, %v932
      %v1007 = vmax.f32 %v937, %v969
      %v1008 = vmax.f32 %v940, %v972
      %v1009 = vmax.f32 %v945, %v977
      %v1010 = vmax.f32 %v948, %v980
      %v1011 = vmax.f32 %v953, %v985
      %v1012 = vmax.f32 %v956, %v988
      %v1013 = vmax.f32 %v961, %v993
      %v1014 = vmax.f32 %v964, %v996
      %v1015 = vmax.f32 %v999, %v1007
      %v1016 = vmax.f32 %v1000, %v1008
      %v1017 = vmax.f32 %v1001, %v1009
      %v1018 = vmax.f32 %v1002, %v1010
      %v1019 = vmax.f32 %v1003, %v1011
      %v1020 = vmax.f32 %v1004, %v1012
      %v1021 = vmax.f32 %v1005, %v1013
      %v1022 = vmax.f32 %v1006, %v1014
      %v1023 = vld [vmem:[%s506] sm:$0x1]
      %v1025 = vlaneseq
      %v1026 = vshrl.u32 %v1025, 7
      %v1027 = vsub.s32 0, %v1026
      %v1028 = vrot.slane %v1023, %v1027
      %v1030 = vadd.f32 %v1015, %v1028
      %v1031 = vadd.f32 %v1016, %v1028
      %v1032 = vadd.f32 %v1017, %v1028
      %v1033 = vadd.f32 %v1018, %v1028
      %v1034 = vadd.f32 %v1019, %v1028
      %v1035 = vadd.f32 %v1020, %v1028
      %v1036 = vadd.f32 %v1021, %v1028
      %v1037 = vadd.f32 %v1022, %v1028
      %v1038 = vmax.f32 %v1030, 0.0
      %v1039 = vmax.f32 %v1031, 0.0
      %v1040 = vmax.f32 %v1032, 0.0
      %v1041 = vmax.f32 %v1033, 0.0
      %v1042 = vmax.f32 %v1034, 0.0
      %v1043 = vmax.f32 %v1035, 0.0
      %v1044 = vmax.f32 %v1036, 0.0
      %v1045 = vmax.f32 %v1037, 0.0
      %v1046 = vpack.c.bf16 %v1039, %v1038
      %v1047 = vpack.c.bf16 %v1041, %v1040
      %v1048 = vpack.c.bf16 %v1043, %v1042
      %v1049 = vpack.c.bf16 %v1045, %v1044
      %v1050 = vld [vmem:[%s511] sm:$0xf]
      %v1051 = vld [vmem:[%s511 + $0x4] sm:$0xf]
      %v1052 = vld [vmem:[%s511 + $0x8] sm:$0xf]
      %v1053 = vld [vmem:[%s511 + $0xc] sm:$0xf]
      %v1054 = vld [vmem:[%s511 + $0x10] sm:$0xf]
      %v1055 = vld [vmem:[%s511 + $0x14] sm:$0xf]
      %v1056 = vld [vmem:[%s511 + $0x18] sm:$0xf]
      %v1057 = vld [vmem:[%s511 + $0x1c] sm:$0xf]
      %v1060 = vunpack.c.l.b16 %v1052
      %v1061 = vunpack.c.l.b16 %v1053
      %v1062 = vpack.c.b16 %v1061, %v1060
      %v1065 = vsel %vm789, %v1047, 0
      %1067 = vmatprep.subr.bf16.mxu0 0
      %1068 = vmatpush1.bf16.msra.mxu0 %v1062
      %1069 = vmatprep.subr.bf16.mxu0 0
      %1070 = vmatpush1.bf16.msra.mxu0 0
      %1071 = vmatprep.subr.bf16.mxu0 0
      %1072 = vmatpush1.bf16.msra.mxu0 0
      %1073 = vmatprep.subr.bf16.mxu0 0
      %1074 = vmatpush1.bf16.msra.mxu0 0
      %1075 = vmatprep.subr.bf16.mxu0 0
      %1076 = vmatpush1.bf16.msra.mxu0 0
      %1077 = vmatprep.subr.bf16.mxu0 0
      %1078 = vmatpush1.bf16.msra.mxu0 0
      %1079 = vmatprep.subr.bf16.mxu0 0
      %1080 = vmatpush1.bf16.msra.mxu0 0
      %1081 = vmatprep.subr.bf16.mxu0 0
      %1082 = vmatpush1.bf16.msra.mxu0 0
      %1083 = vmatprep.subr.bf16.mxu0 0
      %1084 = vmatpush1.bf16.msra.mxu0 0
      %1085 = vmatprep.subr.bf16.mxu0 0
      %1086 = vmatpush1.bf16.msra.mxu0 0
      %1087 = vmatprep.subr.bf16.mxu0 0
      %1088 = vmatpush1.bf16.msra.mxu0 0
      %1089 = vmatprep.subr.bf16.mxu0 0
      %1090 = vmatpush1.bf16.msra.mxu0 0
      %1091 = vmatprep.subr.bf16.mxu0 0
      %1092 = vmatpush1.bf16.msra.mxu0 0
      %1093 = vmatprep.subr.bf16.mxu0 0
      %1094 = vmatpush1.bf16.msra.mxu0 0
      %1095 = vmatprep.subr.bf16.mxu0 0
      %1096 = vmatpush1.bf16.msra.mxu0 0
      %1097 = vmatprep.subr.bf16.mxu0 0
      %1098 = vmatpush1.bf16.msra.mxu0 0
      %1099 = vmatprep.mubr.bf16.mxu0 0
      %1100 = vmatmul.mubr.bf16.gmra.mrb[0].mxu0 %v1065
      %v1101 = vpop.f32.mrb[0].mxu0
      %v1102 = vadd.f32 0.0, %v1101
      %v1103 = vpop.f32.mrb[0].mxu0
      %v1104 = vpop.f32.mrb[0].mxu0
      %v1105 = vadd.f32 0.0, %v1104
      %v1106 = vpop.f32.mrb[0].mxu0
      %1107 = vdwg.mxu0
      %v1110 = vunpack.c.l.b16 %v1050
      %v1111 = vunpack.c.l.b16 %v1051
      %v1112 = vpack.c.b16 %v1111, %v1110
      %v1115 = vsel %vm789, %v1046, 0
      %1117 = vmatprep.subr.bf16.mxu0 0
      %1118 = vmatpush1.bf16.msra.mxu0 %v1112
      %1119 = vmatprep.subr.bf16.mxu0 0
      %1120 = vmatpush1.bf16.msra.mxu0 0
      %1121 = vmatprep.subr.bf16.mxu0 0
      %1122 = vmatpush1.bf16.msra.mxu0 0
      %1123 = vmatprep.subr.bf16.mxu0 0
      %1124 = vmatpush1.bf16.msra.mxu0 0
      %1125 = vmatprep.subr.bf16.mxu0 0
      %1126 = vmatpush1.bf16.msra.mxu0 0
      %1127 = vmatprep.subr.bf16.mxu0 0
      %1128 = vmatpush1.bf16.msra.mxu0 0
      %1129 = vmatprep.subr.bf16.mxu0 0
      %1130 = vmatpush1.bf16.msra.mxu0 0
      %1131 = vmatprep.subr.bf16.mxu0 0
      %1132 = vmatpush1.bf16.msra.mxu0 0
      %1133 = vmatprep.subr.bf16.mxu0 0
      %1134 = vmatpush1.bf16.msra.mxu0 0
      %1135 = vmatprep.subr.bf16.mxu0 0
      %1136 = vmatpush1.bf16.msra.mxu0 0
      %1137 = vmatprep.subr.bf16.mxu0 0
      %1138 = vmatpush1.bf16.msra.mxu0 0
      %1139 = vmatprep.subr.bf16.mxu0 0
      %1140 = vmatpush1.bf16.msra.mxu0 0
      %1141 = vmatprep.subr.bf16.mxu0 0
      %1142 = vmatpush1.bf16.msra.mxu0 0
      %1143 = vmatprep.subr.bf16.mxu0 0
      %1144 = vmatpush1.bf16.msra.mxu0 0
      %1145 = vmatprep.subr.bf16.mxu0 0
      %1146 = vmatpush1.bf16.msra.mxu0 0
      %1147 = vmatprep.subr.bf16.mxu0 0
      %1148 = vmatpush1.bf16.msra.mxu0 0
      %1149 = vmatprep.mubr.bf16.mxu0 0
      %1150 = vmatmul.mubr.bf16.gmra.mrb[0].mxu0 %v1115
      %v1151 = vpop.f32.mrb[0].mxu0
      %v1152 = vadd.f32 %v1102, %v1151
      %v1153 = vpop.f32.mrb[0].mxu0
      %v1154 = vpop.f32.mrb[0].mxu0
      %v1155 = vadd.f32 %v1105, %v1154
      %v1156 = vpop.f32.mrb[0].mxu0
      %1157 = vdwg.mxu0
      %v1160 = vunpack.c.l.b16 %v1054
      %v1161 = vunpack.c.l.b16 %v1055
      %v1162 = vpack.c.b16 %v1161, %v1160
      %v1165 = vsel %vm789, %v1048, 0
      %1167 = vmatprep.subr.bf16.mxu0 0
      %1168 = vmatpush1.bf16.msra.mxu0 %v1162
      %1169 = vmatprep.subr.bf16.mxu0 0
      %1170 = vmatpush1.bf16.msra.mxu0 0
      %1171 = vmatprep.subr.bf16.mxu0 0
      %1172 = vmatpush1.bf16.msra.mxu0 0
      %1173 = vmatprep.subr.bf16.mxu0 0
      %1174 = vmatpush1.bf16.msra.mxu0 0
      %1175 = vmatprep.subr.bf16.mxu0 0
      %1176 = vmatpush1.bf16.msra.mxu0 0
      %1177 = vmatprep.subr.bf16.mxu0 0
      %1178 = vmatpush1.bf16.msra.mxu0 0
      %1179 = vmatprep.subr.bf16.mxu0 0
      %1180 = vmatpush1.bf16.msra.mxu0 0
      %1181 = vmatprep.subr.bf16.mxu0 0
      %1182 = vmatpush1.bf16.msra.mxu0 0
      %1183 = vmatprep.subr.bf16.mxu0 0
      %1184 = vmatpush1.bf16.msra.mxu0 0
      %1185 = vmatprep.subr.bf16.mxu0 0
      %1186 = vmatpush1.bf16.msra.mxu0 0
      %1187 = vmatprep.subr.bf16.mxu0 0
      %1188 = vmatpush1.bf16.msra.mxu0 0
      %1189 = vmatprep.subr.bf16.mxu0 0
      %1190 = vmatpush1.bf16.msra.mxu0 0
      %1191 = vmatprep.subr.bf16.mxu0 0
      %1192 = vmatpush1.bf16.msra.mxu0 0
      %1193 = vmatprep.subr.bf16.mxu0 0
      %1194 = vmatpush1.bf16.msra.mxu0 0
      %1195 = vmatprep.subr.bf16.mxu0 0
      %1196 = vmatpush1.bf16.msra.mxu0 0
      %1197 = vmatprep.subr.bf16.mxu0 0
      %1198 = vmatpush1.bf16.msra.mxu0 0
      %1199 = vmatprep.mubr.bf16.mxu0 0
      %1200 = vmatmul.mubr.bf16.gmra.mrb[0].mxu0 %v1165
      %v1201 = vpop.f32.mrb[0].mxu0
      %v1202 = vadd.f32 0.0, %v1201
      %v1203 = vpop.f32.mrb[0].mxu0
      %v1204 = vpop.f32.mrb[0].mxu0
      %v1205 = vadd.f32 0.0, %v1204
      %v1206 = vpop.f32.mrb[0].mxu0
      %1207 = vdwg.mxu0
      %v1208 = vadd.f32 %v1152, %v1202
      %v1209 = vadd.f32 %v1155, %v1205
      %v1212 = vunpack.c.l.b16 %v1056
      %v1213 = vunpack.c.l.b16 %v1057
      %v1214 = vpack.c.b16 %v1213, %v1212
      %v1217 = vsel %vm789, %v1049, 0
      %1219 = vmatprep.subr.bf16.mxu0 0
      %1220 = vmatpush1.bf16.msra.mxu0 %v1214
      %1221 = vmatprep.subr.bf16.mxu0 0
      %1222 = vmatpush1.bf16.msra.mxu0 0
      %1223 = vmatprep.subr.bf16.mxu0 0
      %1224 = vmatpush1.bf16.msra.mxu0 0
      %1225 = vmatprep.subr.bf16.mxu0 0
      %1226 = vmatpush1.bf16.msra.mxu0 0
      %1227 = vmatprep.subr.bf16.mxu0 0
      %1228 = vmatpush1.bf16.msra.mxu0 0
      %1229 = vmatprep.subr.bf16.mxu0 0
      %1230 = vmatpush1.bf16.msra.mxu0 0
      %1231 = vmatprep.subr.bf16.mxu0 0
      %1232 = vmatpush1.bf16.msra.mxu0 0
      %1233 = vmatprep.subr.bf16.mxu0 0
      %1234 = vmatpush1.bf16.msra.mxu0 0
      %1235 = vmatprep.subr.bf16.mxu0 0
      %1236 = vmatpush1.bf16.msra.mxu0 0
      %1237 = vmatprep.subr.bf16.mxu0 0
      %1238 = vmatpush1.bf16.msra.mxu0 0
      %1239 = vmatprep.subr.bf16.mxu0 0
      %1240 = vmatpush1.bf16.msra.mxu0 0
      %1241 = vmatprep.subr.bf16.mxu0 0
      %1242 = vmatpush1.bf16.msra.mxu0 0
      %1243 = vmatprep.subr.bf16.mxu0 0
      %1244 = vmatpush1.bf16.msra.mxu0 0
      %1245 = vmatprep.subr.bf16.mxu0 0
      %1246 = vmatpush1.bf16.msra.mxu0 0
      %1247 = vmatprep.subr.bf16.mxu0 0
      %1248 = vmatpush1.bf16.msra.mxu0 0
      %1249 = vmatprep.subr.bf16.mxu0 0
      %1250 = vmatpush1.bf16.msra.mxu0 0
      %1251 = vmatprep.mubr.bf16.mxu0 0
      %1252 = vmatmul.mubr.bf16.gmra.mrb[0].mxu0 %v1217
      %v1253 = vpop.f32.mrb[0].mxu0
      %v1254 = vadd.f32 0.0, %v1253
      %v1255 = vpop.f32.mrb[0].mxu0
      %v1256 = vpop.f32.mrb[0].mxu0
      %v1257 = vadd.f32 0.0, %v1256
      %v1258 = vpop.f32.mrb[0].mxu0
      %1259 = vdwg.mxu0
      %v1260 = vadd.f32 %v1208, %v1254
      %v1261 = vadd.f32 %v1209, %v1257
      %v1262 = vld [vmem:[%s514] sm:$0x1]
      %v1264 = vlaneseq
      %v1265 = vshrl.u32 %v1264, 7
      %v1266 = vsub.s32 0, %v1265
      %v1267 = vrot.slane %v1262, %v1266
      %v1269 = vadd.f32 %v1260, %v1267
      %v1270 = vadd.f32 %v1261, %v1267
      %v1271 = vmax.f32 %v1269, 0.0
      %v1272 = vmax.f32 %v1270, 0.0
      %v1273 = vpack.c.bf16 %v1272, %v1271
      %v1274 = vld [vmem:[%s519] sm:$0xf]
      %v1275 = vld [vmem:[%s519 + $0x4] sm:$0xf]
      %v1276 = vld [vmem:[%s1] sm:$0xf]
      %v1277 = vld [vmem:[%s1 + $0x4] sm:$0xf]
      %v1278 = vld [vmem:[%s523] sm:$0x3]
      %v1281 = vunpack.c.l.b16 %v1276
      %v1282 = vunpack.c.l.b16 %v1277
      %v1283 = vpack.c.b16 %v1282, %v1281
      %vm1284 = vcmask 31744
      %v1286 = vsel %vm1284, %v1283, 0
      %vm1288 = vcmask 1041408
      %v1290 = vsel %vm1288, %v1278, 0
      %1292 = vmatprep.subr.bf16.mxu0 0
      %1293 = vmatpush1.bf16.msra.mxu0 %v1290
      %1294 = vmatprep.subr.bf16.mxu0 0
      %1295 = vmatpush1.bf16.msra.mxu0 0
      %1296 = vmatprep.subr.bf16.mxu0 0
      %1297 = vmatpush1.bf16.msra.mxu0 0
      %1298 = vmatprep.subr.bf16.mxu0 0
      %1299 = vmatpush1.bf16.msra.mxu0 0
      %1300 = vmatprep.subr.bf16.mxu0 0
      %1301 = vmatpush1.bf16.msra.mxu0 0
      %1302 = vmatprep.subr.bf16.mxu0 0
      %1303 = vmatpush1.bf16.msra.mxu0 0
      %1304 = vmatprep.subr.bf16.mxu0 0
      %1305 = vmatpush1.bf16.msra.mxu0 0
      %1306 = vmatprep.subr.bf16.mxu0 0
      %1307 = vmatpush1.bf16.msra.mxu0 0
      %1308 = vmatprep.subr.bf16.mxu0 0
      %1309 = vmatpush1.bf16.msra.mxu0 0
      %1310 = vmatprep.subr.bf16.mxu0 0
      %1311 = vmatpush1.bf16.msra.mxu0 0
      %1312 = vmatprep.subr.bf16.mxu0 0
      %1313 = vmatpush1.bf16.msra.mxu0 0
      %1314 = vmatprep.subr.bf16.mxu0 0
      %1315 = vmatpush1.bf16.msra.mxu0 0
      %1316 = vmatprep.subr.bf16.mxu0 0
      %1317 = vmatpush1.bf16.msra.mxu0 0
      %1318 = vmatprep.subr.bf16.mxu0 0
      %1319 = vmatpush1.bf16.msra.mxu0 0
      %1320 = vmatprep.subr.bf16.mxu0 0
      %1321 = vmatpush1.bf16.msra.mxu0 0
      %1322 = vmatprep.subr.bf16.mxu0 0
      %1323 = vmatpush1.bf16.msra.mxu0 0
      %1324 = vmatprep.mubr.bf16.mxu0 0
      %1325 = vmatmul.mubr.bf16.gmra.mrb[0].mxu0 %v1286
      %v1326 = vpop.f32.mrb[0].mxu0
      %v1327 = vadd.f32 0.0, %v1326
      %v1328 = vpop.f32.mrb[0].mxu0
      %v1329 = vpop.f32.mrb[0].mxu0
      %v1330 = vadd.f32 0.0, %v1329
      %v1331 = vpop.f32.mrb[0].mxu0
      %1332 = vdwg.mxu0
      %v1335 = vunpack.c.l.b16 %v1274
      %v1336 = vunpack.c.l.b16 %v1275
      %v1337 = vpack.c.b16 %v1336, %v1335
      %v1340 = vsel %vm789, %v1273, 0
      %1342 = vmatprep.subr.bf16.mxu0 0
      %1343 = vmatpush1.bf16.msra.mxu0 %v1337
      %1344 = vmatprep.subr.bf16.mxu0 0
      %1345 = vmatpush1.bf16.msra.mxu0 0
      %1346 = vmatprep.subr.bf16.mxu0 0
      %1347 = vmatpush1.bf16.msra.mxu0 0
      %1348 = vmatprep.subr.bf16.mxu0 0
      %1349 = vmatpush1.bf16.msra.mxu0 0
      %1350 = vmatprep.subr.bf16.mxu0 0
      %1351 = vmatpush1.bf16.msra.mxu0 0
      %1352 = vmatprep.subr.bf16.mxu0 0
      %1353 = vmatpush1.bf16.msra.mxu0 0
      %1354 = vmatprep.subr.bf16.mxu0 0
      %1355 = vmatpush1.bf16.msra.mxu0 0
      %1356 = vmatprep.subr.bf16.mxu0 0
      %1357 = vmatpush1.bf16.msra.mxu0 0
      %1358 = vmatprep.subr.bf16.mxu0 0
      %1359 = vmatpush1.bf16.msra.mxu0 0
      %1360 = vmatprep.subr.bf16.mxu0 0
      %1361 = vmatpush1.bf16.msra.mxu0 0
      %1362 = vmatprep.subr.bf16.mxu0 0
      %1363 = vmatpush1.bf16.msra.mxu0 0
      %1364 = vmatprep.subr.bf16.mxu0 0
      %1365 = vmatpush1.bf16.msra.mxu0 0
      %1366 = vmatprep.subr.bf16.mxu0 0
      %1367 = vmatpush1.bf16.msra.mxu0 0
      %1368 = vmatprep.subr.bf16.mxu0 0
      %1369 = vmatpush1.bf16.msra.mxu0 0
      %1370 = vmatprep.subr.bf16.mxu0 0
      %1371 = vmatpush1.bf16.msra.mxu0 0
      %1372 = vmatprep.subr.bf16.mxu0 0
      %1373 = vmatpush1.bf16.msra.mxu0 0
      %1374 = vmatprep.mubr.bf16.mxu0 0
      %1375 = vmatmul.mubr.bf16.gmra.mrb[0].mxu0 %v1340
      %v1376 = vpop.f32.mrb[0].mxu0
      %v1377 = vadd.f32 %v1327, %v1376
      %v1378 = vpop.f32.mrb[0].mxu0
      %v1379 = vpop.f32.mrb[0].mxu0
      %v1380 = vadd.f32 %v1330, %v1379
      %v1381 = vpop.f32.mrb[0].mxu0
      %1382 = vdwg.mxu0
      %v1383 = vld [vmem:[%s526] sm:$0x1]
      %v1385 = vlaneseq
      %v1386 = vshrl.u32 %v1385, 7
      %v1387 = vsub.s32 0, %v1386
      %v1388 = vrot.slane %v1383, %v1387
      %v1390 = vadd.f32 %v1377, %v1388
      %v1391 = vadd.f32 %v1380, %v1388
      %v1392 = vmax.f32 %v1390, 0.0
      %v1393 = vmax.f32 %v1391, 0.0
      %v1394 = vpack.c.bf16 %v1393, %v1392
      %v1395 = vld [vmem:[%s531] sm:$0xf]
      %v1396 = vld [vmem:[%s531 + $0x4] sm:$0x1]
      %v1397 = vld [vmem:[%s534] sm:$0x1]
      %v1399 = vlaneseq
      %v1400 = vshrl.u32 %v1399, 7
      %v1401 = vsub.s32 0, %v1400
      %v1402 = vrot.slane %v1397, %v1401
      %v1406 = vunpack.c.l.b16 %v1395
      %v1407 = vunpack.c.l.b16 %v1396
      %v1408 = vpack.c.b16 %v1407, %v1406
      %vm1409 = vcmask 80896
      %v1411 = vsel %vm1409, %v1394, 0
      %vm1413 = vcmask 1044480
      %v1415 = vsel %vm1413, %v1408, 0
      %1417 = vmatprep.subr.bf16.mxu0 0
      %1418 = vmatpush1.bf16.msra.mxu0 %v1415
      %1419 = vmatprep.subr.bf16.mxu0 0
      %1420 = vmatpush1.bf16.msra.mxu0 0
      %1421 = vmatprep.subr.bf16.mxu0 0
      %1422 = vmatpush1.bf16.msra.mxu0 0
      %1423 = vmatprep.subr.bf16.mxu0 0
      %1424 = vmatpush1.bf16.msra.mxu0 0
      %1425 = vmatprep.subr.bf16.mxu0 0
      %1426 = vmatpush1.bf16.msra.mxu0 0
      %1427 = vmatprep.subr.bf16.mxu0 0
      %1428 = vmatpush1.bf16.msra.mxu0 0
      %1429 = vmatprep.subr.bf16.mxu0 0
      %1430 = vmatpush1.bf16.msra.mxu0 0
      %1431 = vmatprep.subr.bf16.mxu0 0
      %1432 = vmatpush1.bf16.msra.mxu0 0
      %1433 = vmatprep.subr.bf16.mxu0 0
      %1434 = vmatpush1.bf16.msra.mxu0 0
      %1435 = vmatprep.subr.bf16.mxu0 0
      %1436 = vmatpush1.bf16.msra.mxu0 0
      %1437 = vmatprep.subr.bf16.mxu0 0
      %1438 = vmatpush1.bf16.msra.mxu0 0
      %1439 = vmatprep.subr.bf16.mxu0 0
      %1440 = vmatpush1.bf16.msra.mxu0 0
      %1441 = vmatprep.subr.bf16.mxu0 0
      %1442 = vmatpush1.bf16.msra.mxu0 0
      %1443 = vmatprep.subr.bf16.mxu0 0
      %1444 = vmatpush1.bf16.msra.mxu0 0
      %1445 = vmatprep.subr.bf16.mxu0 0
      %1446 = vmatpush1.bf16.msra.mxu0 0
      %1447 = vmatprep.subr.bf16.mxu0 0
      %1448 = vmatpush1.bf16.msra.mxu0 0
      %1449 = vmatprep.mubr.bf16.mxu0 0
      %1450 = vmatmul.mubr.bf16.gmra.mrb[0].mxu0 %v1411
      %v1451 = vpop.f32.mrb[0].mxu0
      %v1452 = vadd.f32 %v1402, %v1451
      %v1453 = vpop.f32.mrb[0].mxu0
      %v1454 = vpop.f32.mrb[0].mxu0
      %v1455 = vadd.f32 %v1402, %v1454
      %v1456 = vpop.f32.mrb[0].mxu0
      %1457 = vdwg.mxu0
      %vm1458 = vcmask 7168
      %1459 = vst.msk [vmem:[%s539] sm:$0xff] %vm1458, %v1452
      %1460 = vst.msk [vmem:[%s539 + $0x8] sm:$0xff] %vm1458, %v1455
      %p1461 = scmp.lt.s32.totalorder %s22, 1
      %s1462 = scalar_select %p1461, %s22, 1
      %s1463 = smul.addr %s1462, 2
      %s1464 = smul.addr %s1463, 8
      %s1465 = scalar_lea.vmem %s11, %s1464
      // Predicated region
      $region65: #{critic_forward.5} parent=63 // pred_check
        %p1466 = pneg %p321
      $region66: #{critic_forward.5} parent=63 // pred_check_branch
        %1468 = sbr.rel (%p1466) target = $region68
      $region67: #{critic_forward.5} parent=63 // pred_region
        _
      $region68: #{critic_forward.5} parent=63 // pred_fallthru
        _
    $region64: #{critic_forward.5} parent=5 // pred_fallthru
      _
    %p1469 = scmp.le.s32.totalorder 2, %s17
    // Predicated region
    $region69: #{critic_forward.5} parent=5 // pred_check
      %p1470 = pneg %p1469
    $region70: #{critic_forward.5} parent=5 // pred_check_branch
      %1472 = sbr.rel (%p1470) target = $region72
    $region71: #{critic_forward.5} parent=5 // pred_region
      %s1473 = ssub.s32 %s17, 2
      // Predicated region
      $region73: #{critic_forward.5} parent=71 // pred_check
        %p1474 = pneg %p327
      $region74: #{critic_forward.5} parent=71 // pred_check_branch
        %1476 = sbr.rel (%p1474) target = $region76
      $region75: #{critic_forward.5} parent=71 // pred_region
        %p1477 = scmp.lt.s32.totalorder %s23, 1
        %s1478 = scalar_select %p1477, %s23, 1
        %s1479 = smul.addr %s1478, 2
        %s1480 = smul.addr %s1479, 8
        %s1481 = scalar_lea.vmem %s11, %s1480
      $region76: #{critic_forward.5} parent=71 // pred_fallthru
        _
    $region72: #{critic_forward.5} parent=5 // pred_fallthru
      _
  $region6: #{critic_forward.5} parent=0 // loop_footer
    %s21 = sadd.s32 1, %s17
  $region7: #{critic_forward.5} parent=0 // loop_footer_branch
    %16 = sbr.rel target = $region3
  $region8: #{critic_forward.5} parent=0 // loop_exit
    _

</llo_original>
